<compile_context>
chip_gen: v5e
topology: v5e:2x2
jax: 0.10.0
libtpu: 0.0.40
codegen_flags: <defaults>
</compile_context>

<pallas_src>
import functools
import numpy as np

import jax
import jax.numpy as jnp
from jax.experimental import pallas as pl
from jax.experimental.pallas import tpu as pltpu

EPS = 1e-8          # RMSNorm eps (matches the reference RMSNorm default)
NEG_BIG = -1e30     # finite "minus infinity" for the padding-key bias


def _rmsnorm(x, scale):
    # Reference RMSNorm: scale * x / (||x||_2 * d^-0.5 + eps).  Exact divide (not the
    # approx reciprocal) so error does not accumulate across the residual stream.
    norm = jnp.sqrt(jnp.sum(x * x, axis=-1, keepdims=True))
    rms = norm * (x.shape[-1] ** -0.5)
    return scale * (x / (rms + EPS))


def _gelu_exact(x):
    # torch nn.GELU() default = exact erf formulation.
    # TODO(synk): on v5e consider jax.nn.gelu(approximate=True) (EUP tanh) if fidelity permits.
    return 0.5 * x * (1.0 + jax.lax.erf(x * (2.0 ** -0.5)))


def encoder_stack_kernel(x_ref, bias_ref, lnf_ref,
                         ln1_ref, wqkv_ref, wout_ref, bout_ref,
                         ln2_ref, w1_ref, b1_ref, w2_ref, b2_ref,
                         o_ref, *, n_heads):
    l = pl.program_id(1)

    # First layer of each batch block: seed the carried activation.  The output block is
    # resident across the depth axis, so it doubles as the residual-stream accumulator
    # (no VMEM scratch, HBM writeback happens only once per batch block).
    @pl.when(l == 0)
    def _():
        o_ref[...] = x_ref[...]

    x = o_ref[...]                                    # (Bb, T, D) f32, carried across depth
    Bb, T, D = x.shape
    H = n_heads
    hd = D // H
    N = Bb * T                                        # tokens processed per grid step
    key_bias = bias_ref[...]                          # (Bb, 1, T): 0 valid key, -1e30 pad key

    # ln_1 (the normed output *replaces* x — matches the reference EncoderBlock:
    #   x = ln_1(x); x = x + attn(x); x = ln_2(x); x = x + ffd(x)).
    x1 = _rmsnorm(x.reshape(N, D), ln1_ref[0])        # (N, D) f32

    # ---- attention -------------------------------------------------------------------
    # Fused, lane-dense QKV projection (att_scale already folded into the Q columns).
    qkv = jnp.dot(x1.astype(jnp.bfloat16), wqkv_ref[0],
                  preferred_element_type=jnp.float32)                       # (N, 3D)

    # Head-major rearrangement: one lane-split reshape + one layout-aware transpose; the
    # q/k/v/head split below is then a cheap leading-axis slice.
    all_heads = pltpu.einshape("nge->gne", qkv.reshape(N, 3 * H, hd))       # (3H, N, hd)
    all_heads = all_heads.reshape(3 * H * Bb, T, hd).astype(jnp.bfloat16)   # (3H*Bb, T, hd)
    G = H * Bb
    q = all_heads[:G]                                                       # (H*Bb, T, hd)
    k = all_heads[G:2 * G]
    v = all_heads[2 * G:]

    # TODO(synk): for long sequences (T >= ~512) replace this monolithic (H, T, T) softmax
    # with a KV-blocked flash-style loop (v7x 64 MiB VMEM budget), and pad T to a multiple
    # of 128 for lane-dense score/softmax tiles.
    s = jnp.einsum('gqe,gke->gqk', q, k,
                   preferred_element_type=jnp.float32)                      # (H*Bb, T, T)
    s = s.reshape(H, Bb, T, T) + key_bias[None]                             # mask padded keys
    s = s - jnp.max(s, axis=-1, keepdims=True)
    e = jnp.exp(s)
    p = e * pl.reciprocal(jnp.sum(e, axis=-1, keepdims=True), approx=True)
    p = p.reshape(H * Bb, T, T).astype(jnp.bfloat16)

    ctx = jnp.einsum('gqk,gke->gqe', p, v,
                     preferred_element_type=jnp.float32)                    # (H*Bb, T, hd)
    ctx = ctx.reshape(H, N, hd).astype(jnp.bfloat16)

    # out_proj(concat(heads)) == sum_h ctx_h @ Wout_h: accumulate head-by-head into one
    # (N, D) f32 accumulator (no (H, T, D) f32 intermediate, lane-dense N = D matmuls).
    attn = jnp.dot(ctx[0], wout_ref[0][0], preferred_element_type=jnp.float32)
    for h in range(1, H):
        attn = attn + jnp.dot(ctx[h], wout_ref[0][h],
                              preferred_element_type=jnp.float32)

    x2 = x1 + attn + bout_ref[0]

    # ---- feed-forward (dropout p = 0.0 -> identity) ------------------------------------
    x3 = _rmsnorm(x2, ln2_ref[0])
    h1 = jnp.dot(x3.astype(jnp.bfloat16), w1_ref[0],
                 preferred_element_type=jnp.float32) + b1_ref[0]
    h1 = _gelu_exact(h1)
    ff = jnp.dot(h1.astype(jnp.bfloat16), w2_ref[0],
                 preferred_element_type=jnp.float32) + b2_ref[0]
    out = x3 + ff

    o_ref[...] = out.reshape(Bb, T, D)

    # Last layer: apply the final RMSNorm (ln_f) once in the epilogue, so the MLM head
    # never re-normalizes per vocab tile.
    @pl.when(l == pl.num_programs(1) - 1)
    def _():
        o_ref[...] = _rmsnorm(out, lnf_ref[...]).reshape(Bb, T, D)


def head_kernel(x_ref, embT_ref, o_ref):
    # ln_f already applied in the encoder epilogue; the head is a pure tied-embedding matmul.
    o_ref[...] = jnp.dot(x_ref[...].astype(jnp.bfloat16), embT_ref[...],
                         preferred_element_type=jnp.float32)


def _pick_block_batch(B, T):
    # Amortize per-layer weight DMA across Bb sequences and raise the matmul M dim to
    # Bb*T (target ~256 tokens per step).  Must divide B.
    # TODO(synk): for large models also cap Bb by the VMEM budget (v7x has 64 MiB total).
    target = max(1, -(-256 // T))
    bb = 1
    for cand in range(1, B + 1):
        if B % cand == 0 and cand <= target:
            bb = cand
    return bb


def run_encoder_stack(x, key_bias, lnf, stk, n_heads):
    B, T, D = x.shape
    depth = stk["w1"].shape[0]
    assert T % 8 == 0, "T must be a multiple of 8 (sublane); pad the sequence"
    Bb = _pick_block_batch(B, T)
    kernel = functools.partial(encoder_stack_kernel, n_heads=n_heads)

    def wspec(a):
        # One layer's slab of a (depth, ...)-stacked parameter.
        nz = a.ndim - 1
        return pl.BlockSpec((1,) + a.shape[1:], lambda b, l, nz=nz: (l,) + (0,) * nz)

    # TODO(synk): set pltpu.CompilerParams(vmem_limit_bytes=...) from the real model dims
    # (double-buffered weight slab + (H,T,T) scores + (Bb*T,4D) FFN intermediate).
    return pl.pallas_call(
        kernel,
        out_shape=jax.ShapeDtypeStruct((B, T, D), jnp.float32),
        grid=(B // Bb, depth),
        in_specs=[
            pl.BlockSpec((Bb, T, D), lambda b, l: (b, 0, 0)),   # embeddings (read at l == 0)
            pl.BlockSpec((Bb, 1, T), lambda b, l: (b, 0, 0)),   # additive pad-key bias
            pl.BlockSpec((1, D), lambda b, l: (0, 0)),          # ln_f scale (epilogue)
            wspec(stk["ln1"]), wspec(stk["wqkv"]), wspec(stk["wout"]), wspec(stk["bout"]),
            wspec(stk["ln2"]), wspec(stk["w1"]), wspec(stk["b1"]),
            wspec(stk["w2"]), wspec(stk["b2"]),
        ],
        out_specs=pl.BlockSpec((Bb, T, D), lambda b, l: (b, 0, 0)),
        compiler_params=pltpu.CompilerParams(
            dimension_semantics=("parallel", "arbitrary")),
    )(x, key_bias, lnf, stk["ln1"], stk["wqkv"], stk["wout"], stk["bout"],
      stk["ln2"], stk["w1"], stk["b1"], stk["w2"], stk["b2"])


def run_head(x, embT, vocab_size):
    B, T, D = x.shape
    N = B * T
    Vp = embT.shape[1]                      # padded (lane-dense) vocab
    TN = min(Vp, 2048)                      # vocab tile, multiple of 128
    assert Vp % TN == 0
    TM = N                                  # token tile (rows); prefer >= 128
    for cand in (512, 256, 128, 64, 32, 16, 8):
        if N % cand == 0:
            TM = cand
            break

    x2d = x.reshape(N, D)
    logits = pl.pallas_call(
        head_kernel,
        out_shape=jax.ShapeDtypeStruct((N, Vp), jnp.float32),
        # Vocab tiles on the OUTER axis: each embT tile is DMA'd from HBM exactly once and
        # stays resident in VMEM while the (inner) token tiles stream past it.
        grid=(Vp // TN, N // TM),
        in_specs=[
            pl.BlockSpec((TM, D), lambda v, t: (t, 0)),
            pl.BlockSpec((D, TN), lambda v, t: (0, v)),
        ],
        out_specs=pl.BlockSpec((TM, TN), lambda v, t: (t, v)),
        compiler_params=pltpu.CompilerParams(
            dimension_semantics=("parallel", "parallel")),
    )(x2d, embT)
    return logits.reshape(B, T, Vp)[..., :vocab_size]


def _pad_vocab(v):
    vp = ((v + 127) // 128) * 128
    tn = min(vp, 2048)
    return ((vp + tn - 1) // tn) * tn


def init_params(key, config):
    V, L, D = config["vocab_size"], config["max_len"], config["dim"]
    H = config["n_heads"]
    hd = D // H
    depth = config["depth"]
    keys = jax.random.split(key, 2 + 4 * depth)

    def nrm(k, shape):
        return 0.02 * jax.random.normal(k, shape, jnp.float32)

    emb = nrm(keys[0], (V, D))              # class_embedding.weight == mlm_head.weight (tied)
    Vp = _pad_vocab(V)
    embT = jnp.zeros((D, Vp), jnp.float32).at[:, :V].set(emb.T).astype(jnp.bfloat16)

    wqkv, wout, w1, w2 = [], [], [], []
    for i in range(depth):
        k0, k1, k2, k3 = keys[2 + 4 * i: 6 + 4 * i]
        wqkv_t = nrm(k0, (D, 3 * D))                       # in_proj.weight.T (x @ W layout)
        wqkv_t = wqkv_t.at[:, :D].multiply(hd ** -0.5)     # fold att_scale into the Q columns
        wqkv.append(wqkv_t)
        wout.append(nrm(k1, (D, D)).reshape(H, hd, D))     # out_proj.weight.T, per-head rows
        w1.append(nrm(k2, (D, 4 * D)))
        w2.append(nrm(k3, (4 * D, D)))

    bf = lambda xs: jnp.stack(xs).astype(jnp.bfloat16)
    return {
        "emb": emb,
        "embT": embT,                                      # transposed + vocab-padded, bf16
        "pos": nrm(keys[1], (L, D)),
        "lnf": jnp.ones((1, D), jnp.float32),
        "stack": {
            "ln1":  jnp.ones((depth, 1, D), jnp.float32),
            "wqkv": bf(wqkv),                              # (depth, D, 3D) bf16, scale folded
            "wout": bf(wout),                              # (depth, H, hd, D) bf16
            "bout": jnp.zeros((depth, 1, D), jnp.float32),
            "ln2":  jnp.ones((depth, 1, D), jnp.float32),
            "w1":   bf(w1),                                # (depth, D, 4D) bf16
            "b1":   jnp.zeros((depth, 1, 4 * D), jnp.float32),
            "w2":   bf(w2),                                # (depth, 4D, D) bf16
            "b2":   jnp.zeros((depth, 1, D), jnp.float32),
        },
    }


def mlm_bert_forward(params, input_ids, config, MSAconf=None):
    B, T = input_ids.shape
    if MSAconf is None:
        MSAconf = jnp.ones_like(input_ids)

    # src_mask = (input_ids != pad_token_id), folded into one additive key bias (B, 1, T):
    # 0 for valid keys, -1e30 for padding (finite, so an all-masked row cannot NaN).
    key_bias = jnp.where(input_ids != config["pad_token_id"], 0.0, NEG_BIG)
    key_bias = key_bias.astype(jnp.float32)[:, None, :]

    # Embedding gather + positional add + MSAconf scale — plain JAX glue (data-dependent gather).
    x = params["emb"][input_ids] + params["pos"][:T][None, :, :]
    x = x * MSAconf[..., None].astype(jnp.float32)

    x = run_encoder_stack(x, key_bias, params["lnf"], params["stack"], config["n_heads"])
    logits = run_head(x, params["embT"], config["vocab_size"])
    return logits


if __name__ == "__main__":
    config = dict(vocab_size=32, max_len=32, dim=128, n_heads=4, depth=2,
                  attn_dropout=0.0, mlp_dropout=0.0,
                  pad_token_id=0, mask_token_id=1)

    key = jax.random.PRNGKey(0)
    pkey, dkey = jax.random.split(key)
    params = init_params(pkey, config)

    B, T = 2, 16
    input_ids = jax.random.randint(dkey, (B, T), 2, config["vocab_size"], dtype=jnp.int32)
    input_ids = input_ids.at[0, 3].set(config["mask_token_id"])
    input_ids = input_ids.at[1, 5].set(config["mask_token_id"])
    input_ids = input_ids.at[1, 15].set(config["pad_token_id"])

    logits = mlm_bert_forward(params, input_ids, config)   # no labels -> prediction branch
    logits = jax.block_until_ready(logits)

    # mask_predictions = argmax(softmax(logits[input_ids == mask_token_id]))
    # TODO(synk): boolean indexing yields a data-dependent shape; selection done host-side.
    preds = np.asarray(jnp.argmax(jax.nn.softmax(logits, axis=-1), axis=-1))
    ids_np = np.asarray(input_ids)
    mask_predictions = preds[ids_np == config["mask_token_id"]]

    assert logits.shape == (B, T, config["vocab_size"])
    assert np.isfinite(np.asarray(logits)).all()
    assert mask_predictions.shape == (2,)
    print("KERNEL_OK")
</pallas_src>

<mosaic_0001>
module attributes {stable_mosaic.version = 11 : i64} {
  func.func @encoder_stack_kernel(%arg0: i32, %arg1: i32, %arg2: memref<2x16x128xf32, #tpu.memory_space<vmem>>, %arg3: memref<2x1x16xf32, #tpu.memory_space<vmem>>, %arg4: memref<1x128xf32, #tpu.memory_space<vmem>>, %arg5: memref<1x1x128xf32, #tpu.memory_space<vmem>>, %arg6: memref<1x128x384xbf16, #tpu.memory_space<vmem>>, %arg7: memref<1x4x32x128xbf16, #tpu.memory_space<vmem>>, %arg8: memref<1x1x128xf32, #tpu.memory_space<vmem>>, %arg9: memref<1x1x128xf32, #tpu.memory_space<vmem>>, %arg10: memref<1x128x512xbf16, #tpu.memory_space<vmem>>, %arg11: memref<1x1x512xf32, #tpu.memory_space<vmem>>, %arg12: memref<1x512x128xbf16, #tpu.memory_space<vmem>>, %arg13: memref<1x1x128xf32, #tpu.memory_space<vmem>>, %arg14: memref<2x16x128xf32, #tpu.memory_space<vmem>>) attributes {dimension_semantics = [#tpu.dimension_semantics<parallel>, #tpu.dimension_semantics<arbitrary>], iteration_bounds = array<i64: 1, 2>, scalar_prefetch = 0 : i64, scratch_operands = 0 : i64, tpu.core_type = #tpu.core_type<tc>, window_params = [{transform_indices = @transform_0, window_bounds = array<i64: 2, 16, 128>}, {transform_indices = @transform_1, window_bounds = array<i64: 2, 1, 16>}, {pipeline_mode = #tpu.pipeline_mode<synchronous>, transform_indices = @transform_2, window_bounds = array<i64: 1, 128>}, {transform_indices = @transform_3, window_bounds = array<i64: 1, 1, 128>}, {transform_indices = @transform_4, window_bounds = array<i64: 1, 128, 384>}, {transform_indices = @transform_5, window_bounds = array<i64: 1, 4, 32, 128>}, {transform_indices = @transform_6, window_bounds = array<i64: 1, 1, 128>}, {transform_indices = @transform_7, window_bounds = array<i64: 1, 1, 128>}, {transform_indices = @transform_8, window_bounds = array<i64: 1, 128, 512>}, {transform_indices = @transform_9, window_bounds = array<i64: 1, 1, 512>}, {transform_indices = @transform_10, window_bounds = array<i64: 1, 512, 128>}, {transform_indices = @transform_11, window_bounds = array<i64: 1, 1, 128>}, {transform_indices = @transform_12, window_bounds = array<i64: 2, 16, 128>}]} {
    %c0_i32 = arith.constant 0 : i32
    %0 = arith.cmpi eq, %arg1, %c0_i32 : i32
    %1 = arith.extui %0 : i1 to i32
    %c0_i32_0 = arith.constant 0 : i32
    %2 = arith.cmpi ne, %1, %c0_i32_0 : i32
    scf.if %2 {
      %c0_69 = arith.constant 0 : index
      %c0_70 = arith.constant 0 : index
      %c0_71 = arith.constant 0 : index
      %131 = vector.load %arg2[%c0_69, %c0_70, %c0_71] : memref<2x16x128xf32, #tpu.memory_space<vmem>>, vector<2x16x128xf32>
      %c0_72 = arith.constant 0 : index
      %c0_73 = arith.constant 0 : index
      %c0_74 = arith.constant 0 : index
      %132 = vector.load %arg14[%c0_72, %c0_73, %c0_74] : memref<2x16x128xf32, #tpu.memory_space<vmem>>, vector<2x16x128xf32>
      tpu.vector_store %arg14[%c0_72, %c0_73, %c0_74], %131 {strides = array<i32>} : memref<2x16x128xf32, #tpu.memory_space<vmem>>, vector<2x16x128xf32>,
    } else {
    }
    %c0 = arith.constant 0 : index
    %c0_1 = arith.constant 0 : index
    %c0_2 = arith.constant 0 : index
    %3 = vector.load %arg14[%c0, %c0_1, %c0_2] : memref<2x16x128xf32, #tpu.memory_space<vmem>>, vector<2x16x128xf32>
    %c0_3 = arith.constant 0 : index
    %c0_4 = arith.constant 0 : index
    %c0_5 = arith.constant 0 : index
    %4 = vector.load %arg3[%c0_3, %c0_4, %c0_5] : memref<2x1x16xf32, #tpu.memory_space<vmem>>, vector<2x1x16xf32>
    %5 = vector.shape_cast %3 : vector<2x16x128xf32> to vector<32x128xf32>
    %c0_6 = arith.constant 0 : index
    %c0_7 = arith.constant 0 : index
    %c0_8 = arith.constant 0 : index
    %6 = vector.load %arg5[%c0_6, %c0_7, %c0_8] : memref<1x1x128xf32, #tpu.memory_space<vmem>>, vector<1x1x128xf32>
    %7 = vector.shape_cast %6 : vector<1x1x128xf32> to vector<1x128xf32>
    %8 = arith.mulf %5, %5 : vector<32x128xf32>
    %cst = arith.constant dense<0.000000e+00> : vector<32xf32>
    %9 = vector.multi_reduction <add>, %8, %cst [1] : vector<32x128xf32> to vector<32xf32>
    %10 = vector.shape_cast %9 : vector<32xf32> to vector<32x1xf32>
    %11 = math.sqrt %10 : vector<32x1xf32>
    %cst_9 = arith.constant 0.0883883461 : f32
    %12 = vector.broadcast %cst_9 : f32 to vector<32x1xf32>
    %13 = arith.mulf %11, %12 : vector<32x1xf32>
    %cst_10 = arith.constant 9.99999993E-9 : f32
    %14 = vector.broadcast %cst_10 : f32 to vector<32x1xf32>
    %15 = arith.addf %13, %14 : vector<32x1xf32>
    %16 = vector.broadcast %15 : vector<32x1xf32> to vector<32x128xf32>
    %17 = arith.divf %5, %16 : vector<32x128xf32>
    %18 = vector.broadcast %7 : vector<1x128xf32> to vector<32x128xf32>
    %19 = arith.mulf %18, %17 : vector<32x128xf32>
    %20 = arith.truncf %19 : vector<32x128xf32> to vector<32x128xbf16>
    %c0_11 = arith.constant 0 : index
    %c0_12 = arith.constant 0 : index
    %c0_13 = arith.constant 0 : index
    %21 = vector.load %arg6[%c0_11, %c0_12, %c0_13] : memref<1x128x384xbf16, #tpu.memory_space<vmem>>, vector<1x128x384xbf16>
    %22 = vector.shape_cast %21 : vector<1x128x384xbf16> to vector<128x384xbf16>
    %cst_14 = arith.constant dense<0.000000e+00> : vector<32x384xf32>
    %23 = tpu.matmul %20, %22, %cst_14 {dimension_numbers = #tpu.dot_dimension_numbers<[1], [0], [0], [1], [0, 0, 1, 1], [], []>} : vector<32x128xbf16>, vector<128x384xbf16>, vector<32x384xf32> -> vector<32x384xf32>
    %24 = vector.shape_cast %23 : vector<32x384xf32> to vector<32x12x32xf32>
    %25 = tpu.transpose %24, [1, 0, 2] : vector<32x12x32xf32> -> vector<12x32x32xf32>
    %26 = vector.shape_cast %25 : vector<12x32x32xf32> to vector<24x16x32xf32>
    %27 = arith.truncf %26 : vector<24x16x32xf32> to vector<24x16x32xbf16>
    %28 = vector.extract_strided_slice %27 {offsets = [0, 0, 0], sizes = [8, 16, 32], strides = [1, 1, 1]} : vector<24x16x32xbf16> to vector<8x16x32xbf16>
    %29 = vector.extract_strided_slice %27 {offsets = [8, 0, 0], sizes = [8, 16, 32], strides = [1, 1, 1]} : vector<24x16x32xbf16> to vector<8x16x32xbf16>
    %30 = vector.extract_strided_slice %27 {offsets = [16, 0, 0], sizes = [8, 16, 32], strides = [1, 1, 1]} : vector<24x16x32xbf16> to vector<8x16x32xbf16>
    "tpu.trace_start"() <{level = 10 : i32, message = "gqe,gke->gqk"}> : () -> ()
    %cst_15 = arith.constant dense<0.000000e+00> : vector<8x16x16xf32>
    %31 = tpu.matmul %28, %29, %cst_15 {dimension_numbers = #tpu.dot_dimension_numbers<[2], [2], [1], [1], [0, 0, 0, 1, 1, 1], [0], [0]>} : vector<8x16x32xbf16>, vector<8x16x32xbf16>, vector<8x16x16xf32> -> vector<8x16x16xf32>
    "tpu.trace_stop"() : () -> ()
    %32 = vector.shape_cast %31 : vector<8x16x16xf32> to vector<4x2x16x16xf32>
    %33 = vector.shape_cast %4 : vector<2x1x16xf32> to vector<1x2x1x16xf32>
    %34 = vector.broadcast %33 : vector<1x2x1x16xf32> to vector<4x2x16x16xf32>
    %35 = arith.addf %32, %34 : vector<4x2x16x16xf32>
    %cst_16 = arith.constant dense<0xFF800000> : vector<4x2x16xf32>
    %36 = vector.multi_reduction <maximumf>, %35, %cst_16 [3] : vector<4x2x16x16xf32> to vector<4x2x16xf32>
    %37 = vector.shape_cast %36 : vector<4x2x16xf32> to vector<4x2x16x1xf32>
    %38 = vector.broadcast %37 : vector<4x2x16x1xf32> to vector<4x2x16x16xf32>
    %39 = arith.subf %35, %38 : vector<4x2x16x16xf32>
    %40 = math.exp %39 : vector<4x2x16x16xf32>
    %cst_17 = arith.constant dense<0.000000e+00> : vector<4x2x16xf32>
    %41 = vector.multi_reduction <add>, %40, %cst_17 [3] : vector<4x2x16x16xf32> to vector<4x2x16xf32>
    %42 = vector.shape_cast %41 : vector<4x2x16xf32> to vector<4x2x16x1xf32>
    %43 = tpu.reciprocal %42 {approx = true} : vector<4x2x16x1xf32> -> vector<4x2x16x1xf32>
    %44 = vector.broadcast %43 : vector<4x2x16x1xf32> to vector<4x2x16x16xf32>
    %45 = arith.mulf %40, %44 : vector<4x2x16x16xf32>
    %46 = vector.shape_cast %45 : vector<4x2x16x16xf32> to vector<8x16x16xf32>
    %47 = arith.truncf %46 : vector<8x16x16xf32> to vector<8x16x16xbf16>
    "tpu.trace_start"() <{level = 10 : i32, message = "gqk,gke->gqe"}> : () -> ()
    %cst_18 = arith.constant dense<0.000000e+00> : vector<8x16x32xf32>
    %48 = tpu.matmul %47, %30, %cst_18 {dimension_numbers = #tpu.dot_dimension_numbers<[2], [1], [1], [2], [0, 0, 0, 1, 1, 2], [0], [0]>} : vector<8x16x16xbf16>, vector<8x16x32xbf16>, vector<8x16x32xf32> -> vector<8x16x32xf32>
    "tpu.trace_stop"() : () -> ()
    %49 = vector.shape_cast %48 : vector<8x16x32xf32> to vector<4x32x32xf32>
    %50 = arith.truncf %49 : vector<4x32x32xf32> to vector<4x32x32xbf16>
    %51 = vector.extract_strided_slice %50 {offsets = [0, 0, 0], sizes = [1, 32, 32], strides = [1, 1, 1]} : vector<4x32x32xbf16> to vector<1x32x32xbf16>
    %52 = vector.shape_cast %51 : vector<1x32x32xbf16> to vector<32x32xbf16>
    %c0_19 = arith.constant 0 : index
    %c0_20 = arith.constant 0 : index
    %c0_21 = arith.constant 0 : index
    %c0_22 = arith.constant 0 : index
    %53 = vector.load %arg7[%c0_19, %c0_20, %c0_21, %c0_22] : memref<1x4x32x128xbf16, #tpu.memory_space<vmem>>, vector<1x4x32x128xbf16>
    %54 = vector.shape_cast %53 : vector<1x4x32x128xbf16> to vector<4x32x128xbf16>
    %55 = vector.extract_strided_slice %54 {offsets = [0, 0, 0], sizes = [1, 32, 128], strides = [1, 1, 1]} : vector<4x32x128xbf16> to vector<1x32x128xbf16>
    %56 = vector.shape_cast %55 : vector<1x32x128xbf16> to vector<32x128xbf16>
    %cst_23 = arith.constant dense<0.000000e+00> : vector<32x128xf32>
    %57 = tpu.matmul %52, %56, %cst_23 {dimension_numbers = #tpu.dot_dimension_numbers<[1], [0], [0], [1], [0, 0, 1, 1], [], []>} : vector<32x32xbf16>, vector<32x128xbf16>, vector<32x128xf32> -> vector<32x128xf32>
    %58 = vector.extract_strided_slice %50 {offsets = [1, 0, 0], sizes = [1, 32, 32], strides = [1, 1, 1]} : vector<4x32x32xbf16> to vector<1x32x32xbf16>
    %59 = vector.shape_cast %58 : vector<1x32x32xbf16> to vector<32x32xbf16>
    %c0_24 = arith.constant 0 : index
    %c0_25 = arith.constant 0 : index
    %c0_26 = arith.constant 0 : index
    %c0_27 = arith.constant 0 : index
    %60 = vector.load %arg7[%c0_24, %c0_25, %c0_26, %c0_27] : memref<1x4x32x128xbf16, #tpu.memory_space<vmem>>, vector<1x4x32x128xbf16>
    %61 = vector.shape_cast %60 : vector<1x4x32x128xbf16> to vector<4x32x128xbf16>
    %62 = vector.extract_strided_slice %61 {offsets = [1, 0, 0], sizes = [1, 32, 128], strides = [1, 1, 1]} : vector<4x32x128xbf16> to vector<1x32x128xbf16>
    %63 = vector.shape_cast %62 : vector<1x32x128xbf16> to vector<32x128xbf16>
    %cst_28 = arith.constant dense<0.000000e+00> : vector<32x128xf32>
    %64 = tpu.matmul %59, %63, %cst_28 {dimension_numbers = #tpu.dot_dimension_numbers<[1], [0], [0], [1], [0, 0, 1, 1], [], []>} : vector<32x32xbf16>, vector<32x128xbf16>, vector<32x128xf32> -> vector<32x128xf32>
    %65 = arith.addf %57, %64 : vector<32x128xf32>
    %66 = vector.extract_strided_slice %50 {offsets = [2, 0, 0], sizes = [1, 32, 32], strides = [1, 1, 1]} : vector<4x32x32xbf16> to vector<1x32x32xbf16>
    %67 = vector.shape_cast %66 : vector<1x32x32xbf16> to vector<32x32xbf16>
    %c0_29 = arith.constant 0 : index
    %c0_30 = arith.constant 0 : index
    %c0_31 = arith.constant 0 : index
    %c0_32 = arith.constant 0 : index
    %68 = vector.load %arg7[%c0_29, %c0_30, %c0_31, %c0_32] : memref<1x4x32x128xbf16, #tpu.memory_space<vmem>>, vector<1x4x32x128xbf16>
    %69 = vector.shape_cast %68 : vector<1x4x32x128xbf16> to vector<4x32x128xbf16>
    %70 = vector.extract_strided_slice %69 {offsets = [2, 0, 0], sizes = [1, 32, 128], strides = [1, 1, 1]} : vector<4x32x128xbf16> to vector<1x32x128xbf16>
    %71 = vector.shape_cast %70 : vector<1x32x128xbf16> to vector<32x128xbf16>
    %cst_33 = arith.constant dense<0.000000e+00> : vector<32x128xf32>
    %72 = tpu.matmul %67, %71, %cst_33 {dimension_numbers = #tpu.dot_dimension_numbers<[1], [0], [0], [1], [0, 0, 1, 1], [], []>} : vector<32x32xbf16>, vector<32x128xbf16>, vector<32x128xf32> -> vector<32x128xf32>
    %73 = arith.addf %65, %72 : vector<32x128xf32>
    %74 = vector.extract_strided_slice %50 {offsets = [3, 0, 0], sizes = [1, 32, 32], strides = [1, 1, 1]} : vector<4x32x32xbf16> to vector<1x32x32xbf16>
    %75 = vector.shape_cast %74 : vector<1x32x32xbf16> to vector<32x32xbf16>
    %c0_34 = arith.constant 0 : index
    %c0_35 = arith.constant 0 : index
    %c0_36 = arith.constant 0 : index
    %c0_37 = arith.constant 0 : index
    %76 = vector.load %arg7[%c0_34, %c0_35, %c0_36, %c0_37] : memref<1x4x32x128xbf16, #tpu.memory_space<vmem>>, vector<1x4x32x128xbf16>
    %77 = vector.shape_cast %76 : vector<1x4x32x128xbf16> to vector<4x32x128xbf16>
    %78 = vector.extract_strided_slice %77 {offsets = [3, 0, 0], sizes = [1, 32, 128], strides = [1, 1, 1]} : vector<4x32x128xbf16> to vector<1x32x128xbf16>
    %79 = vector.shape_cast %78 : vector<1x32x128xbf16> to vector<32x128xbf16>
    %cst_38 = arith.constant dense<0.000000e+00> : vector<32x128xf32>
    %80 = tpu.matmul %75, %79, %cst_38 {dimension_numbers = #tpu.dot_dimension_numbers<[1], [0], [0], [1], [0, 0, 1, 1], [], []>} : vector<32x32xbf16>, vector<32x128xbf16>, vector<32x128xf32> -> vector<32x128xf32>
    %81 = arith.addf %73, %80 : vector<32x128xf32>
    %82 = arith.addf %19, %81 : vector<32x128xf32>
    %c0_39 = arith.constant 0 : index
    %c0_40 = arith.constant 0 : index
    %c0_41 = arith.constant 0 : index
    %83 = vector.load %arg8[%c0_39, %c0_40, %c0_41] : memref<1x1x128xf32, #tpu.memory_space<vmem>>, vector<1x1x128xf32>
    %84 = vector.shape_cast %83 : vector<1x1x128xf32> to vector<1x128xf32>
    %85 = vector.broadcast %84 : vector<1x128xf32> to vector<32x128xf32>
    %86 = arith.addf %82, %85 : vector<32x128xf32>
    %c0_42 = arith.constant 0 : index
    %c0_43 = arith.constant 0 : index
    %c0_44 = arith.constant 0 : index
    %87 = vector.load %arg9[%c0_42, %c0_43, %c0_44] : memref<1x1x128xf32, #tpu.memory_space<vmem>>, vector<1x1x128xf32>
    %88 = vector.shape_cast %87 : vector<1x1x128xf32> to vector<1x128xf32>
    %89 = arith.mulf %86, %86 : vector<32x128xf32>
    %cst_45 = arith.constant dense<0.000000e+00> : vector<32xf32>
    %90 = vector.multi_reduction <add>, %89, %cst_45 [1] : vector<32x128xf32> to vector<32xf32>
    %91 = vector.shape_cast %90 : vector<32xf32> to vector<32x1xf32>
    %92 = math.sqrt %91 : vector<32x1xf32>
    %cst_46 = arith.constant 0.0883883461 : f32
    %93 = vector.broadcast %cst_46 : f32 to vector<32x1xf32>
    %94 = arith.mulf %92, %93 : vector<32x1xf32>
    %cst_47 = arith.constant 9.99999993E-9 : f32
    %95 = vector.broadcast %cst_47 : f32 to vector<32x1xf32>
    %96 = arith.addf %94, %95 : vector<32x1xf32>
    %97 = vector.broadcast %96 : vector<32x1xf32> to vector<32x128xf32>
    %98 = arith.divf %86, %97 : vector<32x128xf32>
    %99 = vector.broadcast %88 : vector<1x128xf32> to vector<32x128xf32>
    %100 = arith.mulf %99, %98 : vector<32x128xf32>
    %101 = arith.truncf %100 : vector<32x128xf32> to vector<32x128xbf16>
    %c0_48 = arith.constant 0 : index
    %c0_49 = arith.constant 0 : index
    %c0_50 = arith.constant 0 : index
    %102 = vector.load %arg10[%c0_48, %c0_49, %c0_50] : memref<1x128x512xbf16, #tpu.memory_space<vmem>>, vector<1x128x512xbf16>
    %103 = vector.shape_cast %102 : vector<1x128x512xbf16> to vector<128x512xbf16>
    %cst_51 = arith.constant dense<0.000000e+00> : vector<32x512xf32>
    %104 = tpu.matmul %101, %103, %cst_51 {dimension_numbers = #tpu.dot_dimension_numbers<[1], [0], [0], [1], [0, 0, 1, 1], [], []>} : vector<32x128xbf16>, vector<128x512xbf16>, vector<32x512xf32> -> vector<32x512xf32>
    %c0_52 = arith.constant 0 : index
    %c0_53 = arith.constant 0 : index
    %c0_54 = arith.constant 0 : index
    %105 = vector.load %arg11[%c0_52, %c0_53, %c0_54] : memref<1x1x512xf32, #tpu.memory_space<vmem>>, vector<1x1x512xf32>
    %106 = vector.shape_cast %105 : vector<1x1x512xf32> to vector<1x512xf32>
    %107 = vector.broadcast %106 : vector<1x512xf32> to vector<32x512xf32>
    %108 = arith.addf %104, %107 : vector<32x512xf32>
    %cst_55 = arith.constant 5.000000e-01 : f32
    %109 = vector.broadcast %cst_55 : f32 to vector<32x512xf32>
    %110 = arith.mulf %109, %108 : vector<32x512xf32>
    %cst_56 = arith.constant 0.707106769 : f32
    %111 = vector.broadcast %cst_56 : f32 to vector<32x512xf32>
    %112 = arith.mulf %108, %111 : vector<32x512xf32>
    %113 = math.erf %112 : vector<32x512xf32>
    %cst_57 = arith.constant 1.000000e+00 : f32
    %114 = vector.broadcast %cst_57 : f32 to vector<32x512xf32>
    %115 = arith.addf %114, %113 : vector<32x512xf32>
    %116 = arith.mulf %110, %115 : vector<32x512xf32>
    %117 = arith.truncf %116 : vector<32x512xf32> to vector<32x512xbf16>
    %c0_58 = arith.constant 0 : index
    %c0_59 = arith.constant 0 : index
    %c0_60 = arith.constant 0 : index
    %118 = vector.load %arg12[%c0_58, %c0_59, %c0_60] : memref<1x512x128xbf16, #tpu.memory_space<vmem>>, vector<1x512x128xbf16>
    %119 = vector.shape_cast %118 : vector<1x512x128xbf16> to vector<512x128xbf16>
    %cst_61 = arith.constant dense<0.000000e+00> : vector<32x128xf32>
    %120 = tpu.matmul %117, %119, %cst_61 {dimension_numbers = #tpu.dot_dimension_numbers<[1], [0], [0], [1], [0, 0, 1, 1], [], []>} : vector<32x512xbf16>, vector<512x128xbf16>, vector<32x128xf32> -> vector<32x128xf32>
    %c0_62 = arith.constant 0 : index
    %c0_63 = arith.constant 0 : index
    %c0_64 = arith.constant 0 : index
    %121 = vector.load %arg13[%c0_62, %c0_63, %c0_64] : memref<1x1x128xf32, #tpu.memory_space<vmem>>, vector<1x1x128xf32>
    %122 = vector.shape_cast %121 : vector<1x1x128xf32> to vector<1x128xf32>
    %123 = vector.broadcast %122 : vector<1x128xf32> to vector<32x128xf32>
    %124 = arith.addf %120, %123 : vector<32x128xf32>
    %125 = arith.addf %100, %124 : vector<32x128xf32>
    %126 = vector.shape_cast %125 : vector<32x128xf32> to vector<2x16x128xf32>
    %c0_65 = arith.constant 0 : index
    %c0_66 = arith.constant 0 : index
    %c0_67 = arith.constant 0 : index
    %127 = vector.load %arg14[%c0_65, %c0_66, %c0_67] : memref<2x16x128xf32, #tpu.memory_space<vmem>>, vector<2x16x128xf32>
    tpu.vector_store %arg14[%c0_65, %c0_66, %c0_67], %126 {strides = array<i32>} : memref<2x16x128xf32, #tpu.memory_space<vmem>>, vector<2x16x128xf32>,
    %c1_i32 = arith.constant 1 : i32
    %128 = arith.cmpi eq, %arg1, %c1_i32 : i32
    %129 = arith.extui %128 : i1 to i32
    %c0_i32_68 = arith.constant 0 : i32
    %130 = arith.cmpi ne, %129, %c0_i32_68 : i32
    scf.if %130 {
      %c0_69 = arith.constant 0 : index
      %c0_70 = arith.constant 0 : index
      %131 = vector.load %arg4[%c0_69, %c0_70] : memref<1x128xf32, #tpu.memory_space<vmem>>, vector<1x128xf32>
      %132 = arith.mulf %125, %125 : vector<32x128xf32>
      %cst_71 = arith.constant dense<0.000000e+00> : vector<32xf32>
      %133 = vector.multi_reduction <add>, %132, %cst_71 [1] : vector<32x128xf32> to vector<32xf32>
      %134 = vector.shape_cast %133 : vector<32xf32> to vector<32x1xf32>
      %135 = math.sqrt %134 : vector<32x1xf32>
      %cst_72 = arith.constant 0.0883883461 : f32
      %136 = vector.broadcast %cst_72 : f32 to vector<32x1xf32>
      %137 = arith.mulf %135, %136 : vector<32x1xf32>
      %cst_73 = arith.constant 9.99999993E-9 : f32
      %138 = vector.broadcast %cst_73 : f32 to vector<32x1xf32>
      %139 = arith.addf %137, %138 : vector<32x1xf32>
      %140 = vector.broadcast %139 : vector<32x1xf32> to vector<32x128xf32>
      %141 = arith.divf %125, %140 : vector<32x128xf32>
      %142 = vector.broadcast %131 : vector<1x128xf32> to vector<32x128xf32>
      %143 = arith.mulf %142, %141 : vector<32x128xf32>
      %144 = vector.shape_cast %143 : vector<32x128xf32> to vector<2x16x128xf32>
      %c0_74 = arith.constant 0 : index
      %c0_75 = arith.constant 0 : index
      %c0_76 = arith.constant 0 : index
      %145 = vector.load %arg14[%c0_74, %c0_75, %c0_76] : memref<2x16x128xf32, #tpu.memory_space<vmem>>, vector<2x16x128xf32>
      tpu.vector_store %arg14[%c0_74, %c0_75, %c0_76], %144 {strides = array<i32>} : memref<2x16x128xf32, #tpu.memory_space<vmem>>, vector<2x16x128xf32>,
    } else {
    }
    return
  }
  func.func @transform_0(%arg0: i32, %arg1: i32) -> (i32, i32, i32) {
    %c0_i32 = arith.constant 0 : i32
    %c0_i32_0 = arith.constant 0 : i32
    %c0_i32_1 = arith.constant 0 : i32
    return %arg0, %c0_i32, %c0_i32_0 : i32, i32, i32
  }
  func.func @transform_1(%arg0: i32, %arg1: i32) -> (i32, i32, i32) {
    %c0_i32 = arith.constant 0 : i32
    %c0_i32_0 = arith.constant 0 : i32
    %c0_i32_1 = arith.constant 0 : i32
    return %arg0, %c0_i32, %c0_i32_0 : i32, i32, i32
  }
  func.func @transform_2(%arg0: i32, %arg1: i32) -> (i32, i32) {
    %c0_i32 = arith.constant 0 : i32
    %c0_i32_0 = arith.constant 0 : i32
    %c0_i32_1 = arith.constant 0 : i32
    return %c0_i32, %c0_i32_0 : i32, i32
  }
  func.func @transform_3(%arg0: i32, %arg1: i32) -> (i32, i32, i32) {
    %c0_i32 = arith.constant 0 : i32
    %c0_i32_0 = arith.constant 0 : i32
    %c0_i32_1 = arith.constant 0 : i32
    return %arg1, %c0_i32, %c0_i32_0 : i32, i32, i32
  }
  func.func @transform_4(%arg0: i32, %arg1: i32) -> (i32, i32, i32) {
    %c0_i32 = arith.constant 0 : i32
    %c0_i32_0 = arith.constant 0 : i32
    %c0_i32_1 = arith.constant 0 : i32
    return %arg1, %c0_i32, %c0_i32_0 : i32, i32, i32
  }
  func.func @transform_5(%arg0: i32, %arg1: i32) -> (i32, i32, i32, i32) {
    %c0_i32 = arith.constant 0 : i32
    %c0_i32_0 = arith.constant 0 : i32
    %c0_i32_1 = arith.constant 0 : i32
    %c0_i32_2 = arith.constant 0 : i32
    return %arg1, %c0_i32, %c0_i32_0, %c0_i32_1 : i32, i32, i32, i32
  }
  func.func @transform_6(%arg0: i32, %arg1: i32) -> (i32, i32, i32) {
    %c0_i32 = arith.constant 0 : i32
    %c0_i32_0 = arith.constant 0 : i32
    %c0_i32_1 = arith.constant 0 : i32
    return %arg1, %c0_i32, %c0_i32_0 : i32, i32, i32
  }
  func.func @transform_7(%arg0: i32, %arg1: i32) -> (i32, i32, i32) {
    %c0_i32 = arith.constant 0 : i32
    %c0_i32_0 = arith.constant 0 : i32
    %c0_i32_1 = arith.constant 0 : i32
    return %arg1, %c0_i32, %c0_i32_0 : i32, i32, i32
  }
  func.func @transform_8(%arg0: i32, %arg1: i32) -> (i32, i32, i32) {
    %c0_i32 = arith.constant 0 : i32
    %c0_i32_0 = arith.constant 0 : i32
    %c0_i32_1 = arith.constant 0 : i32
    return %arg1, %c0_i32, %c0_i32_0 : i32, i32, i32
  }
  func.func @transform_9(%arg0: i32, %arg1: i32) -> (i32, i32, i32) {
    %c0_i32 = arith.constant 0 : i32
    %c0_i32_0 = arith.constant 0 : i32
    %c0_i32_1 = arith.constant 0 : i32
    return %arg1, %c0_i32, %c0_i32_0 : i32, i32, i32
  }
  func.func @transform_10(%arg0: i32, %arg1: i32) -> (i32, i32, i32) {
    %c0_i32 = arith.constant 0 : i32
    %c0_i32_0 = arith.constant 0 : i32
    %c0_i32_1 = arith.constant 0 : i32
    return %arg1, %c0_i32, %c0_i32_0 : i32, i32, i32
  }
  func.func @transform_11(%arg0: i32, %arg1: i32) -> (i32, i32, i32) {
    %c0_i32 = arith.constant 0 : i32
    %c0_i32_0 = arith.constant 0 : i32
    %c0_i32_1 = arith.constant 0 : i32
    return %arg1, %c0_i32, %c0_i32_0 : i32, i32, i32
  }
  func.func @transform_12(%arg0: i32, %arg1: i32) -> (i32, i32, i32) {
    %c0_i32 = arith.constant 0 : i32
    %c0_i32_0 = arith.constant 0 : i32
    %c0_i32_1 = arith.constant 0 : i32
    return %arg0, %c0_i32, %c0_i32_0 : i32, i32, i32
  }
}

</mosaic_0001>

<llo_original>
// kernel: tpu_custom_call.1
$region0: #{tpu_custom_call.1}
  #allocation0 [shape = 'u32[]', space=smem, size = 0x4, offset = 0x4, fixed_abs, tag = 'smem constant byte address 0x4 - core index']
  #allocation1 [shape = 'u32[72,128]{1,0:T(1,128)}', space=vmem, size = 0x9000, scoped, tag = 'internal scratch']
  %s0 = inlined_call_operand.hbm [shape: f32[2,16,128], index: 0, kind: input, shape index: {}]
  %s1 = inlined_call_operand.hbm [shape: f32[2,1,16], index: 1, kind: input, shape index: {}]
  %s2 = inlined_call_operand.hbm [shape: f32[1,128], index: 2, kind: input, shape index: {}]
  %s3 = inlined_call_operand.hbm [shape: f32[2,1,128], index: 3, kind: input, shape index: {}]
  %s4 = inlined_call_operand.hbm [shape: bf16[2,128,384], index: 4, kind: input, shape index: {}]
  %s5 = inlined_call_operand.hbm [shape: bf16[2,4,32,128], index: 5, kind: input, shape index: {}]
  %s6 = inlined_call_operand.hbm [shape: f32[2,1,128], index: 6, kind: input, shape index: {}]
  %s7 = inlined_call_operand.hbm [shape: f32[2,1,128], index: 7, kind: input, shape index: {}]
  %s8 = inlined_call_operand.hbm [shape: bf16[2,128,512], index: 8, kind: input, shape index: {}]
  %s9 = inlined_call_operand.vmem [shape: f32[2,1,512], index: 9, kind: input, shape index: {}]
  %s10 = inlined_call_operand.hbm [shape: bf16[2,512,128], index: 10, kind: input, shape index: {}]
  %s11 = inlined_call_operand.vmem [shape: f32[2,1,128], index: 11, kind: input, shape index: {}]
  %s12 = inlined_call_operand.hbm [shape: f32[2,16,128], index: 12, kind: output, shape index: {}]
  %s13 = sld [smem:[#allocation0]]
  $region129: #{tpu_custom_call.1} parent=0
    _
  %s15 = ssub.s32 1, %s13
  %s16 = scalar_select 0, %s15, %s13
  $region1: #{tpu_custom_call.1} parent=0
    #allocation2 [shape = 'u8[16384]{0}', space=vmem, size = 0x4000, scoped, tag = 'input window, operand 0, single buffered']
    #allocation3 [shape = 's32[2]{0}', space=sflag, size = 0x8, scoped, tag = 'scoped memory for tpu_custom_call.1']
    #allocation4 [shape = 's32[2]{0}', space=sflag, size = 0x8, scoped, tag = 'scoped memory for tpu_custom_call.1']
    #allocation5 [shape = 'u8[1024]{0}', space=vmem, size = 0x400, scoped, tag = 'input window, operand 1, single buffered']
    #allocation6 [shape = 's32[1]{0}', space=sflag, size = 0x4, scoped, tag = 'scoped memory for tpu_custom_call.1']
    #allocation7 [shape = 'u8[512]{0}', space=vmem, size = 0x400, scoped, tag = 'input window, operand 2, single buffered']
    #allocation8 [shape = 'u8[1024]{0}', space=vmem, size = 0x400, scoped, tag = 'input window, operand 3']
    #allocation9 [shape = 's32[2]{0}', space=sflag, size = 0x8, scoped, tag = 'scoped memory for tpu_custom_call.1']
    #allocation10 [shape = 'u8[196608]{0}', space=vmem, size = 0x30000, scoped, tag = 'input window, operand 4']
    #allocation11 [shape = 'u8[65536]{0}', space=vmem, size = 0x10000, scoped, tag = 'input window, operand 5']
    #allocation12 [shape = 's32[2]{0}', space=sflag, size = 0x8, scoped, tag = 'scoped memory for tpu_custom_call.1']
    #allocation13 [shape = 'u8[1024]{0}', space=vmem, size = 0x400, scoped, tag = 'input window, operand 6']
    #allocation14 [shape = 'u8[1024]{0}', space=vmem, size = 0x400, scoped, tag = 'input window, operand 7']
    #allocation15 [shape = 's32[2]{0}', space=sflag, size = 0x8, scoped, tag = 'scoped memory for tpu_custom_call.1']
    #allocation16 [shape = 'u8[262144]{0}', space=vmem, size = 0x40000, scoped, tag = 'input window, operand 8']
    #allocation17 [shape = 'u8[262144]{0}', space=vmem, size = 0x40000, scoped, tag = 'input window, operand 10']
    #allocation18 [shape = 's32[2]{0}', space=sflag, size = 0x8, scoped, tag = 'scoped memory for tpu_custom_call.1']
    #allocation19 [shape = 'u8[16384]{0}', space=vmem, size = 0x4000, scoped, tag = 'output window, operand 0, single buffered']
    %17 = vsyncpa [#allocation3], 0
    %18 = vsyncpa [#allocation6], 0
    %19 = vsyncpa [#allocation9], 0
    %s20 = scalar_lea.sflag [#allocation9], 1
    %21 = vsyncpa %s20, 0
    %22 = vsyncpa [#allocation12], 0
    %s23 = scalar_lea.sflag [#allocation12], 1
    %24 = vsyncpa %s23, 0
    %25 = vsyncpa [#allocation15], 0
    %s26 = scalar_lea.sflag [#allocation15], 1
    %27 = vsyncpa %s26, 0
    %28 = vsyncpa [#allocation18], 0
    %s29 = scalar_lea.sflag [#allocation18], 1
    %30 = vsyncpa %s29, 0
    %31 = vsyncpa [#allocation4], 0
    loop: start=0, step=1, limit=4
    $region2: #{tpu_custom_call.1} parent=1 // loop_pre_header
      _
    $region3: #{tpu_custom_call.1} parent=1 // loop_header
      %s33 = sphi 0, %s37
      %p34 = scmp.ge.s32.totalorder %s33, 4
      %s40 = sphi 0, %s52
      %s41 = sphi 0, %s48
      %s42 = sphi 0, %s40
      %s43 = sphi 0, %s41
      %s44 = sphi 0, %s42
      %s45 = sphi 0, %s43
      %s55 = sphi 0, %s57
      %s58 = sphi 0, %s55
      %s59 = sphi 0, %s58
      %s75 = sphi 0, %s59
      %s81 = sphi 0, %s83
      %s84 = sphi 0, %s81
      %s85 = sphi 0, %s84
      %s101 = sphi 0, %s85
      %s105 = sphi 0, %s105
      %s107 = sphi 0, %s105
      %s108 = sphi 0, %s107
      %s122 = sphi 0, %s108
      %s128 = sphi 0, %s130
      %s131 = sphi 0, %s128
      %s132 = sphi 0, %s131
      %s148 = sphi 0, %s132
      %s154 = sphi 0, %s156
      %s157 = sphi 0, %s154
      %s158 = sphi 0, %s157
      %s174 = sphi 0, %s158
      %s180 = sphi 0, %s182
      %s183 = sphi 0, %s180
      %s184 = sphi 0, %s183
      %s200 = sphi 0, %s184
      %s206 = sphi 0, %s208
      %s209 = sphi 0, %s206
      %s210 = sphi 0, %s209
      %s226 = sphi 0, %s210
      %s232 = sphi 0, %s234
      %s235 = sphi 0, %s232
      %s236 = sphi 0, %s235
      %s252 = sphi 0, %s236
      %s258 = sphi 0, %s260
      %s261 = sphi 0, %s258
      %s262 = sphi 0, %s261
      %s278 = sphi 0, %s262
      %s284 = sphi 0, %s286
      %s287 = sphi 0, %s284
      %s288 = sphi 0, %s287
      %s304 = sphi 0, %s288
      %s310 = sphi 0, %s312
      %s313 = sphi 0, %s310
      %s314 = sphi 0, %s313
      %s330 = sphi 0, %s314
      %s336 = sphi 0, %s338
      %s339 = sphi 0, %s336
      %s340 = sphi 0, %s339
      %s356 = sphi 0, %s340
      %s362 = sphi 0, %s364
      %s365 = sphi 0, %s362
      %s366 = sphi 0, %s365
      %s382 = sphi 0, %s366
    $region4: #{tpu_custom_call.1} parent=1 // loop_header_branch
      %36 = sbr.rel (%p34) target = $region8
    $region5: #{tpu_custom_call.1} parent=1 // loop_body
      %s38 = ssub.s32 %s33, 1
      %s39 = ssub.s32 %s33, 2
      %s46 = sadd.s32 1, %s41
      %p47 = scmp.ge.s32.totalorder %s46, 2
      %s48 = scalar_select %p47, 0, %s46
      %s49 = sadd.s32 1, %s40
      %s50 = scalar_select %p47, %s49, %s40
      %p51 = scmp.ge.s32.totalorder %s50, 1
      %s52 = scalar_select %p51, 0, %s50
      %s53 = ssub.s32 %s40, %s52
      %p54 = scmp.eq.s32.totalorder %s53, 0
      %s56 = sadd.s32 %s55, 1
      %s57 = scalar_select %p54, %s55, %s56
      %p60 = pneg %p54
      %p61 = scmp.eq.s32.totalorder %s33, 1
      %p62 = por %p60, %p61
      %p63 = scmp.ne.s32.totalorder %s55, %s58
      %p64 = scmp.eq.s32.totalorder %s33, 0
      %p65 = por %p63, %p64
      %p66 = scmp.ne.s32.totalorder %s55, %s58
      %p67 = scmp.eq.s32.totalorder %s38, 1
      %p68 = por %p66, %p67
      %p69 = scmp.ne.s32.totalorder %s58, %s59
      %p70 = scmp.eq.s32.totalorder %s38, 0
      %p71 = por %p69, %p70
      %p72 = scmp.ne.s32.totalorder %s58, %s59
      %p73 = scmp.eq.s32.totalorder %s39, 1
      %p74 = por %p72, %p73
      %p76 = scmp.ne.s32.totalorder %s59, %s75
      %p77 = scmp.eq.s32.totalorder %s39, 0
      %p78 = por %p76, %p77
      %s79 = ssub.s32 %s40, %s52
      %p80 = scmp.eq.s32.totalorder %s79, 0
      %s82 = sadd.s32 %s81, 1
      %s83 = scalar_select %p80, %s81, %s82
      %p86 = pneg %p80
      %p87 = scmp.eq.s32.totalorder %s33, 1
      %p88 = por %p86, %p87
      %p89 = scmp.ne.s32.totalorder %s81, %s84
      %p90 = scmp.eq.s32.totalorder %s33, 0
      %p91 = por %p89, %p90
      %p92 = scmp.ne.s32.totalorder %s81, %s84
      %p93 = scmp.eq.s32.totalorder %s38, 1
      %p94 = por %p92, %p93
      %p95 = scmp.ne.s32.totalorder %s84, %s85
      %p96 = scmp.eq.s32.totalorder %s38, 0
      %p97 = por %p95, %p96
      %p98 = scmp.ne.s32.totalorder %s84, %s85
      %p99 = scmp.eq.s32.totalorder %s39, 1
      %p100 = por %p98, %p99
      %p102 = scmp.ne.s32.totalorder %s85, %s101
      %p103 = scmp.eq.s32.totalorder %s39, 0
      %p104 = por %p102, %p103
      %s106 = sadd.s32 %s105, 1
      %p109 = scmp.eq.s32.totalorder %s33, 1
      %p110 = scmp.ne.s32.totalorder %s105, %s107
      %p111 = scmp.eq.s32.totalorder %s33, 0
      %p112 = por %p110, %p111
      %p113 = scmp.ne.s32.totalorder %s105, %s107
      %p114 = scmp.eq.s32.totalorder %s38, 1
      %p115 = por %p113, %p114
      %p116 = scmp.ne.s32.totalorder %s107, %s108
      %p117 = scmp.eq.s32.totalorder %s38, 0
      %p118 = por %p116, %p117
      %p119 = scmp.ne.s32.totalorder %s107, %s108
      %p120 = scmp.eq.s32.totalorder %s39, 1
      %p121 = por %p119, %p120
      %p123 = scmp.ne.s32.totalorder %s108, %s122
      %p124 = scmp.eq.s32.totalorder %s39, 0
      %p125 = por %p123, %p124
      %s126 = ssub.s32 %s41, %s48
      %p127 = scmp.eq.s32.totalorder %s126, 0
      %s129 = sadd.s32 %s128, 1
      %s130 = scalar_select %p127, %s128, %s129
      %p133 = pneg %p127
      %p134 = scmp.eq.s32.totalorder %s33, 1
      %p135 = por %p133, %p134
      %p136 = scmp.ne.s32.totalorder %s128, %s131
      %p137 = scmp.eq.s32.totalorder %s33, 0
      %p138 = por %p136, %p137
      %p139 = scmp.ne.s32.totalorder %s128, %s131
      %p140 = scmp.eq.s32.totalorder %s38, 1
      %p141 = por %p139, %p140
      %p142 = scmp.ne.s32.totalorder %s131, %s132
      %p143 = scmp.eq.s32.totalorder %s38, 0
      %p144 = por %p142, %p143
      %p145 = scmp.ne.s32.totalorder %s131, %s132
      %p146 = scmp.eq.s32.totalorder %s39, 1
      %p147 = por %p145, %p146
      %p149 = scmp.ne.s32.totalorder %s132, %s148
      %p150 = scmp.eq.s32.totalorder %s39, 0
      %p151 = por %p149, %p150
      %s152 = ssub.s32 %s41, %s48
      %p153 = scmp.eq.s32.totalorder %s152, 0
      %s155 = sadd.s32 %s154, 1
      %s156 = scalar_select %p153, %s154, %s155
      %p159 = pneg %p153
      %p160 = scmp.eq.s32.totalorder %s33, 1
      %p161 = por %p159, %p160
      %p162 = scmp.ne.s32.totalorder %s154, %s157
      %p163 = scmp.eq.s32.totalorder %s33, 0
      %p164 = por %p162, %p163
      %p165 = scmp.ne.s32.totalorder %s154, %s157
      %p166 = scmp.eq.s32.totalorder %s38, 1
      %p167 = por %p165, %p166
      %p168 = scmp.ne.s32.totalorder %s157, %s158
      %p169 = scmp.eq.s32.totalorder %s38, 0
      %p170 = por %p168, %p169
      %p171 = scmp.ne.s32.totalorder %s157, %s158
      %p172 = scmp.eq.s32.totalorder %s39, 1
      %p173 = por %p171, %p172
      %p175 = scmp.ne.s32.totalorder %s158, %s174
      %p176 = scmp.eq.s32.totalorder %s39, 0
      %p177 = por %p175, %p176
      %s178 = ssub.s32 %s41, %s48
      %p179 = scmp.eq.s32.totalorder %s178, 0
      %s181 = sadd.s32 %s180, 1
      %s182 = scalar_select %p179, %s180, %s181
      %p185 = pneg %p179
      %p186 = scmp.eq.s32.totalorder %s33, 1
      %p187 = por %p185, %p186
      %p188 = scmp.ne.s32.totalorder %s180, %s183
      %p189 = scmp.eq.s32.totalorder %s33, 0
      %p190 = por %p188, %p189
      %p191 = scmp.ne.s32.totalorder %s180, %s183
      %p192 = scmp.eq.s32.totalorder %s38, 1
      %p193 = por %p191, %p192
      %p194 = scmp.ne.s32.totalorder %s183, %s184
      %p195 = scmp.eq.s32.totalorder %s38, 0
      %p196 = por %p194, %p195
      %p197 = scmp.ne.s32.totalorder %s183, %s184
      %p198 = scmp.eq.s32.totalorder %s39, 1
      %p199 = por %p197, %p198
      %p201 = scmp.ne.s32.totalorder %s184, %s200
      %p202 = scmp.eq.s32.totalorder %s39, 0
      %p203 = por %p201, %p202
      %s204 = ssub.s32 %s41, %s48
      %p205 = scmp.eq.s32.totalorder %s204, 0
      %s207 = sadd.s32 %s206, 1
      %s208 = scalar_select %p205, %s206, %s207
      %p211 = pneg %p205
      %p212 = scmp.eq.s32.totalorder %s33, 1
      %p213 = por %p211, %p212
      %p214 = scmp.ne.s32.totalorder %s206, %s209
      %p215 = scmp.eq.s32.totalorder %s33, 0
      %p216 = por %p214, %p215
      %p217 = scmp.ne.s32.totalorder %s206, %s209
      %p218 = scmp.eq.s32.totalorder %s38, 1
      %p219 = por %p217, %p218
      %p220 = scmp.ne.s32.totalorder %s209, %s210
      %p221 = scmp.eq.s32.totalorder %s38, 0
      %p222 = por %p220, %p221
      %p223 = scmp.ne.s32.totalorder %s209, %s210
      %p224 = scmp.eq.s32.totalorder %s39, 1
      %p225 = por %p223, %p224
      %p227 = scmp.ne.s32.totalorder %s210, %s226
      %p228 = scmp.eq.s32.totalorder %s39, 0
      %p229 = por %p227, %p228
      %s230 = ssub.s32 %s41, %s48
      %p231 = scmp.eq.s32.totalorder %s230, 0
      %s233 = sadd.s32 %s232, 1
      %s234 = scalar_select %p231, %s232, %s233
      %p237 = pneg %p231
      %p238 = scmp.eq.s32.totalorder %s33, 1
      %p239 = por %p237, %p238
      %p240 = scmp.ne.s32.totalorder %s232, %s235
      %p241 = scmp.eq.s32.totalorder %s33, 0
      %p242 = por %p240, %p241
      %p243 = scmp.ne.s32.totalorder %s232, %s235
      %p244 = scmp.eq.s32.totalorder %s38, 1
      %p245 = por %p243, %p244
      %p246 = scmp.ne.s32.totalorder %s235, %s236
      %p247 = scmp.eq.s32.totalorder %s38, 0
      %p248 = por %p246, %p247
      %p249 = scmp.ne.s32.totalorder %s235, %s236
      %p250 = scmp.eq.s32.totalorder %s39, 1
      %p251 = por %p249, %p250
      %p253 = scmp.ne.s32.totalorder %s236, %s252
      %p254 = scmp.eq.s32.totalorder %s39, 0
      %p255 = por %p253, %p254
      %s256 = ssub.s32 %s41, %s48
      %p257 = scmp.eq.s32.totalorder %s256, 0
      %s259 = sadd.s32 %s258, 1
      %s260 = scalar_select %p257, %s258, %s259
      %p263 = pneg %p257
      %p264 = scmp.eq.s32.totalorder %s33, 1
      %p265 = por %p263, %p264
      %p266 = scmp.ne.s32.totalorder %s258, %s261
      %p267 = scmp.eq.s32.totalorder %s33, 0
      %p268 = por %p266, %p267
      %p269 = scmp.ne.s32.totalorder %s258, %s261
      %p270 = scmp.eq.s32.totalorder %s38, 1
      %p271 = por %p269, %p270
      %p272 = scmp.ne.s32.totalorder %s261, %s262
      %p273 = scmp.eq.s32.totalorder %s38, 0
      %p274 = por %p272, %p273
      %p275 = scmp.ne.s32.totalorder %s261, %s262
      %p276 = scmp.eq.s32.totalorder %s39, 1
      %p277 = por %p275, %p276
      %p279 = scmp.ne.s32.totalorder %s262, %s278
      %p280 = scmp.eq.s32.totalorder %s39, 0
      %p281 = por %p279, %p280
      %s282 = ssub.s32 %s41, %s48
      %p283 = scmp.eq.s32.totalorder %s282, 0
      %s285 = sadd.s32 %s284, 1
      %s286 = scalar_select %p283, %s284, %s285
      %p289 = pneg %p283
      %p290 = scmp.eq.s32.totalorder %s33, 1
      %p291 = por %p289, %p290
      %p292 = scmp.ne.s32.totalorder %s284, %s287
      %p293 = scmp.eq.s32.totalorder %s33, 0
      %p294 = por %p292, %p293
      %p295 = scmp.ne.s32.totalorder %s284, %s287
      %p296 = scmp.eq.s32.totalorder %s38, 1
      %p297 = por %p295, %p296
      %p298 = scmp.ne.s32.totalorder %s287, %s288
      %p299 = scmp.eq.s32.totalorder %s38, 0
      %p300 = por %p298, %p299
      %p301 = scmp.ne.s32.totalorder %s287, %s288
      %p302 = scmp.eq.s32.totalorder %s39, 1
      %p303 = por %p301, %p302
      %p305 = scmp.ne.s32.totalorder %s288, %s304
      %p306 = scmp.eq.s32.totalorder %s39, 0
      %p307 = por %p305, %p306
      %s308 = ssub.s32 %s41, %s48
      %p309 = scmp.eq.s32.totalorder %s308, 0
      %s311 = sadd.s32 %s310, 1
      %s312 = scalar_select %p309, %s310, %s311
      %p315 = pneg %p309
      %p316 = scmp.eq.s32.totalorder %s33, 1
      %p317 = por %p315, %p316
      %p318 = scmp.ne.s32.totalorder %s310, %s313
      %p319 = scmp.eq.s32.totalorder %s33, 0
      %p320 = por %p318, %p319
      %p321 = scmp.ne.s32.totalorder %s310, %s313
      %p322 = scmp.eq.s32.totalorder %s38, 1
      %p323 = por %p321, %p322
      %p324 = scmp.ne.s32.totalorder %s313, %s314
      %p325 = scmp.eq.s32.totalorder %s38, 0
      %p326 = por %p324, %p325
      %p327 = scmp.ne.s32.totalorder %s313, %s314
      %p328 = scmp.eq.s32.totalorder %s39, 1
      %p329 = por %p327, %p328
      %p331 = scmp.ne.s32.totalorder %s314, %s330
      %p332 = scmp.eq.s32.totalorder %s39, 0
      %p333 = por %p331, %p332
      %s334 = ssub.s32 %s41, %s48
      %p335 = scmp.eq.s32.totalorder %s334, 0
      %s337 = sadd.s32 %s336, 1
      %s338 = scalar_select %p335, %s336, %s337
      %p341 = pneg %p335
      %p342 = scmp.eq.s32.totalorder %s33, 1
      %p343 = por %p341, %p342
      %p344 = scmp.ne.s32.totalorder %s336, %s339
      %p345 = scmp.eq.s32.totalorder %s33, 0
      %p346 = por %p344, %p345
      %p347 = scmp.ne.s32.totalorder %s336, %s339
      %p348 = scmp.eq.s32.totalorder %s38, 1
      %p349 = por %p347, %p348
      %p350 = scmp.ne.s32.totalorder %s339, %s340
      %p351 = scmp.eq.s32.totalorder %s38, 0
      %p352 = por %p350, %p351
      %p353 = scmp.ne.s32.totalorder %s339, %s340
      %p354 = scmp.eq.s32.totalorder %s39, 1
      %p355 = por %p353, %p354
      %p357 = scmp.ne.s32.totalorder %s340, %s356
      %p358 = scmp.eq.s32.totalorder %s39, 0
      %p359 = por %p357, %p358
      %s360 = ssub.s32 %s40, %s52
      %p361 = scmp.eq.s32.totalorder %s360, 0
      %s363 = sadd.s32 %s362, 1
      %s364 = scalar_select %p361, %s362, %s363
      %p367 = pneg %p361
      %p368 = scmp.eq.s32.totalorder %s33, 1
      %p369 = por %p367, %p368
      %p370 = scmp.ne.s32.totalorder %s362, %s365
      %p371 = scmp.eq.s32.totalorder %s33, 0
      %p372 = por %p370, %p371
      %p373 = scmp.ne.s32.totalorder %s362, %s365
      %p374 = scmp.eq.s32.totalorder %s38, 1
      %p375 = por %p373, %p374
      %p376 = scmp.ne.s32.totalorder %s365, %s366
      %p377 = scmp.eq.s32.totalorder %s38, 0
      %p378 = por %p376, %p377
      %p379 = scmp.ne.s32.totalorder %s365, %s366
      %p380 = scmp.eq.s32.totalorder %s39, 1
      %p381 = por %p379, %p380
      %p383 = scmp.ne.s32.totalorder %s366, %s382
      %p384 = scmp.eq.s32.totalorder %s39, 0
      %p385 = por %p383, %p384
      %p386 = scmp.le.s32.totalorder 1, %s33
      %p387 = scmp.lt.s32.totalorder %s33, 3
      %p388 = pnand %p386, %p387
      %p389 = pneg %p388
      // Predicated region
      $region9: #{tpu_custom_call.1} parent=5 // pred_check
        _
      $region10: #{tpu_custom_call.1} parent=5 // pred_check_branch
        %391 = sbr.rel (%p388) target = $region12
      $region11: #{tpu_custom_call.1} parent=5 // pred_region
        %s392 = ssub.s32 %s33, 1
        // Predicated region
        $region13: #{tpu_custom_call.1} parent=11 // pred_check
          %p393 = pneg %p71
        $region14: #{tpu_custom_call.1} parent=11 // pred_check_branch
          %395 = sbr.rel (%p393) target = $region16
        $region15: #{tpu_custom_call.1} parent=11 // pred_region
          %s396 = smul.u32 2, %s42
          %398 = vsyncadd [#allocation3], 0
          %s399 = smul.addr %s396, 2
          %s400 = smul.addr %s399, 8
          %s401 = scalar_lea.hbm %s0, %s400
          %s402 = sshll.u32 %s401, 4
          %s403 = int_to_ptr.hbm [resolvable:$true] %s402
          %s404 = sshll.u32 [#allocation2], 4
          %s405 = int_to_ptr.vmem [resolvable:$true] %s404
          %410 = dma.hbm_to_vmem [thread:$0]  %s403, 512, %s405, [#allocation3], 128, 128, 8
        $region16: #{tpu_custom_call.1} parent=11 // pred_fallthru
          _
        // Predicated region
        $region17: #{tpu_custom_call.1} parent=11 // pred_check
          %p411 = pneg %p97
        $region18: #{tpu_custom_call.1} parent=11 // pred_check_branch
          %413 = sbr.rel (%p411) target = $region20
        $region19: #{tpu_custom_call.1} parent=11 // pred_region
          %s414 = smul.u32 2, %s42
          %416 = vsyncadd [#allocation6], 0
          %s417 = scalar_lea.hbm %s1, %s414
          %s418 = sshll.u32 %s417, 4
          %s419 = int_to_ptr.hbm [resolvable:$true] %s418
          %s420 = sshll.u32 [#allocation5], 4
          %s421 = int_to_ptr.vmem [resolvable:$true] %s420
          %426 = dma.hbm_to_vmem [thread:$0]  %s419, 32, %s421, [#allocation6], 16, 16, 1
        $region20: #{tpu_custom_call.1} parent=11 // pred_fallthru
          _
        // Predicated region
        $region21: #{tpu_custom_call.1} parent=11 // pred_check
          %p427 = pneg %p118
        $region22: #{tpu_custom_call.1} parent=11 // pred_check_branch
          %429 = sbr.rel (%p427) target = $region24
        $region23: #{tpu_custom_call.1} parent=11 // pred_region
          %431 = vsyncadd [#allocation6], 0
          %s433 = sshll.u32 %s2, 4
          %s434 = int_to_ptr.hbm [resolvable:$true] %s433
          %s435 = sshll.u32 [#allocation7], 4
          %s436 = int_to_ptr.vmem [resolvable:$true] %s435
          %438 = dma.hbm_to_vmem [thread:$0]  %s434, 16, %s436, [#allocation6]
        $region24: #{tpu_custom_call.1} parent=11 // pred_fallthru
          _
      $region12: #{tpu_custom_call.1} parent=5 // pred_fallthru
        _
      %p439 = scmp.lt.s32.totalorder %s33, 2
      // Predicated region
      $region25: #{tpu_custom_call.1} parent=5 // pred_check
        %p440 = pneg %p439
      $region26: #{tpu_custom_call.1} parent=5 // pred_check_branch
        %442 = sbr.rel (%p440) target = $region28
      $region27: #{tpu_custom_call.1} parent=5 // pred_region
        // Predicated region
        $region29: #{tpu_custom_call.1} parent=27 // pred_check
          %p443 = pneg %p138
        $region30: #{tpu_custom_call.1} parent=27 // pred_check_branch
          %445 = sbr.rel (%p443) target = $region32
        $region31: #{tpu_custom_call.1} parent=27 // pred_region
          %s446 = sand.u32 %s33, 1
          %s447 = scalar_lea.sflag [#allocation9], %s446
          %s448 = sand.u32 %s128, 1
          %s449 = scalar_lea.vmem [#allocation8], %s448
          %451 = vsyncadd %s447, 0
          %s452 = scalar_lea.hbm %s3, %s41
          %s454 = sshll.u32 %s452, 4
          %s455 = int_to_ptr.hbm [resolvable:$true] %s454
          %s456 = sshll.u32 %s449, 4
          %s457 = int_to_ptr.vmem [resolvable:$true] %s456
          %459 = dma.hbm_to_vmem [thread:$0]  %s455, 16, %s457, %s447
        $region32: #{tpu_custom_call.1} parent=27 // pred_fallthru
          _
        // Predicated region
        $region33: #{tpu_custom_call.1} parent=27 // pred_check
          %p460 = pneg %p164
        $region34: #{tpu_custom_call.1} parent=27 // pred_check_branch
          %462 = sbr.rel (%p460) target = $region36
        $region35: #{tpu_custom_call.1} parent=27 // pred_region
          %s463 = sand.u32 %s33, 1
          %s464 = scalar_lea.sflag [#allocation9], %s463
          %s465 = sand.u32 %s154, 1
          %s466 = smul.addr %s465, 192
          %s467 = scalar_lea.vmem [#allocation10], %s466
          %469 = vsyncadd %s464, 0
          %s470 = smul.addr %s41, 48
          %s471 = smul.addr %s470, 4
          %s472 = scalar_lea.hbm %s4, %s471
          %s473 = sshll.u32 %s472, 4
          %s474 = int_to_ptr.hbm [resolvable:$true] %s473
          %s475 = sshll.u32 %s467, 4
          %s476 = int_to_ptr.vmem [resolvable:$true] %s475
          %481 = dma.hbm_to_vmem [thread:$0]  %s474, 3072, %s476, %s464, 192, 192, 12
        $region36: #{tpu_custom_call.1} parent=27 // pred_fallthru
          _
        // Predicated region
        $region37: #{tpu_custom_call.1} parent=27 // pred_check
          %p482 = pneg %p190
        $region38: #{tpu_custom_call.1} parent=27 // pred_check_branch
          %484 = sbr.rel (%p482) target = $region40
        $region39: #{tpu_custom_call.1} parent=27 // pred_region
          %s485 = sand.u32 %s33, 1
          %s486 = scalar_lea.sflag [#allocation12], %s485
          %s487 = sand.u32 %s180, 1
          %s488 = smul.addr %s487, 64
          %s489 = scalar_lea.vmem [#allocation11], %s488
          %491 = vsyncadd %s486, 0
          %s492 = smul.addr %s41, 16
          %s493 = smul.addr %s492, 4
          %s494 = scalar_lea.hbm %s5, %s493
          %s495 = sshll.u32 %s494, 4
          %s496 = int_to_ptr.hbm [resolvable:$true] %s495
          %s497 = sshll.u32 %s489, 4
          %s498 = int_to_ptr.vmem [resolvable:$true] %s497
          %503 = dma.hbm_to_vmem [thread:$0]  %s496, 1024, %s498, %s486, 64, 64, 4
        $region40: #{tpu_custom_call.1} parent=27 // pred_fallthru
          _
        // Predicated region
        $region41: #{tpu_custom_call.1} parent=27 // pred_check
          %p504 = pneg %p216
        $region42: #{tpu_custom_call.1} parent=27 // pred_check_branch
          %506 = sbr.rel (%p504) target = $region44
        $region43: #{tpu_custom_call.1} parent=27 // pred_region
          %s507 = sand.u32 %s33, 1
          %s508 = scalar_lea.sflag [#allocation12], %s507
          %s509 = sand.u32 %s206, 1
          %s510 = scalar_lea.vmem [#allocation13], %s509
          %512 = vsyncadd %s508, 0
          %s513 = scalar_lea.hbm %s6, %s41
          %s515 = sshll.u32 %s513, 4
          %s516 = int_to_ptr.hbm [resolvable:$true] %s515
          %s517 = sshll.u32 %s510, 4
          %s518 = int_to_ptr.vmem [resolvable:$true] %s517
          %520 = dma.hbm_to_vmem [thread:$0]  %s516, 16, %s518, %s508
        $region44: #{tpu_custom_call.1} parent=27 // pred_fallthru
          _
        // Predicated region
        $region45: #{tpu_custom_call.1} parent=27 // pred_check
          %p521 = pneg %p242
        $region46: #{tpu_custom_call.1} parent=27 // pred_check_branch
          %523 = sbr.rel (%p521) target = $region48
        $region47: #{tpu_custom_call.1} parent=27 // pred_region
          %s524 = sand.u32 %s33, 1
          %s525 = scalar_lea.sflag [#allocation15], %s524
          %s526 = sand.u32 %s232, 1
          %s527 = scalar_lea.vmem [#allocation14], %s526
          %529 = vsyncadd %s525, 0
          %s530 = scalar_lea.hbm %s7, %s41
          %s532 = sshll.u32 %s530, 4
          %s533 = int_to_ptr.hbm [resolvable:$true] %s532
          %s534 = sshll.u32 %s527, 4
          %s535 = int_to_ptr.vmem [resolvable:$true] %s534
          %537 = dma.hbm_to_vmem [thread:$0]  %s533, 16, %s535, %s525
        $region48: #{tpu_custom_call.1} parent=27 // pred_fallthru
          _
        // Predicated region
        $region49: #{tpu_custom_call.1} parent=27 // pred_check
          %p538 = pneg %p268
        $region50: #{tpu_custom_call.1} parent=27 // pred_check_branch
          %540 = sbr.rel (%p538) target = $region52
        $region51: #{tpu_custom_call.1} parent=27 // pred_region
          %s541 = sand.u32 %s33, 1
          %s542 = scalar_lea.sflag [#allocation15], %s541
          %s543 = sand.u32 %s258, 1
          %s544 = smul.addr %s543, 256
          %s545 = scalar_lea.vmem [#allocation16], %s544
          %547 = vsyncadd %s542, 0
          %s548 = smul.addr %s41, 64
          %s549 = smul.addr %s548, 4
          %s550 = scalar_lea.hbm %s8, %s549
          %s551 = sshll.u32 %s550, 4
          %s552 = int_to_ptr.hbm [resolvable:$true] %s551
          %s553 = sshll.u32 %s545, 4
          %s554 = int_to_ptr.vmem [resolvable:$true] %s553
          %559 = dma.hbm_to_vmem [thread:$0]  %s552, 4096, %s554, %s542, 256, 256, 16
        $region52: #{tpu_custom_call.1} parent=27 // pred_fallthru
          _
        // Predicated region
        $region53: #{tpu_custom_call.1} parent=27 // pred_check
          %p560 = pneg %p294
        $region54: #{tpu_custom_call.1} parent=27 // pred_check_branch
          %562 = sbr.rel (%p560) target = $region56
        $region55: #{tpu_custom_call.1} parent=27 // pred_region
          %p563 = scmp.lt.s32.totalorder %s41, 1
          %s564 = scalar_select %p563, %s41, 1
          %s565 = smul.addr %s564, 4
          %s566 = scalar_lea.vmem %s9, %s565
        $region56: #{tpu_custom_call.1} parent=27 // pred_fallthru
          _
        // Predicated region
        $region57: #{tpu_custom_call.1} parent=27 // pred_check
          %p567 = pneg %p320
        $region58: #{tpu_custom_call.1} parent=27 // pred_check_branch
          %569 = sbr.rel (%p567) target = $region60
        $region59: #{tpu_custom_call.1} parent=27 // pred_region
          %s570 = sand.u32 %s310, 1
          %s571 = scalar_lea.sflag [#allocation18], %s570
          %s572 = sand.u32 %s310, 1
          %s573 = smul.addr %s572, 256
          %s574 = scalar_lea.vmem [#allocation17], %s573
          %576 = vsyncadd %s571, 0
          %s577 = smul.addr %s41, 64
          %s578 = smul.addr %s577, 4
          %s579 = scalar_lea.hbm %s10, %s578
          %s580 = sshll.u32 %s579, 4
          %s581 = int_to_ptr.hbm [resolvable:$true] %s580
          %s582 = sshll.u32 %s574, 4
          %s583 = int_to_ptr.vmem [resolvable:$true] %s582
          %588 = dma.hbm_to_vmem [thread:$0]  %s581, 4096, %s583, %s571, 64, 64, 4
        $region60: #{tpu_custom_call.1} parent=27 // pred_fallthru
          _
        // Predicated region
        $region61: #{tpu_custom_call.1} parent=27 // pred_check
          %p589 = pneg %p346
        $region62: #{tpu_custom_call.1} parent=27 // pred_check_branch
          %591 = sbr.rel (%p589) target = $region64
        $region63: #{tpu_custom_call.1} parent=27 // pred_region
          %p592 = scmp.lt.s32.totalorder %s41, 1
          %s593 = scalar_select %p592, %s41, 1
          %s594 = scalar_lea.vmem %s11, %s593
        $region64: #{tpu_custom_call.1} parent=27 // pred_fallthru
          _
      $region28: #{tpu_custom_call.1} parent=5 // pred_fallthru
        _
      %p595 = scmp.le.s32.totalorder 1, %s33
      %p596 = scmp.lt.s32.totalorder %s33, 3
      %p597 = pnand %p595, %p596
      %p598 = pneg %p597
      // Predicated region
      $region65: #{tpu_custom_call.1} parent=5 // pred_check
        _
      $region66: #{tpu_custom_call.1} parent=5 // pred_check_branch
        %600 = sbr.rel (%p597) target = $region68
      $region67: #{tpu_custom_call.1} parent=5 // pred_region
        %s601 = ssub.s32 %s33, 1
        // Predicated region
        $region69: #{tpu_custom_call.1} parent=67 // pred_check
          %p602 = pneg %p71
        $region70: #{tpu_custom_call.1} parent=67 // pred_check_branch
          %604 = sbr.rel (%p602) target = $region72
        $region71: #{tpu_custom_call.1} parent=67 // pred_region
          %606 = dma.done [#allocation3], 512
        $region72: #{tpu_custom_call.1} parent=67 // pred_fallthru
          _
        // Predicated region
        $region73: #{tpu_custom_call.1} parent=67 // pred_check
          %p607 = pneg %p97
        $region74: #{tpu_custom_call.1} parent=67 // pred_check_branch
          %609 = sbr.rel (%p607) target = $region76
        $region75: #{tpu_custom_call.1} parent=67 // pred_region
          %611 = dma.done [#allocation6], 32
        $region76: #{tpu_custom_call.1} parent=67 // pred_fallthru
          _
        // Predicated region
        $region77: #{tpu_custom_call.1} parent=67 // pred_check
          %p612 = pneg %p118
        $region78: #{tpu_custom_call.1} parent=67 // pred_check_branch
          %614 = sbr.rel (%p612) target = $region80
        $region79: #{tpu_custom_call.1} parent=67 // pred_region
          %616 = dma.done [#allocation6], 16
        $region80: #{tpu_custom_call.1} parent=67 // pred_fallthru
          _
        %s617 = sand.u32 %s38, 1
        %s618 = scalar_lea.sflag [#allocation9], %s617
        %s619 = sand.u32 %s131, 1
        %s620 = scalar_lea.vmem [#allocation8], %s619
        // Predicated region
        $region81: #{tpu_custom_call.1} parent=67 // pred_check
          %p621 = pneg %p144
        $region82: #{tpu_custom_call.1} parent=67 // pred_check_branch
          %623 = sbr.rel (%p621) target = $region84
        $region83: #{tpu_custom_call.1} parent=67 // pred_region
          %625 = dma.done %s618, 16
        $region84: #{tpu_custom_call.1} parent=67 // pred_fallthru
          _
        %s626 = sand.u32 %s38, 1
        %s627 = scalar_lea.sflag [#allocation9], %s626
        %s628 = sand.u32 %s157, 1
        %s629 = smul.addr %s628, 192
        %s630 = scalar_lea.vmem [#allocation10], %s629
        // Predicated region
        $region85: #{tpu_custom_call.1} parent=67 // pred_check
          %p631 = pneg %p170
        $region86: #{tpu_custom_call.1} parent=67 // pred_check_branch
          %633 = sbr.rel (%p631) target = $region88
        $region87: #{tpu_custom_call.1} parent=67 // pred_region
          %635 = dma.done %s627, 3072
        $region88: #{tpu_custom_call.1} parent=67 // pred_fallthru
          _
        %s636 = sand.u32 %s38, 1
        %s637 = scalar_lea.sflag [#allocation12], %s636
        %s638 = sand.u32 %s183, 1
        %s639 = smul.addr %s638, 64
        %s640 = scalar_lea.vmem [#allocation11], %s639
        // Predicated region
        $region89: #{tpu_custom_call.1} parent=67 // pred_check
          %p641 = pneg %p196
        $region90: #{tpu_custom_call.1} parent=67 // pred_check_branch
          %643 = sbr.rel (%p641) target = $region92
        $region91: #{tpu_custom_call.1} parent=67 // pred_region
          %645 = dma.done %s637, 1024
        $region92: #{tpu_custom_call.1} parent=67 // pred_fallthru
          _
        %s646 = sand.u32 %s38, 1
        %s647 = scalar_lea.sflag [#allocation12], %s646
        %s648 = sand.u32 %s209, 1
        %s649 = scalar_lea.vmem [#allocation13], %s648
        // Predicated region
        $region93: #{tpu_custom_call.1} parent=67 // pred_check
          %p650 = pneg %p222
        $region94: #{tpu_custom_call.1} parent=67 // pred_check_branch
          %652 = sbr.rel (%p650) target = $region96
        $region95: #{tpu_custom_call.1} parent=67 // pred_region
          %654 = dma.done %s647, 16
        $region96: #{tpu_custom_call.1} parent=67 // pred_fallthru
          _
        %s655 = sand.u32 %s38, 1
        %s656 = scalar_lea.sflag [#allocation15], %s655
        %s657 = sand.u32 %s235, 1
        %s658 = scalar_lea.vmem [#allocation14], %s657
        // Predicated region
        $region97: #{tpu_custom_call.1} parent=67 // pred_check
          %p659 = pneg %p248
        $region98: #{tpu_custom_call.1} parent=67 // pred_check_branch
          %661 = sbr.rel (%p659) target = $region100
        $region99: #{tpu_custom_call.1} parent=67 // pred_region
          %663 = dma.done %s656, 16
        $region100: #{tpu_custom_call.1} parent=67 // pred_fallthru
          _
        %s664 = sand.u32 %s38, 1
        %s665 = scalar_lea.sflag [#allocation15], %s664
        %s666 = sand.u32 %s261, 1
        %s667 = smul.addr %s666, 256
        %s668 = scalar_lea.vmem [#allocation16], %s667
        // Predicated region
        $region101: #{tpu_custom_call.1} parent=67 // pred_check
          %p669 = pneg %p274
        $region102: #{tpu_custom_call.1} parent=67 // pred_check_branch
          %671 = sbr.rel (%p669) target = $region104
        $region103: #{tpu_custom_call.1} parent=67 // pred_region
          %673 = dma.done %s665, 4096
        $region104: #{tpu_custom_call.1} parent=67 // pred_fallthru
          _
        %s674 = sand.u32 %s313, 1
        %s675 = scalar_lea.sflag [#allocation18], %s674
        %s676 = sand.u32 %s313, 1
        %s677 = smul.addr %s676, 256
        %s678 = scalar_lea.vmem [#allocation17], %s677
        // Predicated region
        $region105: #{tpu_custom_call.1} parent=67 // pred_check
          %p679 = pneg %p326
        $region106: #{tpu_custom_call.1} parent=67 // pred_check_branch
          %681 = sbr.rel (%p679) target = $region108
        $region107: #{tpu_custom_call.1} parent=67 // pred_region
          %683 = dma.done %s675, 4096
        $region108: #{tpu_custom_call.1} parent=67 // pred_fallthru
          _
        %p684 = pneg %p71
        %p685 = pneg %p68
        %p686 = pneg %p97
        %p687 = pneg %p94
        %p688 = pneg %p118
        %p689 = pneg %p115
        %s690 = sand.u32 %s38, 1
        %s691 = scalar_lea.sflag [#allocation9], %s690
        %s692 = sand.u32 %s131, 1
        %s693 = scalar_lea.vmem [#allocation8], %s692
        %p694 = pneg %p144
        %p695 = pneg %p141
        %s696 = sand.u32 %s38, 1
        %s697 = scalar_lea.sflag [#allocation9], %s696
        %s698 = sand.u32 %s157, 1
        %s699 = smul.addr %s698, 192
        %s700 = scalar_lea.vmem [#allocation10], %s699
        %p701 = pneg %p170
        %p702 = pneg %p167
        %s703 = sand.u32 %s38, 1
        %s704 = scalar_lea.sflag [#allocation12], %s703
        %s705 = sand.u32 %s183, 1
        %s706 = smul.addr %s705, 64
        %s707 = scalar_lea.vmem [#allocation11], %s706
        %p708 = pneg %p196
        %p709 = pneg %p193
        %s710 = sand.u32 %s38, 1
        %s711 = scalar_lea.sflag [#allocation12], %s710
        %s712 = sand.u32 %s209, 1
        %s713 = scalar_lea.vmem [#allocation13], %s712
        %p714 = pneg %p222
        %p715 = pneg %p219
        %s716 = sand.u32 %s38, 1
        %s717 = scalar_lea.sflag [#allocation15], %s716
        %s718 = sand.u32 %s235, 1
        %s719 = scalar_lea.vmem [#allocation14], %s718
        %p720 = pneg %p248
        %p721 = pneg %p245
        %s722 = sand.u32 %s38, 1
        %s723 = scalar_lea.sflag [#allocation15], %s722
        %s724 = sand.u32 %s261, 1
        %s725 = smul.addr %s724, 256
        %s726 = scalar_lea.vmem [#allocation16], %s725
        %p727 = pneg %p274
        %p728 = pneg %p271
        %p729 = scmp.lt.s32.totalorder %s43, 1
        %s730 = scalar_select %p729, %s43, 1
        %s731 = smul.addr %s730, 4
        %s732 = scalar_lea.vmem %s9, %s731
        %p733 = pneg %p300
        %p734 = pneg %p297
        %s735 = sand.u32 %s313, 1
        %s736 = scalar_lea.sflag [#allocation18], %s735
        %s737 = sand.u32 %s313, 1
        %s738 = smul.addr %s737, 256
        %s739 = scalar_lea.vmem [#allocation17], %s738
        %p740 = pneg %p326
        %p741 = pneg %p323
        %p742 = scmp.lt.s32.totalorder %s43, 1
        %s743 = scalar_select %p742, %s43, 1
        %s744 = scalar_lea.vmem %s11, %s743
        %p745 = pneg %p352
        %p746 = pneg %p349
        %p747 = pneg %p378
        %p748 = pneg %p375
        %s749 = smul.u32 2, %s42
        %s750 = smul.u32 2, %s42
        %p751 = scmp.lt.s32.totalorder %s43, 1
        %s752 = scalar_select %p751, %s43, 1
        %s753 = smul.addr %s752, 4
        %s754 = scalar_lea.vmem %s9, %s753
        %p755 = scmp.lt.s32.totalorder %s43, 1
        %s756 = scalar_select %p755, %s43, 1
        %s757 = scalar_lea.vmem %s11, %s756
        %s758 = smul.u32 2, %s42
        %p760 = scmp.eq.s32.totalorder %s43, 0
        // Predicated region
        $region109: #{tpu_custom_call.1} parent=67 // pred_check
          %p761 = pneg %p760
        $region110: #{tpu_custom_call.1} parent=67 // pred_check_branch
          %763 = sbr.rel (%p761) target = $region112
        $region111: #{tpu_custom_call.1} parent=67 // pred_region
          %v764 = vld [vmem:[#allocation2] sm:$0xff]
          %v765 = vld [vmem:[#allocation2 + $0x8] sm:$0xff]
          %v766 = vld [vmem:[#allocation2 + $0x10] sm:$0xff]
          %v767 = vld [vmem:[#allocation2 + $0x18] sm:$0xff]
          %768 = vst [vmem:[#allocation19] sm:$0xff] %v764
          %769 = vst [vmem:[#allocation19 + $0x8] sm:$0xff] %v765
          %770 = vst [vmem:[#allocation19 + $0x10] sm:$0xff] %v766
          %771 = vst [vmem:[#allocation19 + $0x18] sm:$0xff] %v767
        $region112: #{tpu_custom_call.1} parent=67 // pred_fallthru
          _
        %v772 = vld [vmem:[#allocation19] sm:$0xff]
        %v773 = vld [vmem:[#allocation19 + $0x8] sm:$0xff]
        %v774 = vld [vmem:[#allocation19 + $0x10] sm:$0xff]
        %v775 = vld [vmem:[#allocation19 + $0x18] sm:$0xff]
        %v776 = vld [vmem:[#allocation5] sm:$0x1]
        %v777 = vld [vmem:[#allocation5 + $0x1] sm:$0x1]
        %v778 = vld [vmem:[%s620] sm:$0x1]
        %v779 = vmul.f32 %v772, %v772
        %v780 = vmul.f32 %v773, %v773
        %v781 = vmul.f32 %v774, %v774
        %v782 = vmul.f32 %v775, %v775
        %783 = vadd.xlane.f32.xlu0 %v779
        %v784 = vpop.xlane.xlu0 %783
        %785 = vadd.xlane.f32.xlu0 %v780
        %v786 = vpop.xlane.xlu0 %785
        %787 = vadd.xlane.f32.xlu0 %v781
        %v788 = vpop.xlane.xlu0 %787
        %789 = vadd.xlane.f32.xlu0 %v782
        %v790 = vpop.xlane.xlu0 %789
        %v791 = vrsqrt.pop %v784
        %v792 = vmul.f32 %v791, %v784
        %v793 = vmul.f32 %v792, %v791
        %v794 = vmul.f32 0.5, %v793
        %v795 = vsub.f32 1.5, %v794
        %v796 = vmul.f32 %v791, %v795
        %v797 = vmul.f32 %v784, %v796
        %vm798 = vcmp.eq.f32.partialorder %v784, inf
        %v799 = vsel %vm798, %v784, %v797
        %vm800 = vcmp.eq.f32.partialorder %v784, 0.0
        %v801 = vand.u32 %v784, 2147483648
        %v802 = vsel %vm800, %v801, %v799
        %v803 = vrsqrt.pop %v786
        %v804 = vmul.f32 %v803, %v786
        %v805 = vmul.f32 %v804, %v803
        %v806 = vmul.f32 0.5, %v805
        %v807 = vsub.f32 1.5, %v806
        %v808 = vmul.f32 %v803, %v807
        %v809 = vmul.f32 %v786, %v808
        %vm810 = vcmp.eq.f32.partialorder %v786, inf
        %v811 = vsel %vm810, %v786, %v809
        %vm812 = vcmp.eq.f32.partialorder %v786, 0.0
        %v813 = vand.u32 %v786, 2147483648
        %v814 = vsel %vm812, %v813, %v811
        %v815 = vrsqrt.pop %v788
        %v816 = vmul.f32 %v815, %v788
        %v817 = vmul.f32 %v816, %v815
        %v818 = vmul.f32 0.5, %v817
        %v819 = vsub.f32 1.5, %v818
        %v820 = vmul.f32 %v815, %v819
        %v821 = vmul.f32 %v788, %v820
        %vm822 = vcmp.eq.f32.partialorder %v788, inf
        %v823 = vsel %vm822, %v788, %v821
        %vm824 = vcmp.eq.f32.partialorder %v788, 0.0
        %v825 = vand.u32 %v788, 2147483648
        %v826 = vsel %vm824, %v825, %v823
        %v827 = vrsqrt.pop %v790
        %v828 = vmul.f32 %v827, %v790
        %v829 = vmul.f32 %v828, %v827
        %v830 = vmul.f32 0.5, %v829
        %v831 = vsub.f32 1.5, %v830
        %v832 = vmul.f32 %v827, %v831
        %v833 = vmul.f32 %v790, %v832
        %vm834 = vcmp.eq.f32.partialorder %v790, inf
        %v835 = vsel %vm834, %v790, %v833
        %vm836 = vcmp.eq.f32.partialorder %v790, 0.0
        %v837 = vand.u32 %v790, 2147483648
        %v838 = vsel %vm836, %v837, %v835
        %v839 = vmul.f32 %v802, 0.088388346
        %v840 = vmul.f32 %v814, 0.088388346
        %v841 = vmul.f32 %v826, 0.088388346
        %v842 = vmul.f32 %v838, 0.088388346
        %v843 = vadd.f32 %v839, 1e-08
        %v844 = vadd.f32 %v840, 1e-08
        %v845 = vadd.f32 %v841, 1e-08
        %v846 = vadd.f32 %v842, 1e-08
        %v847 = vrcp.pop %v843
        %v848 = vmul.f32 %v843, %v847
        %v849 = vsub.f32 1.0, %v848
        %v850 = vmul.f32 %v847, %v849
        %v851 = vadd.f32 %v847, %v850
        %vm852 = vweird.f32 %v843
        %vm853 = vweird.f32 %v847
        %vm854 = vmor %vm852, %vm853
        %v855 = vsel %vm854, %v847, %v851
        %v856 = vand.u32 2147483647, %v843
        %vm857 = vcmp.eq.f32.partialorder %v856, 8.507059e+37
        %v858 = vand.u32 %v843, 2147483648
        %v859 = vor.u32 1.1754944e-38, %v858
        %v860 = vsel %vm857, %v859, %v855
        %v861 = vmul.f32 %v772, %v860
        %v862 = vrcp.pop %v844
        %v863 = vmul.f32 %v844, %v862
        %v864 = vsub.f32 1.0, %v863
        %v865 = vmul.f32 %v862, %v864
        %v866 = vadd.f32 %v862, %v865
        %vm867 = vweird.f32 %v844
        %vm868 = vweird.f32 %v862
        %vm869 = vmor %vm867, %vm868
        %v870 = vsel %vm869, %v862, %v866
        %v871 = vand.u32 2147483647, %v844
        %vm872 = vcmp.eq.f32.partialorder %v871, 8.507059e+37
        %v873 = vand.u32 %v844, 2147483648
        %v874 = vor.u32 1.1754944e-38, %v873
        %v875 = vsel %vm872, %v874, %v870
        %v876 = vmul.f32 %v773, %v875
        %v877 = vrcp.pop %v845
        %v878 = vmul.f32 %v845, %v877
        %v879 = vsub.f32 1.0, %v878
        %v880 = vmul.f32 %v877, %v879
        %v881 = vadd.f32 %v877, %v880
        %vm882 = vweird.f32 %v845
        %vm883 = vweird.f32 %v877
        %vm884 = vmor %vm882, %vm883
        %v885 = vsel %vm884, %v877, %v881
        %v886 = vand.u32 2147483647, %v845
        %vm887 = vcmp.eq.f32.partialorder %v886, 8.507059e+37
        %v888 = vand.u32 %v845, 2147483648
        %v889 = vor.u32 1.1754944e-38, %v888
        %v890 = vsel %vm887, %v889, %v885
        %v891 = vmul.f32 %v774, %v890
        %v892 = vrcp.pop %v846
        %v893 = vmul.f32 %v846, %v892
        %v894 = vsub.f32 1.0, %v893
        %v895 = vmul.f32 %v892, %v894
        %v896 = vadd.f32 %v892, %v895
        %vm897 = vweird.f32 %v846
        %vm898 = vweird.f32 %v892
        %vm899 = vmor %vm897, %vm898
        %v900 = vsel %vm899, %v892, %v896
        %v901 = vand.u32 2147483647, %v846
        %vm902 = vcmp.eq.f32.partialorder %v901, 8.507059e+37
        %v903 = vand.u32 %v846, 2147483648
        %v904 = vor.u32 1.1754944e-38, %v903
        %v905 = vsel %vm902, %v904, %v900
        %v906 = vmul.f32 %v775, %v905
        %v908 = vperm.slane %v778, 0
        %v910 = vmul.f32 %v908, %v861
        %v911 = vmul.f32 %v908, %v876
        %v912 = vmul.f32 %v908, %v891
        %v913 = vmul.f32 %v908, %v906
        %v914 = vpack.c.bf16 %v911, %v910
        %v915 = vpack.c.bf16 %v913, %v912
        %v916 = vld [vmem:[%s630] sm:$0xff]
        %v917 = vld [vmem:[%s630 + $0x8] sm:$0xf]
        %v918 = vld [vmem:[%s630 + $0xc] sm:$0xff]
        %v919 = vld [vmem:[%s630 + $0x14] sm:$0xf]
        %v920 = vld [vmem:[%s630 + $0x18] sm:$0xff]
        %v921 = vld [vmem:[%s630 + $0x20] sm:$0xf]
        %v922 = vld [vmem:[%s630 + $0x24] sm:$0xff]
        %v923 = vld [vmem:[%s630 + $0x2c] sm:$0xf]
        %v924 = vld [vmem:[%s630 + $0x30] sm:$0xff]
        %v925 = vld [vmem:[%s630 + $0x38] sm:$0xf]
        %v926 = vld [vmem:[%s630 + $0x3c] sm:$0xff]
        %v927 = vld [vmem:[%s630 + $0x44] sm:$0xf]
        %v928 = vld [vmem:[%s630 + $0x48] sm:$0xff]
        %v929 = vld [vmem:[%s630 + $0x50] sm:$0xf]
        %v930 = vld [vmem:[%s630 + $0x54] sm:$0xff]
        %v931 = vld [vmem:[%s630 + $0x5c] sm:$0xf]
        %v932 = vld [vmem:[%s630 + $0x60] sm:$0xff]
        %v933 = vld [vmem:[%s630 + $0x68] sm:$0xf]
        %v934 = vld [vmem:[%s630 + $0x6c] sm:$0xff]
        %v935 = vld [vmem:[%s630 + $0x74] sm:$0xf]
        %v936 = vld [vmem:[%s630 + $0x78] sm:$0xff]
        %v937 = vld [vmem:[%s630 + $0x80] sm:$0xf]
        %v938 = vld [vmem:[%s630 + $0x84] sm:$0xff]
        %v939 = vld [vmem:[%s630 + $0x8c] sm:$0xf]
        %v940 = vld [vmem:[%s630 + $0x90] sm:$0xff]
        %v941 = vld [vmem:[%s630 + $0x98] sm:$0xf]
        %v942 = vld [vmem:[%s630 + $0x9c] sm:$0xff]
        %v943 = vld [vmem:[%s630 + $0xa4] sm:$0xf]
        %v944 = vld [vmem:[%s630 + $0xa8] sm:$0xff]
        %v945 = vld [vmem:[%s630 + $0xb0] sm:$0xf]
        %v946 = vld [vmem:[%s630 + $0xb4] sm:$0xff]
        %v947 = vld [vmem:[%s630 + $0xbc] sm:$0xf]
        %v980 = vunpack.c.l.b16 %v916
        %v981 = vunpack.c.h.b16 %v916
        %v982 = vunpack.c.l.b16 %v917
        %v983 = vunpack.c.l.b16 %v918
        %v984 = vunpack.c.h.b16 %v918
        %v985 = vunpack.c.l.b16 %v919
        %v986 = vunpack.c.l.b16 %v920
        %v987 = vunpack.c.h.b16 %v920
        %v988 = vunpack.c.l.b16 %v921
        %v989 = vunpack.c.l.b16 %v922
        %v990 = vunpack.c.h.b16 %v922
        %v991 = vunpack.c.l.b16 %v923
        %v992 = vunpack.c.l.b16 %v924
        %v993 = vunpack.c.h.b16 %v924
        %v994 = vunpack.c.l.b16 %v925
        %v995 = vunpack.c.l.b16 %v926
        %v996 = vunpack.c.h.b16 %v926
        %v997 = vunpack.c.l.b16 %v927
        %v998 = vunpack.c.l.b16 %v928
        %v999 = vunpack.c.h.b16 %v928
        %v1000 = vunpack.c.l.b16 %v929
        %v1001 = vunpack.c.l.b16 %v930
        %v1002 = vunpack.c.h.b16 %v930
        %v1003 = vunpack.c.l.b16 %v931
        %v1004 = vunpack.c.l.b16 %v932
        %v1005 = vunpack.c.h.b16 %v932
        %v1006 = vunpack.c.l.b16 %v933
        %v1007 = vunpack.c.l.b16 %v934
        %v1008 = vunpack.c.h.b16 %v934
        %v1009 = vunpack.c.l.b16 %v935
        %v1010 = vunpack.c.l.b16 %v936
        %v1011 = vunpack.c.h.b16 %v936
        %v1012 = vunpack.c.l.b16 %v937
        %v1013 = vunpack.c.l.b16 %v938
        %v1014 = vunpack.c.h.b16 %v938
        %v1015 = vunpack.c.l.b16 %v939
        %v1016 = vunpack.c.l.b16 %v940
        %v1017 = vunpack.c.h.b16 %v940
        %v1018 = vunpack.c.l.b16 %v941
        %v1019 = vunpack.c.l.b16 %v942
        %v1020 = vunpack.c.h.b16 %v942
        %v1021 = vunpack.c.l.b16 %v943
        %v1022 = vunpack.c.l.b16 %v944
        %v1023 = vunpack.c.h.b16 %v944
        %v1024 = vunpack.c.l.b16 %v945
        %v1025 = vunpack.c.l.b16 %v946
        %v1026 = vunpack.c.h.b16 %v946
        %v1027 = vunpack.c.l.b16 %v947
        %v1028 = vpack.c.b16 %v983, %v980
        %v1029 = vpack.c.b16 %v984, %v981
        %v1030 = vpack.c.b16 %v985, %v982
        %v1031 = vpack.c.b16 %v989, %v986
        %v1032 = vpack.c.b16 %v990, %v987
        %v1033 = vpack.c.b16 %v991, %v988
        %v1034 = vpack.c.b16 %v995, %v992
        %v1035 = vpack.c.b16 %v996, %v993
        %v1036 = vpack.c.b16 %v997, %v994
        %v1037 = vpack.c.b16 %v1001, %v998
        %v1038 = vpack.c.b16 %v1002, %v999
        %v1039 = vpack.c.b16 %v1003, %v1000
        %v1040 = vpack.c.b16 %v1007, %v1004
        %v1041 = vpack.c.b16 %v1008, %v1005
        %v1042 = vpack.c.b16 %v1009, %v1006
        %v1043 = vpack.c.b16 %v1013, %v1010
        %v1044 = vpack.c.b16 %v1014, %v1011
        %v1045 = vpack.c.b16 %v1015, %v1012
        %v1046 = vpack.c.b16 %v1019, %v1016
        %v1047 = vpack.c.b16 %v1020, %v1017
        %v1048 = vpack.c.b16 %v1021, %v1018
        %v1049 = vpack.c.b16 %v1025, %v1022
        %v1050 = vpack.c.b16 %v1026, %v1023
        %v1051 = vpack.c.b16 %v1027, %v1024
        %1076 = vmatpush.bf16.msra.mxu0 %v1049
        %1077 = vmatpush.bf16.msra.mxu0 %v1046
        %1078 = vmatpush.bf16.msra.mxu0 %v1043
        %1079 = vmatpush.bf16.msra.mxu0 %v1040
        %1080 = vmatpush.bf16.msra.mxu0 %v1037
        %1081 = vmatpush.bf16.msra.mxu0 %v1034
        %1082 = vmatpush.bf16.msra.mxu0 %v1031
        %1083 = vmatpush.bf16.msra.mxu0 %v1028
        %1084 = vmatmul.bf16.gmra.mxu0 %v914
        %v1085 = vpop.f32.mrf.mxu0
        %v1086 = vadd.f32 0.0, %v1085
        %v1087 = vpop.f32.mrf.mxu0
        %v1088 = vadd.f32 0.0, %v1087
        %1089 = vmatmul.bf16.gmra.mxu0 %v915
        %v1090 = vpop.f32.mrf.mxu0
        %v1091 = vadd.f32 0.0, %v1090
        %v1092 = vpop.f32.mrf.mxu0
        %v1093 = vadd.f32 0.0, %v1092
        %1094 = vdwg.mxu0
        %1095 = vmatpush.bf16.msra.mxu0 %v1050
        %1096 = vmatpush.bf16.msra.mxu0 %v1047
        %1097 = vmatpush.bf16.msra.mxu0 %v1044
        %1098 = vmatpush.bf16.msra.mxu0 %v1041
        %1099 = vmatpush.bf16.msra.mxu0 %v1038
        %1100 = vmatpush.bf16.msra.mxu0 %v1035
        %1101 = vmatpush.bf16.msra.mxu0 %v1032
        %1102 = vmatpush.bf16.msra.mxu0 %v1029
        %1103 = vmatmul.bf16.gmra.mxu0 %v914
        %v1104 = vpop.f32.mrf.mxu0
        %v1105 = vadd.f32 0.0, %v1104
        %v1106 = vpop.f32.mrf.mxu0
        %v1107 = vadd.f32 0.0, %v1106
        %1108 = vmatmul.bf16.gmra.mxu0 %v915
        %v1109 = vpop.f32.mrf.mxu0
        %v1110 = vadd.f32 0.0, %v1109
        %v1111 = vpop.f32.mrf.mxu0
        %v1112 = vadd.f32 0.0, %v1111
        %1113 = vdwg.mxu0
        %1114 = vmatpush.bf16.msra.mxu0 %v1051
        %1115 = vmatpush.bf16.msra.mxu0 %v1048
        %1116 = vmatpush.bf16.msra.mxu0 %v1045
        %1117 = vmatpush.bf16.msra.mxu0 %v1042
        %1118 = vmatpush.bf16.msra.mxu0 %v1039
        %1119 = vmatpush.bf16.msra.mxu0 %v1036
        %1120 = vmatpush.bf16.msra.mxu0 %v1033
        %1121 = vmatpush.bf16.msra.mxu0 %v1030
        %1122 = vmatmul.bf16.gmra.mxu0 %v914
        %v1123 = vpop.f32.mrf.mxu0
        %v1124 = vadd.f32 0.0, %v1123
        %v1125 = vpop.f32.mrf.mxu0
        %v1126 = vadd.f32 0.0, %v1125
        %1127 = vmatmul.bf16.gmra.mxu0 %v915
        %v1128 = vpop.f32.mrf.mxu0
        %v1129 = vadd.f32 0.0, %v1128
        %v1130 = vpop.f32.mrf.mxu0
        %v1131 = vadd.f32 0.0, %v1130
        %1132 = vdwg.mxu0
        %1137 = vrot.lane.b32.xlu0 %v1086, 96
        %v1138 = vpop.permute.xlu0 %1137
        %1139 = vrot.lane.b32.xlu0 %v1088, 96
        %v1140 = vpop.permute.xlu0 %1139
        %1141 = vrot.lane.b32.xlu0 %v1091, 96
        %v1142 = vpop.permute.xlu0 %1141
        %1143 = vrot.lane.b32.xlu0 %v1093, 96
        %v1144 = vpop.permute.xlu0 %1143
        %1149 = vrot.lane.b32.xlu0 %v1086, 64
        %v1150 = vpop.permute.xlu0 %1149
        %1151 = vrot.lane.b32.xlu0 %v1088, 64
        %v1152 = vpop.permute.xlu0 %1151
        %1153 = vrot.lane.b32.xlu0 %v1091, 64
        %v1154 = vpop.permute.xlu0 %1153
        %1155 = vrot.lane.b32.xlu0 %v1093, 64
        %v1156 = vpop.permute.xlu0 %1155
        %1161 = vrot.lane.b32.xlu0 %v1086, 32
        %v1162 = vpop.permute.xlu0 %1161
        %1163 = vrot.lane.b32.xlu0 %v1088, 32
        %v1164 = vpop.permute.xlu0 %1163
        %1165 = vrot.lane.b32.xlu0 %v1091, 32
        %v1166 = vpop.permute.xlu0 %1165
        %1167 = vrot.lane.b32.xlu0 %v1093, 32
        %v1168 = vpop.permute.xlu0 %1167
        %1177 = vrot.lane.b32.xlu0 %v1105, 96
        %v1178 = vpop.permute.xlu0 %1177
        %1179 = vrot.lane.b32.xlu0 %v1107, 96
        %v1180 = vpop.permute.xlu0 %1179
        %1181 = vrot.lane.b32.xlu0 %v1110, 96
        %v1182 = vpop.permute.xlu0 %1181
        %1183 = vrot.lane.b32.xlu0 %v1112, 96
        %v1184 = vpop.permute.xlu0 %1183
        %1189 = vrot.lane.b32.xlu0 %v1105, 64
        %v1190 = vpop.permute.xlu0 %1189
        %1191 = vrot.lane.b32.xlu0 %v1107, 64
        %v1192 = vpop.permute.xlu0 %1191
        %1193 = vrot.lane.b32.xlu0 %v1110, 64
        %v1194 = vpop.permute.xlu0 %1193
        %1195 = vrot.lane.b32.xlu0 %v1112, 64
        %v1196 = vpop.permute.xlu0 %1195
        %1201 = vrot.lane.b32.xlu0 %v1105, 32
        %v1202 = vpop.permute.xlu0 %1201
        %1203 = vrot.lane.b32.xlu0 %v1107, 32
        %v1204 = vpop.permute.xlu0 %1203
        %1205 = vrot.lane.b32.xlu0 %v1110, 32
        %v1206 = vpop.permute.xlu0 %1205
        %1207 = vrot.lane.b32.xlu0 %v1112, 32
        %v1208 = vpop.permute.xlu0 %1207
        %1217 = vrot.lane.b32.xlu0 %v1124, 96
        %v1218 = vpop.permute.xlu0 %1217
        %1219 = vrot.lane.b32.xlu0 %v1126, 96
        %v1220 = vpop.permute.xlu0 %1219
        %1221 = vrot.lane.b32.xlu0 %v1129, 96
        %v1222 = vpop.permute.xlu0 %1221
        %1223 = vrot.lane.b32.xlu0 %v1131, 96
        %v1224 = vpop.permute.xlu0 %1223
        %1229 = vrot.lane.b32.xlu0 %v1124, 64
        %v1230 = vpop.permute.xlu0 %1229
        %1231 = vrot.lane.b32.xlu0 %v1126, 64
        %v1232 = vpop.permute.xlu0 %1231
        %1233 = vrot.lane.b32.xlu0 %v1129, 64
        %v1234 = vpop.permute.xlu0 %1233
        %1235 = vrot.lane.b32.xlu0 %v1131, 64
        %v1236 = vpop.permute.xlu0 %1235
        %1241 = vrot.lane.b32.xlu0 %v1124, 32
        %v1242 = vpop.permute.xlu0 %1241
        %1243 = vrot.lane.b32.xlu0 %v1126, 32
        %v1244 = vpop.permute.xlu0 %1243
        %1245 = vrot.lane.b32.xlu0 %v1129, 32
        %v1246 = vpop.permute.xlu0 %1245
        %1247 = vrot.lane.b32.xlu0 %v1131, 32
        %v1248 = vpop.permute.xlu0 %1247
        %v1253 = vrot.slane %v1150, 4
        %vm1254 = vcmask 1047556
        %v1255 = vsel %vm1254, %v1253, %v1086
        %v1256 = vrot.slane %v1086, 4
        %v1257 = vsel %vm1254, %v1150, %v1256
        %v1259 = vunpack.c.l.s4 1983009808
        %v1260 = vunpack.c.0.s8 %v1259
        %v1261 = vperm.slane %v1255, %v1260
        %v1263 = vunpack.c.l.s4 1983009808
        %v1264 = vunpack.c.0.s8 %v1263
        %v1265 = vperm.slane %v1257, %v1264
        %v1266 = vrot.slane %v1162, 4
        %v1267 = vsel %vm1254, %v1266, %v1138
        %v1268 = vrot.slane %v1138, 4
        %v1269 = vsel %vm1254, %v1162, %v1268
        %v1271 = vunpack.c.l.s4 1983009808
        %v1272 = vunpack.c.0.s8 %v1271
        %v1273 = vperm.slane %v1267, %v1272
        %v1275 = vunpack.c.l.s4 1983009808
        %v1276 = vunpack.c.0.s8 %v1275
        %v1277 = vperm.slane %v1269, %v1276
        %v1278 = vrot.slane %v1190, 4
        %v1279 = vsel %vm1254, %v1278, %v1105
        %v1280 = vrot.slane %v1105, 4
        %v1281 = vsel %vm1254, %v1190, %v1280
        %v1283 = vunpack.c.l.s4 1983009808
        %v1284 = vunpack.c.0.s8 %v1283
        %v1285 = vperm.slane %v1279, %v1284
        %v1287 = vunpack.c.l.s4 1983009808
        %v1288 = vunpack.c.0.s8 %v1287
        %v1289 = vperm.slane %v1281, %v1288
        %v1290 = vrot.slane %v1202, 4
        %v1291 = vsel %vm1254, %v1290, %v1178
        %v1292 = vrot.slane %v1178, 4
        %v1293 = vsel %vm1254, %v1202, %v1292
        %v1295 = vunpack.c.l.s4 1983009808
        %v1296 = vunpack.c.0.s8 %v1295
        %v1297 = vperm.slane %v1291, %v1296
        %v1299 = vunpack.c.l.s4 1983009808
        %v1300 = vunpack.c.0.s8 %v1299
        %v1301 = vperm.slane %v1293, %v1300
        %v1302 = vrot.slane %v1273, 4
        %v1303 = vsel %vm1254, %v1302, %v1261
        %v1304 = vrot.slane %v1261, 4
        %v1305 = vsel %vm1254, %v1273, %v1304
        %v1307 = vunpack.c.l.s4 1934713408
        %v1308 = vunpack.c.0.s8 %v1307
        %v1309 = vperm.slane %v1303, %v1308
        %v1311 = vunpack.c.l.s4 1934713408
        %v1312 = vunpack.c.0.s8 %v1311
        %v1313 = vperm.slane %v1305, %v1312
        %v1314 = vrot.slane %v1277, 4
        %v1315 = vsel %vm1254, %v1314, %v1265
        %v1316 = vrot.slane %v1265, 4
        %v1317 = vsel %vm1254, %v1277, %v1316
        %v1319 = vunpack.c.l.s4 1934713408
        %v1320 = vunpack.c.0.s8 %v1319
        %v1321 = vperm.slane %v1315, %v1320
        %v1323 = vunpack.c.l.s4 1934713408
        %v1324 = vunpack.c.0.s8 %v1323
        %v1325 = vperm.slane %v1317, %v1324
        %v1326 = vrot.slane %v1297, 4
        %v1327 = vsel %vm1254, %v1326, %v1285
        %v1328 = vrot.slane %v1285, 4
        %v1329 = vsel %vm1254, %v1297, %v1328
        %v1331 = vunpack.c.l.s4 1934713408
        %v1332 = vunpack.c.0.s8 %v1331
        %v1333 = vperm.slane %v1327, %v1332
        %v1335 = vunpack.c.l.s4 1934713408
        %v1336 = vunpack.c.0.s8 %v1335
        %v1337 = vperm.slane %v1329, %v1336
        %v1338 = vrot.slane %v1301, 4
        %v1339 = vsel %vm1254, %v1338, %v1289
        %v1340 = vrot.slane %v1289, 4
        %v1341 = vsel %vm1254, %v1301, %v1340
        %v1343 = vunpack.c.l.s4 1934713408
        %v1344 = vunpack.c.0.s8 %v1343
        %v1345 = vperm.slane %v1339, %v1344
        %v1347 = vunpack.c.l.s4 1934713408
        %v1348 = vunpack.c.0.s8 %v1347
        %v1349 = vperm.slane %v1341, %v1348
        %v1350 = vrot.slane %v1333, 4
        %v1351 = vsel %vm1254, %v1350, %v1309
        %v1352 = vrot.slane %v1309, 4
        %v1353 = vsel %vm1254, %v1333, %v1352
        %v1354 = vrot.slane %v1337, 4
        %v1355 = vsel %vm1254, %v1354, %v1313
        %v1356 = vrot.slane %v1313, 4
        %v1357 = vsel %vm1254, %v1337, %v1356
        %v1358 = vrot.slane %v1345, 4
        %v1359 = vsel %vm1254, %v1358, %v1321
        %v1360 = vrot.slane %v1321, 4
        %v1361 = vsel %vm1254, %v1345, %v1360
        %v1362 = vrot.slane %v1349, 4
        %v1363 = vsel %vm1254, %v1362, %v1325
        %v1364 = vrot.slane %v1325, 4
        %v1365 = vsel %vm1254, %v1349, %v1364
        %v1366 = vrot.slane %v1230, 4
        %v1367 = vsel %vm1254, %v1366, %v1124
        %v1368 = vrot.slane %v1124, 4
        %v1369 = vsel %vm1254, %v1230, %v1368
        %v1371 = vunpack.c.l.s4 1983009808
        %v1372 = vunpack.c.0.s8 %v1371
        %v1373 = vperm.slane %v1367, %v1372
        %v1375 = vunpack.c.l.s4 1983009808
        %v1376 = vunpack.c.0.s8 %v1375
        %v1377 = vperm.slane %v1369, %v1376
        %v1378 = vrot.slane %v1242, 4
        %v1379 = vsel %vm1254, %v1378, %v1218
        %v1380 = vrot.slane %v1218, 4
        %v1381 = vsel %vm1254, %v1242, %v1380
        %v1383 = vunpack.c.l.s4 1983009808
        %v1384 = vunpack.c.0.s8 %v1383
        %v1385 = vperm.slane %v1379, %v1384
        %v1387 = vunpack.c.l.s4 1983009808
        %v1388 = vunpack.c.0.s8 %v1387
        %v1389 = vperm.slane %v1381, %v1388
        %v1390 = vrot.slane %v1385, 4
        %v1391 = vsel %vm1254, %v1390, %v1373
        %v1392 = vrot.slane %v1373, 4
        %v1393 = vsel %vm1254, %v1385, %v1392
        %v1395 = vunpack.c.l.s4 1934713408
        %v1396 = vunpack.c.0.s8 %v1395
        %v1397 = vperm.slane %v1391, %v1396
        %v1399 = vunpack.c.l.s4 1934713408
        %v1400 = vunpack.c.0.s8 %v1399
        %v1401 = vperm.slane %v1393, %v1400
        %v1402 = vrot.slane %v1389, 4
        %v1403 = vsel %vm1254, %v1402, %v1377
        %v1404 = vrot.slane %v1377, 4
        %v1405 = vsel %vm1254, %v1389, %v1404
        %v1407 = vunpack.c.l.s4 1934713408
        %v1408 = vunpack.c.0.s8 %v1407
        %v1409 = vperm.slane %v1403, %v1408
        %v1411 = vunpack.c.l.s4 1934713408
        %v1412 = vunpack.c.0.s8 %v1411
        %v1413 = vperm.slane %v1405, %v1412
        %v1414 = vrot.slane %v1397, 4
        %v1415 = vsel %vm1254, 0.0, %v1414
        %v1416 = vrot.slane %v1401, 4
        %v1417 = vsel %vm1254, 0.0, %v1416
        %v1418 = vrot.slane %v1409, 4
        %v1419 = vsel %vm1254, 0.0, %v1418
        %v1420 = vrot.slane %v1413, 4
        %v1421 = vsel %vm1254, 0.0, %v1420
        %v1422 = vrot.slane %v1152, 4
        %v1423 = vsel %vm1254, %v1422, %v1088
        %v1424 = vrot.slane %v1088, 4
        %v1425 = vsel %vm1254, %v1152, %v1424
        %v1427 = vunpack.c.l.s4 1983009808
        %v1428 = vunpack.c.0.s8 %v1427
        %v1429 = vperm.slane %v1423, %v1428
        %v1431 = vunpack.c.l.s4 1983009808
        %v1432 = vunpack.c.0.s8 %v1431
        %v1433 = vperm.slane %v1425, %v1432
        %v1434 = vrot.slane %v1164, 4
        %v1435 = vsel %vm1254, %v1434, %v1140
        %v1436 = vrot.slane %v1140, 4
        %v1437 = vsel %vm1254, %v1164, %v1436
        %v1439 = vunpack.c.l.s4 1983009808
        %v1440 = vunpack.c.0.s8 %v1439
        %v1441 = vperm.slane %v1435, %v1440
        %v1443 = vunpack.c.l.s4 1983009808
        %v1444 = vunpack.c.0.s8 %v1443
        %v1445 = vperm.slane %v1437, %v1444
        %v1446 = vrot.slane %v1192, 4
        %v1447 = vsel %vm1254, %v1446, %v1107
        %v1448 = vrot.slane %v1107, 4
        %v1449 = vsel %vm1254, %v1192, %v1448
        %v1451 = vunpack.c.l.s4 1983009808
        %v1452 = vunpack.c.0.s8 %v1451
        %v1453 = vperm.slane %v1447, %v1452
        %v1455 = vunpack.c.l.s4 1983009808
        %v1456 = vunpack.c.0.s8 %v1455
        %v1457 = vperm.slane %v1449, %v1456
        %v1458 = vrot.slane %v1204, 4
        %v1459 = vsel %vm1254, %v1458, %v1180
        %v1460 = vrot.slane %v1180, 4
        %v1461 = vsel %vm1254, %v1204, %v1460
        %v1463 = vunpack.c.l.s4 1983009808
        %v1464 = vunpack.c.0.s8 %v1463
        %v1465 = vperm.slane %v1459, %v1464
        %v1467 = vunpack.c.l.s4 1983009808
        %v1468 = vunpack.c.0.s8 %v1467
        %v1469 = vperm.slane %v1461, %v1468
        %v1470 = vrot.slane %v1441, 4
        %v1471 = vsel %vm1254, %v1470, %v1429
        %v1472 = vrot.slane %v1429, 4
        %v1473 = vsel %vm1254, %v1441, %v1472
        %v1475 = vunpack.c.l.s4 1934713408
        %v1476 = vunpack.c.0.s8 %v1475
        %v1477 = vperm.slane %v1471, %v1476
        %v1479 = vunpack.c.l.s4 1934713408
        %v1480 = vunpack.c.0.s8 %v1479
        %v1481 = vperm.slane %v1473, %v1480
        %v1482 = vrot.slane %v1445, 4
        %v1483 = vsel %vm1254, %v1482, %v1433
        %v1484 = vrot.slane %v1433, 4
        %v1485 = vsel %vm1254, %v1445, %v1484
        %v1487 = vunpack.c.l.s4 1934713408
        %v1488 = vunpack.c.0.s8 %v1487
        %v1489 = vperm.slane %v1483, %v1488
        %v1491 = vunpack.c.l.s4 1934713408
        %v1492 = vunpack.c.0.s8 %v1491
        %v1493 = vperm.slane %v1485, %v1492
        %v1494 = vrot.slane %v1465, 4
        %v1495 = vsel %vm1254, %v1494, %v1453
        %v1496 = vrot.slane %v1453, 4
        %v1497 = vsel %vm1254, %v1465, %v1496
        %v1499 = vunpack.c.l.s4 1934713408
        %v1500 = vunpack.c.0.s8 %v1499
        %v1501 = vperm.slane %v1495, %v1500
        %v1503 = vunpack.c.l.s4 1934713408
        %v1504 = vunpack.c.0.s8 %v1503
        %v1505 = vperm.slane %v1497, %v1504
        %v1506 = vrot.slane %v1469, 4
        %v1507 = vsel %vm1254, %v1506, %v1457
        %v1508 = vrot.slane %v1457, 4
        %v1509 = vsel %vm1254, %v1469, %v1508
        %v1511 = vunpack.c.l.s4 1934713408
        %v1512 = vunpack.c.0.s8 %v1511
        %v1513 = vperm.slane %v1507, %v1512
        %v1515 = vunpack.c.l.s4 1934713408
        %v1516 = vunpack.c.0.s8 %v1515
        %v1517 = vperm.slane %v1509, %v1516
        %v1518 = vrot.slane %v1501, 4
        %v1519 = vsel %vm1254, %v1518, %v1477
        %v1520 = vrot.slane %v1477, 4
        %v1521 = vsel %vm1254, %v1501, %v1520
        %v1522 = vrot.slane %v1505, 4
        %v1523 = vsel %vm1254, %v1522, %v1481
        %v1524 = vrot.slane %v1481, 4
        %v1525 = vsel %vm1254, %v1505, %v1524
        %v1526 = vrot.slane %v1513, 4
        %v1527 = vsel %vm1254, %v1526, %v1489
        %v1528 = vrot.slane %v1489, 4
        %v1529 = vsel %vm1254, %v1513, %v1528
        %v1530 = vrot.slane %v1517, 4
        %v1531 = vsel %vm1254, %v1530, %v1493
        %v1532 = vrot.slane %v1493, 4
        %v1533 = vsel %vm1254, %v1517, %v1532
        %v1534 = vrot.slane %v1232, 4
        %v1535 = vsel %vm1254, %v1534, %v1126
        %v1536 = vrot.slane %v1126, 4
        %v1537 = vsel %vm1254, %v1232, %v1536
        %v1539 = vunpack.c.l.s4 1983009808
        %v1540 = vunpack.c.0.s8 %v1539
        %v1541 = vperm.slane %v1535, %v1540
        %v1543 = vunpack.c.l.s4 1983009808
        %v1544 = vunpack.c.0.s8 %v1543
        %v1545 = vperm.slane %v1537, %v1544
        %v1546 = vrot.slane %v1244, 4
        %v1547 = vsel %vm1254, %v1546, %v1220
        %v1548 = vrot.slane %v1220, 4
        %v1549 = vsel %vm1254, %v1244, %v1548
        %v1551 = vunpack.c.l.s4 1983009808
        %v1552 = vunpack.c.0.s8 %v1551
        %v1553 = vperm.slane %v1547, %v1552
        %v1555 = vunpack.c.l.s4 1983009808
        %v1556 = vunpack.c.0.s8 %v1555
        %v1557 = vperm.slane %v1549, %v1556
        %v1558 = vrot.slane %v1553, 4
        %v1559 = vsel %vm1254, %v1558, %v1541
        %v1560 = vrot.slane %v1541, 4
        %v1561 = vsel %vm1254, %v1553, %v1560
        %v1563 = vunpack.c.l.s4 1934713408
        %v1564 = vunpack.c.0.s8 %v1563
        %v1565 = vperm.slane %v1559, %v1564
        %v1567 = vunpack.c.l.s4 1934713408
        %v1568 = vunpack.c.0.s8 %v1567
        %v1569 = vperm.slane %v1561, %v1568
        %v1570 = vrot.slane %v1557, 4
        %v1571 = vsel %vm1254, %v1570, %v1545
        %v1572 = vrot.slane %v1545, 4
        %v1573 = vsel %vm1254, %v1557, %v1572
        %v1575 = vunpack.c.l.s4 1934713408
        %v1576 = vunpack.c.0.s8 %v1575
        %v1577 = vperm.slane %v1571, %v1576
        %v1579 = vunpack.c.l.s4 1934713408
        %v1580 = vunpack.c.0.s8 %v1579
        %v1581 = vperm.slane %v1573, %v1580
        %v1582 = vrot.slane %v1565, 4
        %v1583 = vsel %vm1254, 0.0, %v1582
        %v1584 = vrot.slane %v1569, 4
        %v1585 = vsel %vm1254, 0.0, %v1584
        %v1586 = vrot.slane %v1577, 4
        %v1587 = vsel %vm1254, 0.0, %v1586
        %v1588 = vrot.slane %v1581, 4
        %v1589 = vsel %vm1254, 0.0, %v1588
        %v1590 = vrot.slane %v1154, 4
        %v1591 = vsel %vm1254, %v1590, %v1091
        %v1592 = vrot.slane %v1091, 4
        %v1593 = vsel %vm1254, %v1154, %v1592
        %v1595 = vunpack.c.l.s4 1983009808
        %v1596 = vunpack.c.0.s8 %v1595
        %v1597 = vperm.slane %v1591, %v1596
        %v1599 = vunpack.c.l.s4 1983009808
        %v1600 = vunpack.c.0.s8 %v1599
        %v1601 = vperm.slane %v1593, %v1600
        %v1602 = vrot.slane %v1166, 4
        %v1603 = vsel %vm1254, %v1602, %v1142
        %v1604 = vrot.slane %v1142, 4
        %v1605 = vsel %vm1254, %v1166, %v1604
        %v1607 = vunpack.c.l.s4 1983009808
        %v1608 = vunpack.c.0.s8 %v1607
        %v1609 = vperm.slane %v1603, %v1608
        %v1611 = vunpack.c.l.s4 1983009808
        %v1612 = vunpack.c.0.s8 %v1611
        %v1613 = vperm.slane %v1605, %v1612
        %v1614 = vrot.slane %v1194, 4
        %v1615 = vsel %vm1254, %v1614, %v1110
        %v1616 = vrot.slane %v1110, 4
        %v1617 = vsel %vm1254, %v1194, %v1616
        %v1619 = vunpack.c.l.s4 1983009808
        %v1620 = vunpack.c.0.s8 %v1619
        %v1621 = vperm.slane %v1615, %v1620
        %v1623 = vunpack.c.l.s4 1983009808
        %v1624 = vunpack.c.0.s8 %v1623
        %v1625 = vperm.slane %v1617, %v1624
        %v1626 = vrot.slane %v1206, 4
        %v1627 = vsel %vm1254, %v1626, %v1182
        %v1628 = vrot.slane %v1182, 4
        %v1629 = vsel %vm1254, %v1206, %v1628
        %v1631 = vunpack.c.l.s4 1983009808
        %v1632 = vunpack.c.0.s8 %v1631
        %v1633 = vperm.slane %v1627, %v1632
        %v1635 = vunpack.c.l.s4 1983009808
        %v1636 = vunpack.c.0.s8 %v1635
        %v1637 = vperm.slane %v1629, %v1636
        %v1638 = vrot.slane %v1609, 4
        %v1639 = vsel %vm1254, %v1638, %v1597
        %v1640 = vrot.slane %v1597, 4
        %v1641 = vsel %vm1254, %v1609, %v1640
        %v1643 = vunpack.c.l.s4 1934713408
        %v1644 = vunpack.c.0.s8 %v1643
        %v1645 = vperm.slane %v1639, %v1644
        %v1647 = vunpack.c.l.s4 1934713408
        %v1648 = vunpack.c.0.s8 %v1647
        %v1649 = vperm.slane %v1641, %v1648
        %v1650 = vrot.slane %v1613, 4
        %v1651 = vsel %vm1254, %v1650, %v1601
        %v1652 = vrot.slane %v1601, 4
        %v1653 = vsel %vm1254, %v1613, %v1652
        %v1655 = vunpack.c.l.s4 1934713408
        %v1656 = vunpack.c.0.s8 %v1655
        %v1657 = vperm.slane %v1651, %v1656
        %v1659 = vunpack.c.l.s4 1934713408
        %v1660 = vunpack.c.0.s8 %v1659
        %v1661 = vperm.slane %v1653, %v1660
        %v1662 = vrot.slane %v1633, 4
        %v1663 = vsel %vm1254, %v1662, %v1621
        %v1664 = vrot.slane %v1621, 4
        %v1665 = vsel %vm1254, %v1633, %v1664
        %v1667 = vunpack.c.l.s4 1934713408
        %v1668 = vunpack.c.0.s8 %v1667
        %v1669 = vperm.slane %v1663, %v1668
        %v1671 = vunpack.c.l.s4 1934713408
        %v1672 = vunpack.c.0.s8 %v1671
        %v1673 = vperm.slane %v1665, %v1672
        %v1674 = vrot.slane %v1637, 4
        %v1675 = vsel %vm1254, %v1674, %v1625
        %v1676 = vrot.slane %v1625, 4
        %v1677 = vsel %vm1254, %v1637, %v1676
        %v1679 = vunpack.c.l.s4 1934713408
        %v1680 = vunpack.c.0.s8 %v1679
        %v1681 = vperm.slane %v1675, %v1680
        %v1683 = vunpack.c.l.s4 1934713408
        %v1684 = vunpack.c.0.s8 %v1683
        %v1685 = vperm.slane %v1677, %v1684
        %v1686 = vrot.slane %v1669, 4
        %v1687 = vsel %vm1254, %v1686, %v1645
        %v1688 = vrot.slane %v1645, 4
        %v1689 = vsel %vm1254, %v1669, %v1688
        %v1690 = vrot.slane %v1673, 4
        %v1691 = vsel %vm1254, %v1690, %v1649
        %v1692 = vrot.slane %v1649, 4
        %v1693 = vsel %vm1254, %v1673, %v1692
        %v1694 = vrot.slane %v1681, 4
        %v1695 = vsel %vm1254, %v1694, %v1657
        %v1696 = vrot.slane %v1657, 4
        %v1697 = vsel %vm1254, %v1681, %v1696
        %v1698 = vrot.slane %v1685, 4
        %v1699 = vsel %vm1254, %v1698, %v1661
        %v1700 = vrot.slane %v1661, 4
        %v1701 = vsel %vm1254, %v1685, %v1700
        %v1702 = vrot.slane %v1234, 4
        %v1703 = vsel %vm1254, %v1702, %v1129
        %v1704 = vrot.slane %v1129, 4
        %v1705 = vsel %vm1254, %v1234, %v1704
        %v1707 = vunpack.c.l.s4 1983009808
        %v1708 = vunpack.c.0.s8 %v1707
        %v1709 = vperm.slane %v1703, %v1708
        %v1711 = vunpack.c.l.s4 1983009808
        %v1712 = vunpack.c.0.s8 %v1711
        %v1713 = vperm.slane %v1705, %v1712
        %v1714 = vrot.slane %v1246, 4
        %v1715 = vsel %vm1254, %v1714, %v1222
        %v1716 = vrot.slane %v1222, 4
        %v1717 = vsel %vm1254, %v1246, %v1716
        %v1719 = vunpack.c.l.s4 1983009808
        %v1720 = vunpack.c.0.s8 %v1719
        %v1721 = vperm.slane %v1715, %v1720
        %v1723 = vunpack.c.l.s4 1983009808
        %v1724 = vunpack.c.0.s8 %v1723
        %v1725 = vperm.slane %v1717, %v1724
        %v1726 = vrot.slane %v1721, 4
        %v1727 = vsel %vm1254, %v1726, %v1709
        %v1728 = vrot.slane %v1709, 4
        %v1729 = vsel %vm1254, %v1721, %v1728
        %v1731 = vunpack.c.l.s4 1934713408
        %v1732 = vunpack.c.0.s8 %v1731
        %v1733 = vperm.slane %v1727, %v1732
        %v1735 = vunpack.c.l.s4 1934713408
        %v1736 = vunpack.c.0.s8 %v1735
        %v1737 = vperm.slane %v1729, %v1736
        %v1738 = vrot.slane %v1725, 4
        %v1739 = vsel %vm1254, %v1738, %v1713
        %v1740 = vrot.slane %v1713, 4
        %v1741 = vsel %vm1254, %v1725, %v1740
        %v1743 = vunpack.c.l.s4 1934713408
        %v1744 = vunpack.c.0.s8 %v1743
        %v1745 = vperm.slane %v1739, %v1744
        %v1747 = vunpack.c.l.s4 1934713408
        %v1748 = vunpack.c.0.s8 %v1747
        %v1749 = vperm.slane %v1741, %v1748
        %v1750 = vrot.slane %v1733, 4
        %v1751 = vsel %vm1254, 0.0, %v1750
        %v1752 = vrot.slane %v1737, 4
        %v1753 = vsel %vm1254, 0.0, %v1752
        %v1754 = vrot.slane %v1745, 4
        %v1755 = vsel %vm1254, 0.0, %v1754
        %v1756 = vrot.slane %v1749, 4
        %v1757 = vsel %vm1254, 0.0, %v1756
        %v1758 = vrot.slane %v1156, 4
        %v1759 = vsel %vm1254, %v1758, %v1093
        %v1760 = vrot.slane %v1093, 4
        %v1761 = vsel %vm1254, %v1156, %v1760
        %v1763 = vunpack.c.l.s4 1983009808
        %v1764 = vunpack.c.0.s8 %v1763
        %v1765 = vperm.slane %v1759, %v1764
        %v1767 = vunpack.c.l.s4 1983009808
        %v1768 = vunpack.c.0.s8 %v1767
        %v1769 = vperm.slane %v1761, %v1768
        %v1770 = vrot.slane %v1168, 4
        %v1771 = vsel %vm1254, %v1770, %v1144
        %v1772 = vrot.slane %v1144, 4
        %v1773 = vsel %vm1254, %v1168, %v1772
        %v1775 = vunpack.c.l.s4 1983009808
        %v1776 = vunpack.c.0.s8 %v1775
        %v1777 = vperm.slane %v1771, %v1776
        %v1779 = vunpack.c.l.s4 1983009808
        %v1780 = vunpack.c.0.s8 %v1779
        %v1781 = vperm.slane %v1773, %v1780
        %v1782 = vrot.slane %v1196, 4
        %v1783 = vsel %vm1254, %v1782, %v1112
        %v1784 = vrot.slane %v1112, 4
        %v1785 = vsel %vm1254, %v1196, %v1784
        %v1787 = vunpack.c.l.s4 1983009808
        %v1788 = vunpack.c.0.s8 %v1787
        %v1789 = vperm.slane %v1783, %v1788
        %v1791 = vunpack.c.l.s4 1983009808
        %v1792 = vunpack.c.0.s8 %v1791
        %v1793 = vperm.slane %v1785, %v1792
        %v1794 = vrot.slane %v1208, 4
        %v1795 = vsel %vm1254, %v1794, %v1184
        %v1796 = vrot.slane %v1184, 4
        %v1797 = vsel %vm1254, %v1208, %v1796
        %v1799 = vunpack.c.l.s4 1983009808
        %v1800 = vunpack.c.0.s8 %v1799
        %v1801 = vperm.slane %v1795, %v1800
        %v1803 = vunpack.c.l.s4 1983009808
        %v1804 = vunpack.c.0.s8 %v1803
        %v1805 = vperm.slane %v1797, %v1804
        %v1806 = vrot.slane %v1777, 4
        %v1807 = vsel %vm1254, %v1806, %v1765
        %v1808 = vrot.slane %v1765, 4
        %v1809 = vsel %vm1254, %v1777, %v1808
        %v1811 = vunpack.c.l.s4 1934713408
        %v1812 = vunpack.c.0.s8 %v1811
        %v1813 = vperm.slane %v1807, %v1812
        %v1815 = vunpack.c.l.s4 1934713408
        %v1816 = vunpack.c.0.s8 %v1815
        %v1817 = vperm.slane %v1809, %v1816
        %v1818 = vrot.slane %v1781, 4
        %v1819 = vsel %vm1254, %v1818, %v1769
        %v1820 = vrot.slane %v1769, 4
        %v1821 = vsel %vm1254, %v1781, %v1820
        %v1823 = vunpack.c.l.s4 1934713408
        %v1824 = vunpack.c.0.s8 %v1823
        %v1825 = vperm.slane %v1819, %v1824
        %v1827 = vunpack.c.l.s4 1934713408
        %v1828 = vunpack.c.0.s8 %v1827
        %v1829 = vperm.slane %v1821, %v1828
        %v1830 = vrot.slane %v1801, 4
        %v1831 = vsel %vm1254, %v1830, %v1789
        %v1832 = vrot.slane %v1789, 4
        %v1833 = vsel %vm1254, %v1801, %v1832
        %v1835 = vunpack.c.l.s4 1934713408
        %v1836 = vunpack.c.0.s8 %v1835
        %v1837 = vperm.slane %v1831, %v1836
        %v1839 = vunpack.c.l.s4 1934713408
        %v1840 = vunpack.c.0.s8 %v1839
        %v1841 = vperm.slane %v1833, %v1840
        %v1842 = vrot.slane %v1805, 4
        %v1843 = vsel %vm1254, %v1842, %v1793
        %v1844 = vrot.slane %v1793, 4
        %v1845 = vsel %vm1254, %v1805, %v1844
        %v1847 = vunpack.c.l.s4 1934713408
        %v1848 = vunpack.c.0.s8 %v1847
        %v1849 = vperm.slane %v1843, %v1848
        %v1851 = vunpack.c.l.s4 1934713408
        %v1852 = vunpack.c.0.s8 %v1851
        %v1853 = vperm.slane %v1845, %v1852
        %v1854 = vrot.slane %v1837, 4
        %v1855 = vsel %vm1254, %v1854, %v1813
        %v1856 = vrot.slane %v1813, 4
        %v1857 = vsel %vm1254, %v1837, %v1856
        %v1858 = vrot.slane %v1841, 4
        %v1859 = vsel %vm1254, %v1858, %v1817
        %v1860 = vrot.slane %v1817, 4
        %v1861 = vsel %vm1254, %v1841, %v1860
        %v1862 = vrot.slane %v1849, 4
        %v1863 = vsel %vm1254, %v1862, %v1825
        %v1864 = vrot.slane %v1825, 4
        %v1865 = vsel %vm1254, %v1849, %v1864
        %v1866 = vrot.slane %v1853, 4
        %v1867 = vsel %vm1254, %v1866, %v1829
        %v1868 = vrot.slane %v1829, 4
        %v1869 = vsel %vm1254, %v1853, %v1868
        %v1870 = vrot.slane %v1236, 4
        %v1871 = vsel %vm1254, %v1870, %v1131
        %v1872 = vrot.slane %v1131, 4
        %v1873 = vsel %vm1254, %v1236, %v1872
        %v1875 = vunpack.c.l.s4 1983009808
        %v1876 = vunpack.c.0.s8 %v1875
        %v1877 = vperm.slane %v1871, %v1876
        %v1879 = vunpack.c.l.s4 1983009808
        %v1880 = vunpack.c.0.s8 %v1879
        %v1881 = vperm.slane %v1873, %v1880
        %v1882 = vrot.slane %v1248, 4
        %v1883 = vsel %vm1254, %v1882, %v1224
        %v1884 = vrot.slane %v1224, 4
        %v1885 = vsel %vm1254, %v1248, %v1884
        %v1887 = vunpack.c.l.s4 1983009808
        %v1888 = vunpack.c.0.s8 %v1887
        %v1889 = vperm.slane %v1883, %v1888
        %v1891 = vunpack.c.l.s4 1983009808
        %v1892 = vunpack.c.0.s8 %v1891
        %v1893 = vperm.slane %v1885, %v1892
        %v1894 = vrot.slane %v1889, 4
        %v1895 = vsel %vm1254, %v1894, %v1877
        %v1896 = vrot.slane %v1877, 4
        %v1897 = vsel %vm1254, %v1889, %v1896
        %v1899 = vunpack.c.l.s4 1934713408
        %v1900 = vunpack.c.0.s8 %v1899
        %v1901 = vperm.slane %v1895, %v1900
        %v1903 = vunpack.c.l.s4 1934713408
        %v1904 = vunpack.c.0.s8 %v1903
        %v1905 = vperm.slane %v1897, %v1904
        %v1906 = vrot.slane %v1893, 4
        %v1907 = vsel %vm1254, %v1906, %v1881
        %v1908 = vrot.slane %v1881, 4
        %v1909 = vsel %vm1254, %v1893, %v1908
        %v1911 = vunpack.c.l.s4 1934713408
        %v1912 = vunpack.c.0.s8 %v1911
        %v1913 = vperm.slane %v1907, %v1912
        %v1915 = vunpack.c.l.s4 1934713408
        %v1916 = vunpack.c.0.s8 %v1915
        %v1917 = vperm.slane %v1909, %v1916
        %v1918 = vrot.slane %v1901, 4
        %v1919 = vsel %vm1254, 0.0, %v1918
        %v1920 = vrot.slane %v1905, 4
        %v1921 = vsel %vm1254, 0.0, %v1920
        %v1922 = vrot.slane %v1913, 4
        %v1923 = vsel %vm1254, 0.0, %v1922
        %v1924 = vrot.slane %v1917, 4
        %v1925 = vsel %vm1254, 0.0, %v1924
        %v1926 = vrot.slane %v1355, 4
        %v1927 = vsel %vm1254, %v1926, %v1351
        %v1928 = vrot.slane %v1351, 4
        %v1929 = vsel %vm1254, %v1355, %v1928
        %v1931 = vunpack.c.l.s4 1983009808
        %v1932 = vunpack.c.0.s8 %v1931
        %v1933 = vperm.slane %v1927, %v1932
        %v1935 = vunpack.c.l.s4 1983009808
        %v1936 = vunpack.c.0.s8 %v1935
        %v1937 = vperm.slane %v1929, %v1936
        %v1938 = vrot.slane %v1357, 4
        %v1939 = vsel %vm1254, %v1938, %v1353
        %v1940 = vrot.slane %v1353, 4
        %v1941 = vsel %vm1254, %v1357, %v1940
        %v1943 = vunpack.c.l.s4 1983009808
        %v1944 = vunpack.c.0.s8 %v1943
        %v1945 = vperm.slane %v1939, %v1944
        %v1947 = vunpack.c.l.s4 1983009808
        %v1948 = vunpack.c.0.s8 %v1947
        %v1949 = vperm.slane %v1941, %v1948
        %v1950 = vrot.slane %v1363, 4
        %v1951 = vsel %vm1254, %v1950, %v1359
        %v1952 = vrot.slane %v1359, 4
        %v1953 = vsel %vm1254, %v1363, %v1952
        %v1955 = vunpack.c.l.s4 1983009808
        %v1956 = vunpack.c.0.s8 %v1955
        %v1957 = vperm.slane %v1951, %v1956
        %v1959 = vunpack.c.l.s4 1983009808
        %v1960 = vunpack.c.0.s8 %v1959
        %v1961 = vperm.slane %v1953, %v1960
        %v1962 = vrot.slane %v1365, 4
        %v1963 = vsel %vm1254, %v1962, %v1361
        %v1964 = vrot.slane %v1361, 4
        %v1965 = vsel %vm1254, %v1365, %v1964
        %v1967 = vunpack.c.l.s4 1983009808
        %v1968 = vunpack.c.0.s8 %v1967
        %v1969 = vperm.slane %v1963, %v1968
        %v1971 = vunpack.c.l.s4 1983009808
        %v1972 = vunpack.c.0.s8 %v1971
        %v1973 = vperm.slane %v1965, %v1972
        %v1974 = vrot.slane %v1945, 4
        %v1975 = vsel %vm1254, %v1974, %v1933
        %v1976 = vrot.slane %v1933, 4
        %v1977 = vsel %vm1254, %v1945, %v1976
        %v1979 = vunpack.c.l.s4 1934713408
        %v1980 = vunpack.c.0.s8 %v1979
        %v1981 = vperm.slane %v1975, %v1980
        %v1983 = vunpack.c.l.s4 1934713408
        %v1984 = vunpack.c.0.s8 %v1983
        %v1985 = vperm.slane %v1977, %v1984
        %v1986 = vrot.slane %v1949, 4
        %v1987 = vsel %vm1254, %v1986, %v1937
        %v1988 = vrot.slane %v1937, 4
        %v1989 = vsel %vm1254, %v1949, %v1988
        %v1991 = vunpack.c.l.s4 1934713408
        %v1992 = vunpack.c.0.s8 %v1991
        %v1993 = vperm.slane %v1987, %v1992
        %v1995 = vunpack.c.l.s4 1934713408
        %v1996 = vunpack.c.0.s8 %v1995
        %v1997 = vperm.slane %v1989, %v1996
        %v1998 = vrot.slane %v1969, 4
        %v1999 = vsel %vm1254, %v1998, %v1957
        %v2000 = vrot.slane %v1957, 4
        %v2001 = vsel %vm1254, %v1969, %v2000
        %v2003 = vunpack.c.l.s4 1934713408
        %v2004 = vunpack.c.0.s8 %v2003
        %v2005 = vperm.slane %v1999, %v2004
        %v2007 = vunpack.c.l.s4 1934713408
        %v2008 = vunpack.c.0.s8 %v2007
        %v2009 = vperm.slane %v2001, %v2008
        %v2010 = vrot.slane %v1973, 4
        %v2011 = vsel %vm1254, %v2010, %v1961
        %v2012 = vrot.slane %v1961, 4
        %v2013 = vsel %vm1254, %v1973, %v2012
        %v2015 = vunpack.c.l.s4 1934713408
        %v2016 = vunpack.c.0.s8 %v2015
        %v2017 = vperm.slane %v2011, %v2016
        %v2019 = vunpack.c.l.s4 1934713408
        %v2020 = vunpack.c.0.s8 %v2019
        %v2021 = vperm.slane %v2013, %v2020
        %v2022 = vrot.slane %v2005, 4
        %v2023 = vsel %vm1254, %v2022, %v1981
        %v2024 = vrot.slane %v1981, 4
        %v2025 = vsel %vm1254, %v2005, %v2024
        %v2026 = vrot.slane %v2009, 4
        %v2027 = vsel %vm1254, %v2026, %v1985
        %v2028 = vrot.slane %v1985, 4
        %v2029 = vsel %vm1254, %v2009, %v2028
        %v2030 = vrot.slane %v2017, 4
        %v2031 = vsel %vm1254, %v2030, %v1993
        %v2032 = vrot.slane %v1993, 4
        %v2033 = vsel %vm1254, %v2017, %v2032
        %v2034 = vrot.slane %v2021, 4
        %v2035 = vsel %vm1254, %v2034, %v1997
        %v2036 = vrot.slane %v1997, 4
        %v2037 = vsel %vm1254, %v2021, %v2036
        %v2038 = vrot.slane %v1523, 4
        %v2039 = vsel %vm1254, %v2038, %v1519
        %v2040 = vrot.slane %v1519, 4
        %v2041 = vsel %vm1254, %v1523, %v2040
        %v2043 = vunpack.c.l.s4 1983009808
        %v2044 = vunpack.c.0.s8 %v2043
        %v2045 = vperm.slane %v2039, %v2044
        %v2047 = vunpack.c.l.s4 1983009808
        %v2048 = vunpack.c.0.s8 %v2047
        %v2049 = vperm.slane %v2041, %v2048
        %v2050 = vrot.slane %v1525, 4
        %v2051 = vsel %vm1254, %v2050, %v1521
        %v2052 = vrot.slane %v1521, 4
        %v2053 = vsel %vm1254, %v1525, %v2052
        %v2055 = vunpack.c.l.s4 1983009808
        %v2056 = vunpack.c.0.s8 %v2055
        %v2057 = vperm.slane %v2051, %v2056
        %v2059 = vunpack.c.l.s4 1983009808
        %v2060 = vunpack.c.0.s8 %v2059
        %v2061 = vperm.slane %v2053, %v2060
        %v2062 = vrot.slane %v1531, 4
        %v2063 = vsel %vm1254, %v2062, %v1527
        %v2064 = vrot.slane %v1527, 4
        %v2065 = vsel %vm1254, %v1531, %v2064
        %v2067 = vunpack.c.l.s4 1983009808
        %v2068 = vunpack.c.0.s8 %v2067
        %v2069 = vperm.slane %v2063, %v2068
        %v2071 = vunpack.c.l.s4 1983009808
        %v2072 = vunpack.c.0.s8 %v2071
        %v2073 = vperm.slane %v2065, %v2072
        %v2074 = vrot.slane %v1533, 4
        %v2075 = vsel %vm1254, %v2074, %v1529
        %v2076 = vrot.slane %v1529, 4
        %v2077 = vsel %vm1254, %v1533, %v2076
        %v2079 = vunpack.c.l.s4 1983009808
        %v2080 = vunpack.c.0.s8 %v2079
        %v2081 = vperm.slane %v2075, %v2080
        %v2083 = vunpack.c.l.s4 1983009808
        %v2084 = vunpack.c.0.s8 %v2083
        %v2085 = vperm.slane %v2077, %v2084
        %v2086 = vrot.slane %v2057, 4
        %v2087 = vsel %vm1254, %v2086, %v2045
        %v2088 = vrot.slane %v2045, 4
        %v2089 = vsel %vm1254, %v2057, %v2088
        %v2091 = vunpack.c.l.s4 1934713408
        %v2092 = vunpack.c.0.s8 %v2091
        %v2093 = vperm.slane %v2087, %v2092
        %v2095 = vunpack.c.l.s4 1934713408
        %v2096 = vunpack.c.0.s8 %v2095
        %v2097 = vperm.slane %v2089, %v2096
        %v2098 = vrot.slane %v2061, 4
        %v2099 = vsel %vm1254, %v2098, %v2049
        %v2100 = vrot.slane %v2049, 4
        %v2101 = vsel %vm1254, %v2061, %v2100
        %v2103 = vunpack.c.l.s4 1934713408
        %v2104 = vunpack.c.0.s8 %v2103
        %v2105 = vperm.slane %v2099, %v2104
        %v2107 = vunpack.c.l.s4 1934713408
        %v2108 = vunpack.c.0.s8 %v2107
        %v2109 = vperm.slane %v2101, %v2108
        %v2110 = vrot.slane %v2081, 4
        %v2111 = vsel %vm1254, %v2110, %v2069
        %v2112 = vrot.slane %v2069, 4
        %v2113 = vsel %vm1254, %v2081, %v2112
        %v2115 = vunpack.c.l.s4 1934713408
        %v2116 = vunpack.c.0.s8 %v2115
        %v2117 = vperm.slane %v2111, %v2116
        %v2119 = vunpack.c.l.s4 1934713408
        %v2120 = vunpack.c.0.s8 %v2119
        %v2121 = vperm.slane %v2113, %v2120
        %v2122 = vrot.slane %v2085, 4
        %v2123 = vsel %vm1254, %v2122, %v2073
        %v2124 = vrot.slane %v2073, 4
        %v2125 = vsel %vm1254, %v2085, %v2124
        %v2127 = vunpack.c.l.s4 1934713408
        %v2128 = vunpack.c.0.s8 %v2127
        %v2129 = vperm.slane %v2123, %v2128
        %v2131 = vunpack.c.l.s4 1934713408
        %v2132 = vunpack.c.0.s8 %v2131
        %v2133 = vperm.slane %v2125, %v2132
        %v2134 = vrot.slane %v2117, 4
        %v2135 = vsel %vm1254, %v2134, %v2093
        %v2136 = vrot.slane %v2093, 4
        %v2137 = vsel %vm1254, %v2117, %v2136
        %v2138 = vrot.slane %v2121, 4
        %v2139 = vsel %vm1254, %v2138, %v2097
        %v2140 = vrot.slane %v2097, 4
        %v2141 = vsel %vm1254, %v2121, %v2140
        %v2142 = vrot.slane %v2129, 4
        %v2143 = vsel %vm1254, %v2142, %v2105
        %v2144 = vrot.slane %v2105, 4
        %v2145 = vsel %vm1254, %v2129, %v2144
        %v2146 = vrot.slane %v2133, 4
        %v2147 = vsel %vm1254, %v2146, %v2109
        %v2148 = vrot.slane %v2109, 4
        %v2149 = vsel %vm1254, %v2133, %v2148
        %v2150 = vrot.slane %v1691, 4
        %v2151 = vsel %vm1254, %v2150, %v1687
        %v2152 = vrot.slane %v1687, 4
        %v2153 = vsel %vm1254, %v1691, %v2152
        %v2155 = vunpack.c.l.s4 1983009808
        %v2156 = vunpack.c.0.s8 %v2155
        %v2157 = vperm.slane %v2151, %v2156
        %v2159 = vunpack.c.l.s4 1983009808
        %v2160 = vunpack.c.0.s8 %v2159
        %v2161 = vperm.slane %v2153, %v2160
        %v2162 = vrot.slane %v1693, 4
        %v2163 = vsel %vm1254, %v2162, %v1689
        %v2164 = vrot.slane %v1689, 4
        %v2165 = vsel %vm1254, %v1693, %v2164
        %v2167 = vunpack.c.l.s4 1983009808
        %v2168 = vunpack.c.0.s8 %v2167
        %v2169 = vperm.slane %v2163, %v2168
        %v2171 = vunpack.c.l.s4 1983009808
        %v2172 = vunpack.c.0.s8 %v2171
        %v2173 = vperm.slane %v2165, %v2172
        %v2174 = vrot.slane %v1699, 4
        %v2175 = vsel %vm1254, %v2174, %v1695
        %v2176 = vrot.slane %v1695, 4
        %v2177 = vsel %vm1254, %v1699, %v2176
        %v2179 = vunpack.c.l.s4 1983009808
        %v2180 = vunpack.c.0.s8 %v2179
        %v2181 = vperm.slane %v2175, %v2180
        %v2183 = vunpack.c.l.s4 1983009808
        %v2184 = vunpack.c.0.s8 %v2183
        %v2185 = vperm.slane %v2177, %v2184
        %v2186 = vrot.slane %v1701, 4
        %v2187 = vsel %vm1254, %v2186, %v1697
        %v2188 = vrot.slane %v1697, 4
        %v2189 = vsel %vm1254, %v1701, %v2188
        %v2191 = vunpack.c.l.s4 1983009808
        %v2192 = vunpack.c.0.s8 %v2191
        %v2193 = vperm.slane %v2187, %v2192
        %v2195 = vunpack.c.l.s4 1983009808
        %v2196 = vunpack.c.0.s8 %v2195
        %v2197 = vperm.slane %v2189, %v2196
        %v2198 = vrot.slane %v2169, 4
        %v2199 = vsel %vm1254, %v2198, %v2157
        %v2200 = vrot.slane %v2157, 4
        %v2201 = vsel %vm1254, %v2169, %v2200
        %v2203 = vunpack.c.l.s4 1934713408
        %v2204 = vunpack.c.0.s8 %v2203
        %v2205 = vperm.slane %v2199, %v2204
        %v2207 = vunpack.c.l.s4 1934713408
        %v2208 = vunpack.c.0.s8 %v2207
        %v2209 = vperm.slane %v2201, %v2208
        %v2210 = vrot.slane %v2173, 4
        %v2211 = vsel %vm1254, %v2210, %v2161
        %v2212 = vrot.slane %v2161, 4
        %v2213 = vsel %vm1254, %v2173, %v2212
        %v2215 = vunpack.c.l.s4 1934713408
        %v2216 = vunpack.c.0.s8 %v2215
        %v2217 = vperm.slane %v2211, %v2216
        %v2219 = vunpack.c.l.s4 1934713408
        %v2220 = vunpack.c.0.s8 %v2219
        %v2221 = vperm.slane %v2213, %v2220
        %v2222 = vrot.slane %v2193, 4
        %v2223 = vsel %vm1254, %v2222, %v2181
        %v2224 = vrot.slane %v2181, 4
        %v2225 = vsel %vm1254, %v2193, %v2224
        %v2227 = vunpack.c.l.s4 1934713408
        %v2228 = vunpack.c.0.s8 %v2227
        %v2229 = vperm.slane %v2223, %v2228
        %v2231 = vunpack.c.l.s4 1934713408
        %v2232 = vunpack.c.0.s8 %v2231
        %v2233 = vperm.slane %v2225, %v2232
        %v2234 = vrot.slane %v2197, 4
        %v2235 = vsel %vm1254, %v2234, %v2185
        %v2236 = vrot.slane %v2185, 4
        %v2237 = vsel %vm1254, %v2197, %v2236
        %v2239 = vunpack.c.l.s4 1934713408
        %v2240 = vunpack.c.0.s8 %v2239
        %v2241 = vperm.slane %v2235, %v2240
        %v2243 = vunpack.c.l.s4 1934713408
        %v2244 = vunpack.c.0.s8 %v2243
        %v2245 = vperm.slane %v2237, %v2244
        %v2246 = vrot.slane %v2229, 4
        %v2247 = vsel %vm1254, %v2246, %v2205
        %v2248 = vrot.slane %v2205, 4
        %v2249 = vsel %vm1254, %v2229, %v2248
        %v2250 = vrot.slane %v2233, 4
        %v2251 = vsel %vm1254, %v2250, %v2209
        %v2252 = vrot.slane %v2209, 4
        %v2253 = vsel %vm1254, %v2233, %v2252
        %v2254 = vrot.slane %v2241, 4
        %v2255 = vsel %vm1254, %v2254, %v2217
        %v2256 = vrot.slane %v2217, 4
        %v2257 = vsel %vm1254, %v2241, %v2256
        %v2258 = vrot.slane %v2245, 4
        %v2259 = vsel %vm1254, %v2258, %v2221
        %v2260 = vrot.slane %v2221, 4
        %v2261 = vsel %vm1254, %v2245, %v2260
        %v2262 = vrot.slane %v1859, 4
        %v2263 = vsel %vm1254, %v2262, %v1855
        %v2264 = vrot.slane %v1855, 4
        %v2265 = vsel %vm1254, %v1859, %v2264
        %v2267 = vunpack.c.l.s4 1983009808
        %v2268 = vunpack.c.0.s8 %v2267
        %v2269 = vperm.slane %v2263, %v2268
        %v2271 = vunpack.c.l.s4 1983009808
        %v2272 = vunpack.c.0.s8 %v2271
        %v2273 = vperm.slane %v2265, %v2272
        %v2274 = vrot.slane %v1861, 4
        %v2275 = vsel %vm1254, %v2274, %v1857
        %v2276 = vrot.slane %v1857, 4
        %v2277 = vsel %vm1254, %v1861, %v2276
        %v2279 = vunpack.c.l.s4 1983009808
        %v2280 = vunpack.c.0.s8 %v2279
        %v2281 = vperm.slane %v2275, %v2280
        %v2283 = vunpack.c.l.s4 1983009808
        %v2284 = vunpack.c.0.s8 %v2283
        %v2285 = vperm.slane %v2277, %v2284
        %v2286 = vrot.slane %v1867, 4
        %v2287 = vsel %vm1254, %v2286, %v1863
        %v2288 = vrot.slane %v1863, 4
        %v2289 = vsel %vm1254, %v1867, %v2288
        %v2291 = vunpack.c.l.s4 1983009808
        %v2292 = vunpack.c.0.s8 %v2291
        %v2293 = vperm.slane %v2287, %v2292
        %v2295 = vunpack.c.l.s4 1983009808
        %v2296 = vunpack.c.0.s8 %v2295
        %v2297 = vperm.slane %v2289, %v2296
        %v2298 = vrot.slane %v1869, 4
        %v2299 = vsel %vm1254, %v2298, %v1865
        %v2300 = vrot.slane %v1865, 4
        %v2301 = vsel %vm1254, %v1869, %v2300
        %v2303 = vunpack.c.l.s4 1983009808
        %v2304 = vunpack.c.0.s8 %v2303
        %v2305 = vperm.slane %v2299, %v2304
        %v2307 = vunpack.c.l.s4 1983009808
        %v2308 = vunpack.c.0.s8 %v2307
        %v2309 = vperm.slane %v2301, %v2308
        %v2310 = vrot.slane %v2281, 4
        %v2311 = vsel %vm1254, %v2310, %v2269
        %v2312 = vrot.slane %v2269, 4
        %v2313 = vsel %vm1254, %v2281, %v2312
        %v2315 = vunpack.c.l.s4 1934713408
        %v2316 = vunpack.c.0.s8 %v2315
        %v2317 = vperm.slane %v2311, %v2316
        %v2319 = vunpack.c.l.s4 1934713408
        %v2320 = vunpack.c.0.s8 %v2319
        %v2321 = vperm.slane %v2313, %v2320
        %v2322 = vrot.slane %v2285, 4
        %v2323 = vsel %vm1254, %v2322, %v2273
        %v2324 = vrot.slane %v2273, 4
        %v2325 = vsel %vm1254, %v2285, %v2324
        %v2327 = vunpack.c.l.s4 1934713408
        %v2328 = vunpack.c.0.s8 %v2327
        %v2329 = vperm.slane %v2323, %v2328
        %v2331 = vunpack.c.l.s4 1934713408
        %v2332 = vunpack.c.0.s8 %v2331
        %v2333 = vperm.slane %v2325, %v2332
        %v2334 = vrot.slane %v2305, 4
        %v2335 = vsel %vm1254, %v2334, %v2293
        %v2336 = vrot.slane %v2293, 4
        %v2337 = vsel %vm1254, %v2305, %v2336
        %v2339 = vunpack.c.l.s4 1934713408
        %v2340 = vunpack.c.0.s8 %v2339
        %v2341 = vperm.slane %v2335, %v2340
        %v2343 = vunpack.c.l.s4 1934713408
        %v2344 = vunpack.c.0.s8 %v2343
        %v2345 = vperm.slane %v2337, %v2344
        %v2346 = vrot.slane %v2309, 4
        %v2347 = vsel %vm1254, %v2346, %v2297
        %v2348 = vrot.slane %v2297, 4
        %v2349 = vsel %vm1254, %v2309, %v2348
        %v2351 = vunpack.c.l.s4 1934713408
        %v2352 = vunpack.c.0.s8 %v2351
        %v2353 = vperm.slane %v2347, %v2352
        %v2355 = vunpack.c.l.s4 1934713408
        %v2356 = vunpack.c.0.s8 %v2355
        %v2357 = vperm.slane %v2349, %v2356
        %v2358 = vrot.slane %v2341, 4
        %v2359 = vsel %vm1254, %v2358, %v2317
        %v2360 = vrot.slane %v2317, 4
        %v2361 = vsel %vm1254, %v2341, %v2360
        %v2362 = vrot.slane %v2345, 4
        %v2363 = vsel %vm1254, %v2362, %v2321
        %v2364 = vrot.slane %v2321, 4
        %v2365 = vsel %vm1254, %v2345, %v2364
        %v2366 = vrot.slane %v2353, 4
        %v2367 = vsel %vm1254, %v2366, %v2329
        %v2368 = vrot.slane %v2329, 4
        %v2369 = vsel %vm1254, %v2353, %v2368
        %v2370 = vrot.slane %v2357, 4
        %v2371 = vsel %vm1254, %v2370, %v2333
        %v2372 = vrot.slane %v2333, 4
        %v2373 = vsel %vm1254, %v2357, %v2372
        %v2374 = vsel %vm1254, %v1416, %v1397
        %v2376 = vunpack.c.l.s4 1983009808
        %v2377 = vunpack.c.0.s8 %v2376
        %v2378 = vperm.slane %v2374, %v2377
        %v2379 = vrot.slane %v1417, 4
        %v2380 = vsel %vm1254, %v2379, %v1415
        %v2382 = vunpack.c.l.s4 1983009808
        %v2383 = vunpack.c.0.s8 %v2382
        %v2384 = vperm.slane %v2380, %v2383
        %v2385 = vsel %vm1254, %v1420, %v1409
        %v2387 = vunpack.c.l.s4 1983009808
        %v2388 = vunpack.c.0.s8 %v2387
        %v2389 = vperm.slane %v2385, %v2388
        %v2390 = vrot.slane %v1421, 4
        %v2391 = vsel %vm1254, %v2390, %v1419
        %v2393 = vunpack.c.l.s4 1983009808
        %v2394 = vunpack.c.0.s8 %v2393
        %v2395 = vperm.slane %v2391, %v2394
        %v2396 = vrot.slane %v2384, 4
        %v2397 = vsel %vm1254, %v2396, %v2378
        %v2398 = vrot.slane %v2378, 4
        %v2399 = vsel %vm1254, %v2384, %v2398
        %v2401 = vunpack.c.l.s4 1934713408
        %v2402 = vunpack.c.0.s8 %v2401
        %v2403 = vperm.slane %v2397, %v2402
        %v2405 = vunpack.c.l.s4 1934713408
        %v2406 = vunpack.c.0.s8 %v2405
        %v2407 = vperm.slane %v2399, %v2406
        %v2408 = vrot.slane %v2395, 4
        %v2409 = vsel %vm1254, %v2408, %v2389
        %v2410 = vrot.slane %v2389, 4
        %v2411 = vsel %vm1254, %v2395, %v2410
        %v2413 = vunpack.c.l.s4 1934713408
        %v2414 = vunpack.c.0.s8 %v2413
        %v2415 = vperm.slane %v2409, %v2414
        %v2417 = vunpack.c.l.s4 1934713408
        %v2418 = vunpack.c.0.s8 %v2417
        %v2419 = vperm.slane %v2411, %v2418
        %v2420 = vrot.slane %v2415, 4
        %v2421 = vsel %vm1254, %v2420, %v2403
        %v2422 = vrot.slane %v2403, 4
        %v2423 = vsel %vm1254, %v2415, %v2422
        %v2424 = vrot.slane %v2419, 4
        %v2425 = vsel %vm1254, %v2424, %v2407
        %v2426 = vrot.slane %v2407, 4
        %v2427 = vsel %vm1254, %v2419, %v2426
        %v2428 = vsel %vm1254, %v1584, %v1565
        %v2430 = vunpack.c.l.s4 1983009808
        %v2431 = vunpack.c.0.s8 %v2430
        %v2432 = vperm.slane %v2428, %v2431
        %v2433 = vrot.slane %v1585, 4
        %v2434 = vsel %vm1254, %v2433, %v1583
        %v2436 = vunpack.c.l.s4 1983009808
        %v2437 = vunpack.c.0.s8 %v2436
        %v2438 = vperm.slane %v2434, %v2437
        %v2439 = vsel %vm1254, %v1588, %v1577
        %v2441 = vunpack.c.l.s4 1983009808
        %v2442 = vunpack.c.0.s8 %v2441
        %v2443 = vperm.slane %v2439, %v2442
        %v2444 = vrot.slane %v1589, 4
        %v2445 = vsel %vm1254, %v2444, %v1587
        %v2447 = vunpack.c.l.s4 1983009808
        %v2448 = vunpack.c.0.s8 %v2447
        %v2449 = vperm.slane %v2445, %v2448
        %v2450 = vrot.slane %v2438, 4
        %v2451 = vsel %vm1254, %v2450, %v2432
        %v2452 = vrot.slane %v2432, 4
        %v2453 = vsel %vm1254, %v2438, %v2452
        %v2455 = vunpack.c.l.s4 1934713408
        %v2456 = vunpack.c.0.s8 %v2455
        %v2457 = vperm.slane %v2451, %v2456
        %v2459 = vunpack.c.l.s4 1934713408
        %v2460 = vunpack.c.0.s8 %v2459
        %v2461 = vperm.slane %v2453, %v2460
        %v2462 = vrot.slane %v2449, 4
        %v2463 = vsel %vm1254, %v2462, %v2443
        %v2464 = vrot.slane %v2443, 4
        %v2465 = vsel %vm1254, %v2449, %v2464
        %v2467 = vunpack.c.l.s4 1934713408
        %v2468 = vunpack.c.0.s8 %v2467
        %v2469 = vperm.slane %v2463, %v2468
        %v2471 = vunpack.c.l.s4 1934713408
        %v2472 = vunpack.c.0.s8 %v2471
        %v2473 = vperm.slane %v2465, %v2472
        %v2474 = vrot.slane %v2469, 4
        %v2475 = vsel %vm1254, %v2474, %v2457
        %v2476 = vrot.slane %v2457, 4
        %v2477 = vsel %vm1254, %v2469, %v2476
        %v2478 = vrot.slane %v2473, 4
        %v2479 = vsel %vm1254, %v2478, %v2461
        %v2480 = vrot.slane %v2461, 4
        %v2481 = vsel %vm1254, %v2473, %v2480
        %v2482 = vsel %vm1254, %v1752, %v1733
        %v2484 = vunpack.c.l.s4 1983009808
        %v2485 = vunpack.c.0.s8 %v2484
        %v2486 = vperm.slane %v2482, %v2485
        %v2487 = vrot.slane %v1753, 4
        %v2488 = vsel %vm1254, %v2487, %v1751
        %v2490 = vunpack.c.l.s4 1983009808
        %v2491 = vunpack.c.0.s8 %v2490
        %v2492 = vperm.slane %v2488, %v2491
        %v2493 = vsel %vm1254, %v1756, %v1745
        %v2495 = vunpack.c.l.s4 1983009808
        %v2496 = vunpack.c.0.s8 %v2495
        %v2497 = vperm.slane %v2493, %v2496
        %v2498 = vrot.slane %v1757, 4
        %v2499 = vsel %vm1254, %v2498, %v1755
        %v2501 = vunpack.c.l.s4 1983009808
        %v2502 = vunpack.c.0.s8 %v2501
        %v2503 = vperm.slane %v2499, %v2502
        %v2504 = vrot.slane %v2492, 4
        %v2505 = vsel %vm1254, %v2504, %v2486
        %v2506 = vrot.slane %v2486, 4
        %v2507 = vsel %vm1254, %v2492, %v2506
        %v2509 = vunpack.c.l.s4 1934713408
        %v2510 = vunpack.c.0.s8 %v2509
        %v2511 = vperm.slane %v2505, %v2510
        %v2513 = vunpack.c.l.s4 1934713408
        %v2514 = vunpack.c.0.s8 %v2513
        %v2515 = vperm.slane %v2507, %v2514
        %v2516 = vrot.slane %v2503, 4
        %v2517 = vsel %vm1254, %v2516, %v2497
        %v2518 = vrot.slane %v2497, 4
        %v2519 = vsel %vm1254, %v2503, %v2518
        %v2521 = vunpack.c.l.s4 1934713408
        %v2522 = vunpack.c.0.s8 %v2521
        %v2523 = vperm.slane %v2517, %v2522
        %v2525 = vunpack.c.l.s4 1934713408
        %v2526 = vunpack.c.0.s8 %v2525
        %v2527 = vperm.slane %v2519, %v2526
        %v2528 = vrot.slane %v2523, 4
        %v2529 = vsel %vm1254, %v2528, %v2511
        %v2530 = vrot.slane %v2511, 4
        %v2531 = vsel %vm1254, %v2523, %v2530
        %v2532 = vrot.slane %v2527, 4
        %v2533 = vsel %vm1254, %v2532, %v2515
        %v2534 = vrot.slane %v2515, 4
        %v2535 = vsel %vm1254, %v2527, %v2534
        %v2536 = vsel %vm1254, %v1920, %v1901
        %v2538 = vunpack.c.l.s4 1983009808
        %v2539 = vunpack.c.0.s8 %v2538
        %v2540 = vperm.slane %v2536, %v2539
        %v2541 = vrot.slane %v1921, 4
        %v2542 = vsel %vm1254, %v2541, %v1919
        %v2544 = vunpack.c.l.s4 1983009808
        %v2545 = vunpack.c.0.s8 %v2544
        %v2546 = vperm.slane %v2542, %v2545
        %v2547 = vsel %vm1254, %v1924, %v1913
        %v2549 = vunpack.c.l.s4 1983009808
        %v2550 = vunpack.c.0.s8 %v2549
        %v2551 = vperm.slane %v2547, %v2550
        %v2552 = vrot.slane %v1925, 4
        %v2553 = vsel %vm1254, %v2552, %v1923
        %v2555 = vunpack.c.l.s4 1983009808
        %v2556 = vunpack.c.0.s8 %v2555
        %v2557 = vperm.slane %v2553, %v2556
        %v2558 = vrot.slane %v2546, 4
        %v2559 = vsel %vm1254, %v2558, %v2540
        %v2560 = vrot.slane %v2540, 4
        %v2561 = vsel %vm1254, %v2546, %v2560
        %v2563 = vunpack.c.l.s4 1934713408
        %v2564 = vunpack.c.0.s8 %v2563
        %v2565 = vperm.slane %v2559, %v2564
        %v2567 = vunpack.c.l.s4 1934713408
        %v2568 = vunpack.c.0.s8 %v2567
        %v2569 = vperm.slane %v2561, %v2568
        %v2570 = vrot.slane %v2557, 4
        %v2571 = vsel %vm1254, %v2570, %v2551
        %v2572 = vrot.slane %v2551, 4
        %v2573 = vsel %vm1254, %v2557, %v2572
        %v2575 = vunpack.c.l.s4 1934713408
        %v2576 = vunpack.c.0.s8 %v2575
        %v2577 = vperm.slane %v2571, %v2576
        %v2579 = vunpack.c.l.s4 1934713408
        %v2580 = vunpack.c.0.s8 %v2579
        %v2581 = vperm.slane %v2573, %v2580
        %v2582 = vrot.slane %v2577, 4
        %v2583 = vsel %vm1254, %v2582, %v2565
        %v2584 = vrot.slane %v2565, 4
        %v2585 = vsel %vm1254, %v2577, %v2584
        %v2586 = vrot.slane %v2581, 4
        %v2587 = vsel %vm1254, %v2586, %v2569
        %v2588 = vrot.slane %v2569, 4
        %v2589 = vsel %vm1254, %v2581, %v2588
        %v2590 = vpack.c.bf16 %v2023, %v2023
        %v2591 = vpack.c.bf16 %v2135, %v2135
        %v2592 = vpack.c.bf16 %v2247, %v2247
        %v2593 = vpack.c.bf16 %v2359, %v2359
        %v2594 = vpack.c.bf16 %v2025, %v2025
        %v2595 = vpack.c.bf16 %v2137, %v2137
        %v2596 = vpack.c.bf16 %v2249, %v2249
        %v2597 = vpack.c.bf16 %v2361, %v2361
        %v2598 = vpack.c.bf16 %v2027, %v2027
        %v2599 = vpack.c.bf16 %v2139, %v2139
        %v2600 = vpack.c.bf16 %v2251, %v2251
        %v2601 = vpack.c.bf16 %v2363, %v2363
        %v2602 = vpack.c.bf16 %v2029, %v2029
        %v2603 = vpack.c.bf16 %v2141, %v2141
        %v2604 = vpack.c.bf16 %v2253, %v2253
        %v2605 = vpack.c.bf16 %v2365, %v2365
        %v2606 = vpack.c.bf16 %v2031, %v2031
        %v2607 = vpack.c.bf16 %v2143, %v2143
        %v2608 = vpack.c.bf16 %v2255, %v2255
        %v2609 = vpack.c.bf16 %v2367, %v2367
        %v2610 = vpack.c.bf16 %v2033, %v2033
        %v2611 = vpack.c.bf16 %v2145, %v2145
        %v2612 = vpack.c.bf16 %v2257, %v2257
        %v2613 = vpack.c.bf16 %v2369, %v2369
        %v2614 = vpack.c.bf16 %v2035, %v2035
        %v2615 = vpack.c.bf16 %v2147, %v2147
        %v2616 = vpack.c.bf16 %v2259, %v2259
        %v2617 = vpack.c.bf16 %v2371, %v2371
        %v2618 = vpack.c.bf16 %v2037, %v2037
        %v2619 = vpack.c.bf16 %v2149, %v2149
        %v2620 = vpack.c.bf16 %v2261, %v2261
        %v2621 = vpack.c.bf16 %v2373, %v2373
        %v2622 = vpack.c.bf16 %v2421, %v2421
        %v2623 = vpack.c.bf16 %v2475, %v2475
        %v2624 = vpack.c.bf16 %v2529, %v2529
        %v2625 = vpack.c.bf16 %v2583, %v2583
        %v2626 = vpack.c.bf16 %v2423, %v2423
        %v2627 = vpack.c.bf16 %v2477, %v2477
        %v2628 = vpack.c.bf16 %v2531, %v2531
        %v2629 = vpack.c.bf16 %v2585, %v2585
        %v2630 = vpack.c.bf16 %v2425, %v2425
        %v2631 = vpack.c.bf16 %v2479, %v2479
        %v2632 = vpack.c.bf16 %v2533, %v2533
        %v2633 = vpack.c.bf16 %v2587, %v2587
        %v2634 = vpack.c.bf16 %v2427, %v2427
        %v2635 = vpack.c.bf16 %v2481, %v2481
        %v2636 = vpack.c.bf16 %v2535, %v2535
        %v2637 = vpack.c.bf16 %v2589, %v2589
        %v2640 = vunpack.c.l.b16 %v2590
        %v2641 = vunpack.c.l.b16 %v2591
        %v2642 = vpack.c.b16 %v2641, %v2640
        %v2645 = vunpack.c.l.b16 %v2606
        %v2646 = vunpack.c.l.b16 %v2607
        %v2647 = vpack.c.b16 %v2646, %v2645
        %vm2648 = vcmask 261120
        %v2650 = vsel %vm2648, %v2642, 0
        %v2653 = vsel %vm2648, %v2647, 0
        %2655 = vmatpush.bf16.xpose.msra.mxu0 0
        %2656 = vmatpush.bf16.xpose.msra.mxu0 0
        %2657 = vmatpush.bf16.xpose.msra.mxu0 0
        %2658 = vmatpush.bf16.xpose.msra.mxu0 0
        %2659 = vmatpush.bf16.xpose.msra.mxu0 0
        %2660 = vmatpush.bf16.xpose.msra.mxu0 0
        %2661 = vmatpush.bf16.xpose.msra.mxu0 0
        %2662 = vmatpush.bf16.xpose.msra.mxu0 %v2653
        %2663 = vmatmul.bf16.gmra.mxu0 %v2650
        %v2664 = vpop.f32.mrf.mxu0
        %v2665 = vadd.f32 0.0, %v2664
        %v2666 = vpop.f32.mrf.mxu0
        %v2667 = vadd.f32 0.0, %v2666
        %2668 = vdwg.mxu0
        %v2671 = vunpack.c.l.b16 %v2592
        %v2672 = vunpack.c.l.b16 %v2593
        %v2673 = vpack.c.b16 %v2672, %v2671
        %v2676 = vunpack.c.l.b16 %v2608
        %v2677 = vunpack.c.l.b16 %v2609
        %v2678 = vpack.c.b16 %v2677, %v2676
        %v2680 = vsel %vm2648, %v2673, 0
        %v2683 = vsel %vm2648, %v2678, 0
        %2685 = vmatpush.bf16.xpose.msra.mxu0 0
        %2686 = vmatpush.bf16.xpose.msra.mxu0 0
        %2687 = vmatpush.bf16.xpose.msra.mxu0 0
        %2688 = vmatpush.bf16.xpose.msra.mxu0 0
        %2689 = vmatpush.bf16.xpose.msra.mxu0 0
        %2690 = vmatpush.bf16.xpose.msra.mxu0 0
        %2691 = vmatpush.bf16.xpose.msra.mxu0 0
        %2692 = vmatpush.bf16.xpose.msra.mxu0 %v2683
        %2693 = vmatmul.bf16.gmra.mxu0 %v2680
        %v2694 = vpop.f32.mrf.mxu0
        %v2695 = vadd.f32 0.0, %v2694
        %v2696 = vpop.f32.mrf.mxu0
        %v2697 = vadd.f32 0.0, %v2696
        %2698 = vdwg.mxu0
        %v2701 = vunpack.c.l.b16 %v2594
        %v2702 = vunpack.c.l.b16 %v2595
        %v2703 = vpack.c.b16 %v2702, %v2701
        %v2706 = vunpack.c.l.b16 %v2610
        %v2707 = vunpack.c.l.b16 %v2611
        %v2708 = vpack.c.b16 %v2707, %v2706
        %v2710 = vsel %vm2648, %v2703, 0
        %v2713 = vsel %vm2648, %v2708, 0
        %2715 = vmatpush.bf16.xpose.msra.mxu0 0
        %2716 = vmatpush.bf16.xpose.msra.mxu0 0
        %2717 = vmatpush.bf16.xpose.msra.mxu0 0
        %2718 = vmatpush.bf16.xpose.msra.mxu0 0
        %2719 = vmatpush.bf16.xpose.msra.mxu0 0
        %2720 = vmatpush.bf16.xpose.msra.mxu0 0
        %2721 = vmatpush.bf16.xpose.msra.mxu0 0
        %2722 = vmatpush.bf16.xpose.msra.mxu0 %v2713
        %2723 = vmatmul.bf16.gmra.mxu0 %v2710
        %v2724 = vpop.f32.mrf.mxu0
        %v2725 = vadd.f32 0.0, %v2724
        %v2726 = vpop.f32.mrf.mxu0
        %v2727 = vadd.f32 0.0, %v2726
        %2728 = vdwg.mxu0
        %v2731 = vunpack.c.l.b16 %v2596
        %v2732 = vunpack.c.l.b16 %v2597
        %v2733 = vpack.c.b16 %v2732, %v2731
        %v2736 = vunpack.c.l.b16 %v2612
        %v2737 = vunpack.c.l.b16 %v2613
        %v2738 = vpack.c.b16 %v2737, %v2736
        %v2740 = vsel %vm2648, %v2733, 0
        %v2743 = vsel %vm2648, %v2738, 0
        %2745 = vmatpush.bf16.xpose.msra.mxu0 0
        %2746 = vmatpush.bf16.xpose.msra.mxu0 0
        %2747 = vmatpush.bf16.xpose.msra.mxu0 0
        %2748 = vmatpush.bf16.xpose.msra.mxu0 0
        %2749 = vmatpush.bf16.xpose.msra.mxu0 0
        %2750 = vmatpush.bf16.xpose.msra.mxu0 0
        %2751 = vmatpush.bf16.xpose.msra.mxu0 0
        %2752 = vmatpush.bf16.xpose.msra.mxu0 %v2743
        %2753 = vmatmul.bf16.gmra.mxu0 %v2740
        %v2754 = vpop.f32.mrf.mxu0
        %v2755 = vadd.f32 0.0, %v2754
        %v2756 = vpop.f32.mrf.mxu0
        %v2757 = vadd.f32 0.0, %v2756
        %2758 = vdwg.mxu0
        %v2761 = vunpack.c.l.b16 %v2598
        %v2762 = vunpack.c.l.b16 %v2599
        %v2763 = vpack.c.b16 %v2762, %v2761
        %v2766 = vunpack.c.l.b16 %v2614
        %v2767 = vunpack.c.l.b16 %v2615
        %v2768 = vpack.c.b16 %v2767, %v2766
        %v2770 = vsel %vm2648, %v2763, 0
        %v2773 = vsel %vm2648, %v2768, 0
        %2775 = vmatpush.bf16.xpose.msra.mxu0 0
        %2776 = vmatpush.bf16.xpose.msra.mxu0 0
        %2777 = vmatpush.bf16.xpose.msra.mxu0 0
        %2778 = vmatpush.bf16.xpose.msra.mxu0 0
        %2779 = vmatpush.bf16.xpose.msra.mxu0 0
        %2780 = vmatpush.bf16.xpose.msra.mxu0 0
        %2781 = vmatpush.bf16.xpose.msra.mxu0 0
        %2782 = vmatpush.bf16.xpose.msra.mxu0 %v2773
        %2783 = vmatmul.bf16.gmra.mxu0 %v2770
        %v2784 = vpop.f32.mrf.mxu0
        %v2785 = vadd.f32 0.0, %v2784
        %v2786 = vpop.f32.mrf.mxu0
        %v2787 = vadd.f32 0.0, %v2786
        %2788 = vdwg.mxu0
        %v2791 = vunpack.c.l.b16 %v2600
        %v2792 = vunpack.c.l.b16 %v2601
        %v2793 = vpack.c.b16 %v2792, %v2791
        %v2796 = vunpack.c.l.b16 %v2616
        %v2797 = vunpack.c.l.b16 %v2617
        %v2798 = vpack.c.b16 %v2797, %v2796
        %v2800 = vsel %vm2648, %v2793, 0
        %v2803 = vsel %vm2648, %v2798, 0
        %2805 = vmatpush.bf16.xpose.msra.mxu0 0
        %2806 = vmatpush.bf16.xpose.msra.mxu0 0
        %2807 = vmatpush.bf16.xpose.msra.mxu0 0
        %2808 = vmatpush.bf16.xpose.msra.mxu0 0
        %2809 = vmatpush.bf16.xpose.msra.mxu0 0
        %2810 = vmatpush.bf16.xpose.msra.mxu0 0
        %2811 = vmatpush.bf16.xpose.msra.mxu0 0
        %2812 = vmatpush.bf16.xpose.msra.mxu0 %v2803
        %2813 = vmatmul.bf16.gmra.mxu0 %v2800
        %v2814 = vpop.f32.mrf.mxu0
        %v2815 = vadd.f32 0.0, %v2814
        %v2816 = vpop.f32.mrf.mxu0
        %v2817 = vadd.f32 0.0, %v2816
        %2818 = vdwg.mxu0
        %v2821 = vunpack.c.l.b16 %v2602
        %v2822 = vunpack.c.l.b16 %v2603
        %v2823 = vpack.c.b16 %v2822, %v2821
        %v2826 = vunpack.c.l.b16 %v2618
        %v2827 = vunpack.c.l.b16 %v2619
        %v2828 = vpack.c.b16 %v2827, %v2826
        %v2830 = vsel %vm2648, %v2823, 0
        %v2833 = vsel %vm2648, %v2828, 0
        %2835 = vmatpush.bf16.xpose.msra.mxu0 0
        %2836 = vmatpush.bf16.xpose.msra.mxu0 0
        %2837 = vmatpush.bf16.xpose.msra.mxu0 0
        %2838 = vmatpush.bf16.xpose.msra.mxu0 0
        %2839 = vmatpush.bf16.xpose.msra.mxu0 0
        %2840 = vmatpush.bf16.xpose.msra.mxu0 0
        %2841 = vmatpush.bf16.xpose.msra.mxu0 0
        %2842 = vmatpush.bf16.xpose.msra.mxu0 %v2833
        %2843 = vmatmul.bf16.gmra.mxu0 %v2830
        %v2844 = vpop.f32.mrf.mxu0
        %v2845 = vadd.f32 0.0, %v2844
        %v2846 = vpop.f32.mrf.mxu0
        %v2847 = vadd.f32 0.0, %v2846
        %2848 = vdwg.mxu0
        %v2851 = vunpack.c.l.b16 %v2604
        %v2852 = vunpack.c.l.b16 %v2605
        %v2853 = vpack.c.b16 %v2852, %v2851
        %v2856 = vunpack.c.l.b16 %v2620
        %v2857 = vunpack.c.l.b16 %v2621
        %v2858 = vpack.c.b16 %v2857, %v2856
        %v2860 = vsel %vm2648, %v2853, 0
        %v2863 = vsel %vm2648, %v2858, 0
        %2865 = vmatpush.bf16.xpose.msra.mxu0 0
        %2866 = vmatpush.bf16.xpose.msra.mxu0 0
        %2867 = vmatpush.bf16.xpose.msra.mxu0 0
        %2868 = vmatpush.bf16.xpose.msra.mxu0 0
        %2869 = vmatpush.bf16.xpose.msra.mxu0 0
        %2870 = vmatpush.bf16.xpose.msra.mxu0 0
        %2871 = vmatpush.bf16.xpose.msra.mxu0 0
        %2872 = vmatpush.bf16.xpose.msra.mxu0 %v2863
        %2873 = vmatmul.bf16.gmra.mxu0 %v2860
        %v2874 = vpop.f32.mrf.mxu0
        %v2875 = vadd.f32 0.0, %v2874
        %v2876 = vpop.f32.mrf.mxu0
        %v2877 = vadd.f32 0.0, %v2876
        %2878 = vdwg.mxu0
        %v2881 = vperm.slane %v776, 0
        %v2882 = vperm.slane %v777, 0
        %v2885 = vadd.f32 %v2665, %v2881
        %v2886 = vadd.f32 %v2667, %v2881
        %v2887 = vadd.f32 %v2695, %v2882
        %v2888 = vadd.f32 %v2697, %v2882
        %v2889 = vadd.f32 %v2725, %v2881
        %v2890 = vadd.f32 %v2727, %v2881
        %v2891 = vadd.f32 %v2755, %v2882
        %v2892 = vadd.f32 %v2757, %v2882
        %v2893 = vadd.f32 %v2785, %v2881
        %v2894 = vadd.f32 %v2787, %v2881
        %v2895 = vadd.f32 %v2815, %v2882
        %v2896 = vadd.f32 %v2817, %v2882
        %v2897 = vadd.f32 %v2845, %v2881
        %v2898 = vadd.f32 %v2847, %v2881
        %v2899 = vadd.f32 %v2875, %v2882
        %v2900 = vadd.f32 %v2877, %v2882
        %vm2901 = vcmask 130048
        %v2902 = vsel %vm2901, %v2885, -inf
        %2903 = vmax.xlane.f32.xlu0 %v2902
        %v2904 = vpop.xlane.xlu0 %2903
        %v2905 = vsel %vm2901, %v2886, -inf
        %2906 = vmax.xlane.f32.xlu0 %v2905
        %v2907 = vpop.xlane.xlu0 %2906
        %v2908 = vsel %vm2901, %v2887, -inf
        %2909 = vmax.xlane.f32.xlu0 %v2908
        %v2910 = vpop.xlane.xlu0 %2909
        %v2911 = vsel %vm2901, %v2888, -inf
        %2912 = vmax.xlane.f32.xlu0 %v2911
        %v2913 = vpop.xlane.xlu0 %2912
        %v2914 = vsel %vm2901, %v2889, -inf
        %2915 = vmax.xlane.f32.xlu0 %v2914
        %v2916 = vpop.xlane.xlu0 %2915
        %v2917 = vsel %vm2901, %v2890, -inf
        %2918 = vmax.xlane.f32.xlu0 %v2917
        %v2919 = vpop.xlane.xlu0 %2918
        %v2920 = vsel %vm2901, %v2891, -inf
        %2921 = vmax.xlane.f32.xlu0 %v2920
        %v2922 = vpop.xlane.xlu0 %2921
        %v2923 = vsel %vm2901, %v2892, -inf
        %2924 = vmax.xlane.f32.xlu0 %v2923
        %v2925 = vpop.xlane.xlu0 %2924
        %v2926 = vsel %vm2901, %v2893, -inf
        %2927 = vmax.xlane.f32.xlu0 %v2926
        %v2928 = vpop.xlane.xlu0 %2927
        %v2929 = vsel %vm2901, %v2894, -inf
        %2930 = vmax.xlane.f32.xlu0 %v2929
        %v2931 = vpop.xlane.xlu0 %2930
        %v2932 = vsel %vm2901, %v2895, -inf
        %2933 = vmax.xlane.f32.xlu0 %v2932
        %v2934 = vpop.xlane.xlu0 %2933
        %v2935 = vsel %vm2901, %v2896, -inf
        %2936 = vmax.xlane.f32.xlu0 %v2935
        %v2937 = vpop.xlane.xlu0 %2936
        %v2938 = vsel %vm2901, %v2897, -inf
        %2939 = vmax.xlane.f32.xlu0 %v2938
        %v2940 = vpop.xlane.xlu0 %2939
        %v2941 = vsel %vm2901, %v2898, -inf
        %2942 = vmax.xlane.f32.xlu0 %v2941
        %v2943 = vpop.xlane.xlu0 %2942
        %v2944 = vsel %vm2901, %v2899, -inf
        %2945 = vmax.xlane.f32.xlu0 %v2944
        %v2946 = vpop.xlane.xlu0 %2945
        %v2947 = vsel %vm2901, %v2900, -inf
        %2948 = vmax.xlane.f32.xlu0 %v2947
        %v2949 = vpop.xlane.xlu0 %2948
        %v2950 = vsub.f32 %v2885, %v2904
        %v2951 = vsub.f32 %v2886, %v2907
        %v2952 = vsub.f32 %v2887, %v2910
        %v2953 = vsub.f32 %v2888, %v2913
        %v2954 = vsub.f32 %v2889, %v2916
        %v2955 = vsub.f32 %v2890, %v2919
        %v2956 = vsub.f32 %v2891, %v2922
        %v2957 = vsub.f32 %v2892, %v2925
        %v2958 = vsub.f32 %v2893, %v2928
        %v2959 = vsub.f32 %v2894, %v2931
        %v2960 = vsub.f32 %v2895, %v2934
        %v2961 = vsub.f32 %v2896, %v2937
        %v2962 = vsub.f32 %v2897, %v2940
        %v2963 = vsub.f32 %v2898, %v2943
        %v2964 = vsub.f32 %v2899, %v2946
        %v2965 = vsub.f32 %v2900, %v2949
        %v2966 = vmul.f32 %v2950, 1.442695
        %v2967 = vpow.pop %v2966
        %v2968 = vmul.f32 %v2951, 1.442695
        %v2969 = vpow.pop %v2968
        %v2970 = vmul.f32 %v2952, 1.442695
        %v2971 = vpow.pop %v2970
        %v2972 = vmul.f32 %v2953, 1.442695
        %v2973 = vpow.pop %v2972
        %v2974 = vmul.f32 %v2954, 1.442695
        %v2975 = vpow.pop %v2974
        %v2976 = vmul.f32 %v2955, 1.442695
        %v2977 = vpow.pop %v2976
        %v2978 = vmul.f32 %v2956, 1.442695
        %v2979 = vpow.pop %v2978
        %v2980 = vmul.f32 %v2957, 1.442695
        %v2981 = vpow.pop %v2980
        %v2982 = vmul.f32 %v2958, 1.442695
        %v2983 = vpow.pop %v2982
        %v2984 = vmul.f32 %v2959, 1.442695
        %v2985 = vpow.pop %v2984
        %v2986 = vmul.f32 %v2960, 1.442695
        %v2987 = vpow.pop %v2986
        %v2988 = vmul.f32 %v2961, 1.442695
        %v2989 = vpow.pop %v2988
        %v2990 = vmul.f32 %v2962, 1.442695
        %v2991 = vpow.pop %v2990
        %v2992 = vmul.f32 %v2963, 1.442695
        %v2993 = vpow.pop %v2992
        %v2994 = vmul.f32 %v2964, 1.442695
        %v2995 = vpow.pop %v2994
        %v2996 = vmul.f32 %v2965, 1.442695
        %v2997 = vpow.pop %v2996
        %v2998 = vsel %vm2901, %v2967, 0.0
        %2999 = vadd.xlane.f32.xlu0 %v2998
        %v3000 = vpop.xlane.xlu0 %2999
        %v3001 = vsel %vm2901, %v2969, 0.0
        %3002 = vadd.xlane.f32.xlu0 %v3001
        %v3003 = vpop.xlane.xlu0 %3002
        %v3004 = vsel %vm2901, %v2971, 0.0
        %3005 = vadd.xlane.f32.xlu0 %v3004
        %v3006 = vpop.xlane.xlu0 %3005
        %v3007 = vsel %vm2901, %v2973, 0.0
        %3008 = vadd.xlane.f32.xlu0 %v3007
        %v3009 = vpop.xlane.xlu0 %3008
        %v3010 = vsel %vm2901, %v2975, 0.0
        %3011 = vadd.xlane.f32.xlu0 %v3010
        %v3012 = vpop.xlane.xlu0 %3011
        %v3013 = vsel %vm2901, %v2977, 0.0
        %3014 = vadd.xlane.f32.xlu0 %v3013
        %v3015 = vpop.xlane.xlu0 %3014
        %v3016 = vsel %vm2901, %v2979, 0.0
        %3017 = vadd.xlane.f32.xlu0 %v3016
        %v3018 = vpop.xlane.xlu0 %3017
        %v3019 = vsel %vm2901, %v2981, 0.0
        %3020 = vadd.xlane.f32.xlu0 %v3019
        %v3021 = vpop.xlane.xlu0 %3020
        %v3022 = vsel %vm2901, %v2983, 0.0
        %3023 = vadd.xlane.f32.xlu0 %v3022
        %v3024 = vpop.xlane.xlu0 %3023
        %v3025 = vsel %vm2901, %v2985, 0.0
        %3026 = vadd.xlane.f32.xlu0 %v3025
        %v3027 = vpop.xlane.xlu0 %3026
        %v3028 = vsel %vm2901, %v2987, 0.0
        %3029 = vadd.xlane.f32.xlu0 %v3028
        %v3030 = vpop.xlane.xlu0 %3029
        %v3031 = vsel %vm2901, %v2989, 0.0
        %3032 = vadd.xlane.f32.xlu0 %v3031
        %v3033 = vpop.xlane.xlu0 %3032
        %v3034 = vsel %vm2901, %v2991, 0.0
        %3035 = vadd.xlane.f32.xlu0 %v3034
        %v3036 = vpop.xlane.xlu0 %3035
        %v3037 = vsel %vm2901, %v2993, 0.0
        %3038 = vadd.xlane.f32.xlu0 %v3037
        %v3039 = vpop.xlane.xlu0 %3038
        %v3040 = vsel %vm2901, %v2995, 0.0
        %3041 = vadd.xlane.f32.xlu0 %v3040
        %v3042 = vpop.xlane.xlu0 %3041
        %v3043 = vsel %vm2901, %v2997, 0.0
        %3044 = vadd.xlane.f32.xlu0 %v3043
        %v3045 = vpop.xlane.xlu0 %3044
        %v3046 = vrcp.pop %v3000
        %v3047 = vrcp.pop %v3003
        %v3048 = vrcp.pop %v3006
        %v3049 = vrcp.pop %v3009
        %v3050 = vrcp.pop %v3012
        %v3051 = vrcp.pop %v3015
        %v3052 = vrcp.pop %v3018
        %v3053 = vrcp.pop %v3021
        %v3054 = vrcp.pop %v3024
        %v3055 = vrcp.pop %v3027
        %v3056 = vrcp.pop %v3030
        %v3057 = vrcp.pop %v3033
        %v3058 = vrcp.pop %v3036
        %v3059 = vrcp.pop %v3039
        %v3060 = vrcp.pop %v3042
        %v3061 = vrcp.pop %v3045
        %v3062 = vmul.f32 %v2967, %v3046
        %v3063 = vmul.f32 %v2969, %v3047
        %v3064 = vmul.f32 %v2971, %v3048
        %v3065 = vmul.f32 %v2973, %v3049
        %v3066 = vmul.f32 %v2975, %v3050
        %v3067 = vmul.f32 %v2977, %v3051
        %v3068 = vmul.f32 %v2979, %v3052
        %v3069 = vmul.f32 %v2981, %v3053
        %v3070 = vmul.f32 %v2983, %v3054
        %v3071 = vmul.f32 %v2985, %v3055
        %v3072 = vmul.f32 %v2987, %v3056
        %v3073 = vmul.f32 %v2989, %v3057
        %v3074 = vmul.f32 %v2991, %v3058
        %v3075 = vmul.f32 %v2993, %v3059
        %v3076 = vmul.f32 %v2995, %v3060
        %v3077 = vmul.f32 %v2997, %v3061
        %v3078 = vpack.c.bf16 %v3062, %v3062
        %v3079 = vpack.c.bf16 %v3063, %v3063
        %v3080 = vpack.c.bf16 %v3064, %v3064
        %v3081 = vpack.c.bf16 %v3065, %v3065
        %v3082 = vpack.c.bf16 %v3066, %v3066
        %v3083 = vpack.c.bf16 %v3067, %v3067
        %v3084 = vpack.c.bf16 %v3068, %v3068
        %v3085 = vpack.c.bf16 %v3069, %v3069
        %v3086 = vpack.c.bf16 %v3070, %v3070
        %v3087 = vpack.c.bf16 %v3071, %v3071
        %v3088 = vpack.c.bf16 %v3072, %v3072
        %v3089 = vpack.c.bf16 %v3073, %v3073
        %v3090 = vpack.c.bf16 %v3074, %v3074
        %v3091 = vpack.c.bf16 %v3075, %v3075
        %v3092 = vpack.c.bf16 %v3076, %v3076
        %v3093 = vpack.c.bf16 %v3077, %v3077
        %v3096 = vunpack.c.l.b16 %v3078
        %v3097 = vunpack.c.l.b16 %v3079
        %v3098 = vpack.c.b16 %v3097, %v3096
        %v3101 = vunpack.c.l.b16 %v2622
        %v3102 = vunpack.c.l.b16 %v2623
        %v3103 = vpack.c.b16 %v3102, %v3101
        %v3106 = vsel %vm2901, %v3098, 0
        %3108 = vmatpush.bf16.msra.mxu0 0
        %3109 = vmatpush.bf16.msra.mxu0 0
        %3110 = vmatpush.bf16.msra.mxu0 0
        %3111 = vmatpush.bf16.msra.mxu0 0
        %3112 = vmatpush.bf16.msra.mxu0 0
        %3113 = vmatpush.bf16.msra.mxu0 0
        %3114 = vmatpush.bf16.msra.mxu0 0
        %3115 = vmatpush.bf16.msra.mxu0 %v3103
        %3116 = vmatmul.bf16.gmra.mxu0 %v3106
        %v3117 = vpop.f32.mrf.mxu0
        %v3118 = vadd.f32 0.0, %v3117
        %v3119 = vpop.f32.mrf.mxu0
        %v3120 = vadd.f32 0.0, %v3119
        %3121 = vdwg.mxu0
        %v3124 = vunpack.c.l.b16 %v3080
        %v3125 = vunpack.c.l.b16 %v3081
        %v3126 = vpack.c.b16 %v3125, %v3124
        %v3129 = vunpack.c.l.b16 %v2624
        %v3130 = vunpack.c.l.b16 %v2625
        %v3131 = vpack.c.b16 %v3130, %v3129
        %v3134 = vsel %vm2901, %v3126, 0
        %3136 = vmatpush.bf16.msra.mxu0 0
        %3137 = vmatpush.bf16.msra.mxu0 0
        %3138 = vmatpush.bf16.msra.mxu0 0
        %3139 = vmatpush.bf16.msra.mxu0 0
        %3140 = vmatpush.bf16.msra.mxu0 0
        %3141 = vmatpush.bf16.msra.mxu0 0
        %3142 = vmatpush.bf16.msra.mxu0 0
        %3143 = vmatpush.bf16.msra.mxu0 %v3131
        %3144 = vmatmul.bf16.gmra.mxu0 %v3134
        %v3145 = vpop.f32.mrf.mxu0
        %v3146 = vadd.f32 0.0, %v3145
        %v3147 = vpop.f32.mrf.mxu0
        %v3148 = vadd.f32 0.0, %v3147
        %3149 = vdwg.mxu0
        %v3152 = vunpack.c.l.b16 %v3082
        %v3153 = vunpack.c.l.b16 %v3083
        %v3154 = vpack.c.b16 %v3153, %v3152
        %v3157 = vunpack.c.l.b16 %v2626
        %v3158 = vunpack.c.l.b16 %v2627
        %v3159 = vpack.c.b16 %v3158, %v3157
        %v3162 = vsel %vm2901, %v3154, 0
        %3164 = vmatpush.bf16.msra.mxu0 0
        %3165 = vmatpush.bf16.msra.mxu0 0
        %3166 = vmatpush.bf16.msra.mxu0 0
        %3167 = vmatpush.bf16.msra.mxu0 0
        %3168 = vmatpush.bf16.msra.mxu0 0
        %3169 = vmatpush.bf16.msra.mxu0 0
        %3170 = vmatpush.bf16.msra.mxu0 0
        %3171 = vmatpush.bf16.msra.mxu0 %v3159
        %3172 = vmatmul.bf16.gmra.mxu0 %v3162
        %v3173 = vpop.f32.mrf.mxu0
        %v3174 = vadd.f32 0.0, %v3173
        %v3175 = vpop.f32.mrf.mxu0
        %v3176 = vadd.f32 0.0, %v3175
        %3177 = vdwg.mxu0
        %v3180 = vunpack.c.l.b16 %v3084
        %v3181 = vunpack.c.l.b16 %v3085
        %v3182 = vpack.c.b16 %v3181, %v3180
        %v3185 = vunpack.c.l.b16 %v2628
        %v3186 = vunpack.c.l.b16 %v2629
        %v3187 = vpack.c.b16 %v3186, %v3185
        %v3190 = vsel %vm2901, %v3182, 0
        %3192 = vmatpush.bf16.msra.mxu0 0
        %3193 = vmatpush.bf16.msra.mxu0 0
        %3194 = vmatpush.bf16.msra.mxu0 0
        %3195 = vmatpush.bf16.msra.mxu0 0
        %3196 = vmatpush.bf16.msra.mxu0 0
        %3197 = vmatpush.bf16.msra.mxu0 0
        %3198 = vmatpush.bf16.msra.mxu0 0
        %3199 = vmatpush.bf16.msra.mxu0 %v3187
        %3200 = vmatmul.bf16.gmra.mxu0 %v3190
        %v3201 = vpop.f32.mrf.mxu0
        %v3202 = vadd.f32 0.0, %v3201
        %v3203 = vpop.f32.mrf.mxu0
        %v3204 = vadd.f32 0.0, %v3203
        %3205 = vdwg.mxu0
        %v3208 = vunpack.c.l.b16 %v3086
        %v3209 = vunpack.c.l.b16 %v3087
        %v3210 = vpack.c.b16 %v3209, %v3208
        %v3213 = vunpack.c.l.b16 %v2630
        %v3214 = vunpack.c.l.b16 %v2631
        %v3215 = vpack.c.b16 %v3214, %v3213
        %v3218 = vsel %vm2901, %v3210, 0
        %3220 = vmatpush.bf16.msra.mxu0 0
        %3221 = vmatpush.bf16.msra.mxu0 0
        %3222 = vmatpush.bf16.msra.mxu0 0
        %3223 = vmatpush.bf16.msra.mxu0 0
        %3224 = vmatpush.bf16.msra.mxu0 0
        %3225 = vmatpush.bf16.msra.mxu0 0
        %3226 = vmatpush.bf16.msra.mxu0 0
        %3227 = vmatpush.bf16.msra.mxu0 %v3215
        %3228 = vmatmul.bf16.gmra.mxu0 %v3218
        %v3229 = vpop.f32.mrf.mxu0
        %v3230 = vadd.f32 0.0, %v3229
        %v3231 = vpop.f32.mrf.mxu0
        %v3232 = vadd.f32 0.0, %v3231
        %3233 = vdwg.mxu0
        %v3236 = vunpack.c.l.b16 %v3088
        %v3237 = vunpack.c.l.b16 %v3089
        %v3238 = vpack.c.b16 %v3237, %v3236
        %v3241 = vunpack.c.l.b16 %v2632
        %v3242 = vunpack.c.l.b16 %v2633
        %v3243 = vpack.c.b16 %v3242, %v3241
        %v3246 = vsel %vm2901, %v3238, 0
        %3248 = vmatpush.bf16.msra.mxu0 0
        %3249 = vmatpush.bf16.msra.mxu0 0
        %3250 = vmatpush.bf16.msra.mxu0 0
        %3251 = vmatpush.bf16.msra.mxu0 0
        %3252 = vmatpush.bf16.msra.mxu0 0
        %3253 = vmatpush.bf16.msra.mxu0 0
        %3254 = vmatpush.bf16.msra.mxu0 0
        %3255 = vmatpush.bf16.msra.mxu0 %v3243
        %3256 = vmatmul.bf16.gmra.mxu0 %v3246
        %v3257 = vpop.f32.mrf.mxu0
        %v3258 = vadd.f32 0.0, %v3257
        %v3259 = vpop.f32.mrf.mxu0
        %v3260 = vadd.f32 0.0, %v3259
        %3261 = vdwg.mxu0
        %v3264 = vunpack.c.l.b16 %v3090
        %v3265 = vunpack.c.l.b16 %v3091
        %v3266 = vpack.c.b16 %v3265, %v3264
        %v3269 = vunpack.c.l.b16 %v2634
        %v3270 = vunpack.c.l.b16 %v2635
        %v3271 = vpack.c.b16 %v3270, %v3269
        %v3274 = vsel %vm2901, %v3266, 0
        %3276 = vmatpush.bf16.msra.mxu0 0
        %3277 = vmatpush.bf16.msra.mxu0 0
        %3278 = vmatpush.bf16.msra.mxu0 0
        %3279 = vmatpush.bf16.msra.mxu0 0
        %3280 = vmatpush.bf16.msra.mxu0 0
        %3281 = vmatpush.bf16.msra.mxu0 0
        %3282 = vmatpush.bf16.msra.mxu0 0
        %3283 = vmatpush.bf16.msra.mxu0 %v3271
        %3284 = vmatmul.bf16.gmra.mxu0 %v3274
        %v3285 = vpop.f32.mrf.mxu0
        %v3286 = vadd.f32 0.0, %v3285
        %v3287 = vpop.f32.mrf.mxu0
        %v3288 = vadd.f32 0.0, %v3287
        %3289 = vdwg.mxu0
        %v3292 = vunpack.c.l.b16 %v3092
        %v3293 = vunpack.c.l.b16 %v3093
        %v3294 = vpack.c.b16 %v3293, %v3292
        %v3297 = vunpack.c.l.b16 %v2636
        %v3298 = vunpack.c.l.b16 %v2637
        %v3299 = vpack.c.b16 %v3298, %v3297
        %v3302 = vsel %vm2901, %v3294, 0
        %3304 = vmatpush.bf16.msra.mxu0 0
        %3305 = vmatpush.bf16.msra.mxu0 0
        %3306 = vmatpush.bf16.msra.mxu0 0
        %3307 = vmatpush.bf16.msra.mxu0 0
        %3308 = vmatpush.bf16.msra.mxu0 0
        %3309 = vmatpush.bf16.msra.mxu0 0
        %3310 = vmatpush.bf16.msra.mxu0 0
        %3311 = vmatpush.bf16.msra.mxu0 %v3299
        %3312 = vmatmul.bf16.gmra.mxu0 %v3302
        %v3313 = vpop.f32.mrf.mxu0
        %v3314 = vadd.f32 0.0, %v3313
        %v3315 = vpop.f32.mrf.mxu0
        %v3316 = vadd.f32 0.0, %v3315
        %3317 = vdwg.mxu0
        %v3318 = vpack.c.bf16 %v3118, %v3118
        %v3319 = vpack.c.bf16 %v3120, %v3120
        %v3320 = vpack.c.bf16 %v3146, %v3146
        %v3321 = vpack.c.bf16 %v3148, %v3148
        %v3322 = vpack.c.bf16 %v3174, %v3174
        %v3323 = vpack.c.bf16 %v3176, %v3176
        %v3324 = vpack.c.bf16 %v3202, %v3202
        %v3325 = vpack.c.bf16 %v3204, %v3204
        %v3326 = vpack.c.bf16 %v3230, %v3230
        %v3327 = vpack.c.bf16 %v3232, %v3232
        %v3328 = vpack.c.bf16 %v3258, %v3258
        %v3329 = vpack.c.bf16 %v3260, %v3260
        %v3330 = vpack.c.bf16 %v3286, %v3286
        %v3331 = vpack.c.bf16 %v3288, %v3288
        %v3332 = vpack.c.bf16 %v3314, %v3314
        %v3333 = vpack.c.bf16 %v3316, %v3316
        %v3334 = vld [vmem:[%s640] sm:$0xf]
        %v3335 = vld [vmem:[%s640 + $0x4] sm:$0xf]
        %v3336 = vld [vmem:[%s640 + $0x8] sm:$0xf]
        %v3337 = vld [vmem:[%s640 + $0xc] sm:$0xf]
        %v3338 = vld [vmem:[%s640 + $0x10] sm:$0xf]
        %v3339 = vld [vmem:[%s640 + $0x14] sm:$0xf]
        %v3340 = vld [vmem:[%s640 + $0x18] sm:$0xf]
        %v3341 = vld [vmem:[%s640 + $0x1c] sm:$0xf]
        %v3342 = vld [vmem:[%s640 + $0x20] sm:$0xf]
        %v3343 = vld [vmem:[%s640 + $0x24] sm:$0xf]
        %v3344 = vld [vmem:[%s640 + $0x28] sm:$0xf]
        %v3345 = vld [vmem:[%s640 + $0x2c] sm:$0xf]
        %v3346 = vld [vmem:[%s640 + $0x30] sm:$0xf]
        %v3347 = vld [vmem:[%s640 + $0x34] sm:$0xf]
        %v3348 = vld [vmem:[%s640 + $0x38] sm:$0xf]
        %v3349 = vld [vmem:[%s640 + $0x3c] sm:$0xf]
        %v3354 = vunpack.c.l.b16 %v3322
        %v3355 = vunpack.c.l.b16 %v3323
        %v3356 = vunpack.c.l.b16 %v3324
        %v3357 = vunpack.c.l.b16 %v3325
        %v3358 = vpack.c.b16 %v3355, %v3354
        %v3359 = vpack.c.b16 %v3357, %v3356
        %v3364 = vunpack.c.l.b16 %v3338
        %v3365 = vunpack.c.l.b16 %v3339
        %v3366 = vunpack.c.l.b16 %v3340
        %v3367 = vunpack.c.l.b16 %v3341
        %v3368 = vpack.c.b16 %v3365, %v3364
        %v3369 = vpack.c.b16 %v3367, %v3366
        %v3373 = vsel %vm2648, %v3358, 0
        %v3376 = vsel %vm2648, %v3359, 0
        %3378 = vmatpush.bf16.msra.mxu0 0
        %3379 = vmatpush.bf16.msra.mxu0 0
        %3380 = vmatpush.bf16.msra.mxu0 0
        %3381 = vmatpush.bf16.msra.mxu0 0
        %3382 = vmatpush.bf16.msra.mxu0 0
        %3383 = vmatpush.bf16.msra.mxu0 0
        %3384 = vmatpush.bf16.msra.mxu0 %v3369
        %3385 = vmatpush.bf16.msra.mxu0 %v3368
        %3386 = vmatmul.bf16.gmra.mxu0 %v3373
        %v3387 = vpop.f32.mrf.mxu0
        %v3388 = vadd.f32 0.0, %v3387
        %v3389 = vpop.f32.mrf.mxu0
        %v3390 = vadd.f32 0.0, %v3389
        %3391 = vmatmul.bf16.gmra.mxu0 %v3376
        %v3392 = vpop.f32.mrf.mxu0
        %v3393 = vadd.f32 0.0, %v3392
        %v3394 = vpop.f32.mrf.mxu0
        %v3395 = vadd.f32 0.0, %v3394
        %3396 = vdwg.mxu0
        %v3401 = vunpack.c.l.b16 %v3318
        %v3402 = vunpack.c.l.b16 %v3319
        %v3403 = vunpack.c.l.b16 %v3320
        %v3404 = vunpack.c.l.b16 %v3321
        %v3405 = vpack.c.b16 %v3402, %v3401
        %v3406 = vpack.c.b16 %v3404, %v3403
        %v3411 = vunpack.c.l.b16 %v3334
        %v3412 = vunpack.c.l.b16 %v3335
        %v3413 = vunpack.c.l.b16 %v3336
        %v3414 = vunpack.c.l.b16 %v3337
        %v3415 = vpack.c.b16 %v3412, %v3411
        %v3416 = vpack.c.b16 %v3414, %v3413
        %v3420 = vsel %vm2648, %v3405, 0
        %v3423 = vsel %vm2648, %v3406, 0
        %3425 = vmatpush.bf16.msra.mxu0 0
        %3426 = vmatpush.bf16.msra.mxu0 0
        %3427 = vmatpush.bf16.msra.mxu0 0
        %3428 = vmatpush.bf16.msra.mxu0 0
        %3429 = vmatpush.bf16.msra.mxu0 0
        %3430 = vmatpush.bf16.msra.mxu0 0
        %3431 = vmatpush.bf16.msra.mxu0 %v3416
        %3432 = vmatpush.bf16.msra.mxu0 %v3415
        %3433 = vmatmul.bf16.gmra.mxu0 %v3420
        %v3434 = vpop.f32.mrf.mxu0
        %v3435 = vadd.f32 %v3388, %v3434
        %v3436 = vpop.f32.mrf.mxu0
        %v3437 = vadd.f32 %v3390, %v3436
        %3438 = vmatmul.bf16.gmra.mxu0 %v3423
        %v3439 = vpop.f32.mrf.mxu0
        %v3440 = vadd.f32 %v3393, %v3439
        %v3441 = vpop.f32.mrf.mxu0
        %v3442 = vadd.f32 %v3395, %v3441
        %3443 = vdwg.mxu0
        %v3448 = vunpack.c.l.b16 %v3326
        %v3449 = vunpack.c.l.b16 %v3327
        %v3450 = vunpack.c.l.b16 %v3328
        %v3451 = vunpack.c.l.b16 %v3329
        %v3452 = vpack.c.b16 %v3449, %v3448
        %v3453 = vpack.c.b16 %v3451, %v3450
        %v3458 = vunpack.c.l.b16 %v3342
        %v3459 = vunpack.c.l.b16 %v3343
        %v3460 = vunpack.c.l.b16 %v3344
        %v3461 = vunpack.c.l.b16 %v3345
        %v3462 = vpack.c.b16 %v3459, %v3458
        %v3463 = vpack.c.b16 %v3461, %v3460
        %v3467 = vsel %vm2648, %v3452, 0
        %v3470 = vsel %vm2648, %v3453, 0
        %3472 = vmatpush.bf16.msra.mxu0 0
        %3473 = vmatpush.bf16.msra.mxu0 0
        %3474 = vmatpush.bf16.msra.mxu0 0
        %3475 = vmatpush.bf16.msra.mxu0 0
        %3476 = vmatpush.bf16.msra.mxu0 0
        %3477 = vmatpush.bf16.msra.mxu0 0
        %3478 = vmatpush.bf16.msra.mxu0 %v3463
        %3479 = vmatpush.bf16.msra.mxu0 %v3462
        %3480 = vmatmul.bf16.gmra.mxu0 %v3467
        %v3481 = vpop.f32.mrf.mxu0
        %v3482 = vadd.f32 0.0, %v3481
        %v3483 = vpop.f32.mrf.mxu0
        %v3484 = vadd.f32 0.0, %v3483
        %3485 = vmatmul.bf16.gmra.mxu0 %v3470
        %v3486 = vpop.f32.mrf.mxu0
        %v3487 = vadd.f32 0.0, %v3486
        %v3488 = vpop.f32.mrf.mxu0
        %v3489 = vadd.f32 0.0, %v3488
        %3490 = vdwg.mxu0
        %v3491 = vadd.f32 %v3435, %v3482
        %v3492 = vadd.f32 %v3437, %v3484
        %v3493 = vadd.f32 %v3440, %v3487
        %v3494 = vadd.f32 %v3442, %v3489
        %v3499 = vunpack.c.l.b16 %v3330
        %v3500 = vunpack.c.l.b16 %v3331
        %v3501 = vunpack.c.l.b16 %v3332
        %v3502 = vunpack.c.l.b16 %v3333
        %v3503 = vpack.c.b16 %v3500, %v3499
        %v3504 = vpack.c.b16 %v3502, %v3501
        %v3509 = vunpack.c.l.b16 %v3346
        %v3510 = vunpack.c.l.b16 %v3347
        %v3511 = vunpack.c.l.b16 %v3348
        %v3512 = vunpack.c.l.b16 %v3349
        %v3513 = vpack.c.b16 %v3510, %v3509
        %v3514 = vpack.c.b16 %v3512, %v3511
        %v3518 = vsel %vm2648, %v3503, 0
        %v3521 = vsel %vm2648, %v3504, 0
        %3523 = vmatpush.bf16.msra.mxu0 0
        %3524 = vmatpush.bf16.msra.mxu0 0
        %3525 = vmatpush.bf16.msra.mxu0 0
        %3526 = vmatpush.bf16.msra.mxu0 0
        %3527 = vmatpush.bf16.msra.mxu0 0
        %3528 = vmatpush.bf16.msra.mxu0 0
        %3529 = vmatpush.bf16.msra.mxu0 %v3514
        %3530 = vmatpush.bf16.msra.mxu0 %v3513
        %3531 = vmatmul.bf16.gmra.mxu0 %v3518
        %v3532 = vpop.f32.mrf.mxu0
        %v3533 = vadd.f32 0.0, %v3532
        %v3534 = vpop.f32.mrf.mxu0
        %v3535 = vadd.f32 0.0, %v3534
        %3536 = vmatmul.bf16.gmra.mxu0 %v3521
        %v3537 = vpop.f32.mrf.mxu0
        %v3538 = vadd.f32 0.0, %v3537
        %v3539 = vpop.f32.mrf.mxu0
        %v3540 = vadd.f32 0.0, %v3539
        %3541 = vdwg.mxu0
        %v3542 = vadd.f32 %v3491, %v3533
        %v3543 = vadd.f32 %v3492, %v3535
        %v3544 = vadd.f32 %v3493, %v3538
        %v3545 = vadd.f32 %v3494, %v3540
        %v3546 = vadd.f32 %v910, %v3542
        %v3547 = vadd.f32 %v911, %v3543
        %v3548 = vadd.f32 %v912, %v3544
        %v3549 = vadd.f32 %v913, %v3545
        %v3550 = vld [vmem:[%s649] sm:$0x1]
        %v3552 = vperm.slane %v3550, 0
        %v3554 = vadd.f32 %v3546, %v3552
        %v3555 = vadd.f32 %v3547, %v3552
        %v3556 = vadd.f32 %v3548, %v3552
        %v3557 = vadd.f32 %v3549, %v3552
        %v3558 = vld [vmem:[%s658] sm:$0x1]
        %v3559 = vmul.f32 %v3554, %v3554
        %v3560 = vmul.f32 %v3555, %v3555
        %v3561 = vmul.f32 %v3556, %v3556
        %v3562 = vmul.f32 %v3557, %v3557
        %3563 = vadd.xlane.f32.xlu0 %v3559
        %v3564 = vpop.xlane.xlu0 %3563
        %3565 = vadd.xlane.f32.xlu0 %v3560
        %v3566 = vpop.xlane.xlu0 %3565
        %3567 = vadd.xlane.f32.xlu0 %v3561
        %v3568 = vpop.xlane.xlu0 %3567
        %3569 = vadd.xlane.f32.xlu0 %v3562
        %v3570 = vpop.xlane.xlu0 %3569
        %v3571 = vrsqrt.pop %v3564
        %v3572 = vmul.f32 %v3571, %v3564
        %v3573 = vmul.f32 %v3572, %v3571
        %v3574 = vmul.f32 0.5, %v3573
        %v3575 = vsub.f32 1.5, %v3574
        %v3576 = vmul.f32 %v3571, %v3575
        %v3577 = vmul.f32 %v3564, %v3576
        %vm3578 = vcmp.eq.f32.partialorder %v3564, inf
        %v3579 = vsel %vm3578, %v3564, %v3577
        %vm3580 = vcmp.eq.f32.partialorder %v3564, 0.0
        %v3581 = vand.u32 %v3564, 2147483648
        %v3582 = vsel %vm3580, %v3581, %v3579
        %v3583 = vrsqrt.pop %v3566
        %v3584 = vmul.f32 %v3583, %v3566
        %v3585 = vmul.f32 %v3584, %v3583
        %v3586 = vmul.f32 0.5, %v3585
        %v3587 = vsub.f32 1.5, %v3586
        %v3588 = vmul.f32 %v3583, %v3587
        %v3589 = vmul.f32 %v3566, %v3588
        %vm3590 = vcmp.eq.f32.partialorder %v3566, inf
        %v3591 = vsel %vm3590, %v3566, %v3589
        %vm3592 = vcmp.eq.f32.partialorder %v3566, 0.0
        %v3593 = vand.u32 %v3566, 2147483648
        %v3594 = vsel %vm3592, %v3593, %v3591
        %v3595 = vrsqrt.pop %v3568
        %v3596 = vmul.f32 %v3595, %v3568
        %v3597 = vmul.f32 %v3596, %v3595
        %v3598 = vmul.f32 0.5, %v3597
        %v3599 = vsub.f32 1.5, %v3598
        %v3600 = vmul.f32 %v3595, %v3599
        %v3601 = vmul.f32 %v3568, %v3600
        %vm3602 = vcmp.eq.f32.partialorder %v3568, inf
        %v3603 = vsel %vm3602, %v3568, %v3601
        %vm3604 = vcmp.eq.f32.partialorder %v3568, 0.0
        %v3605 = vand.u32 %v3568, 2147483648
        %v3606 = vsel %vm3604, %v3605, %v3603
        %v3607 = vrsqrt.pop %v3570
        %v3608 = vmul.f32 %v3607, %v3570
        %v3609 = vmul.f32 %v3608, %v3607
        %v3610 = vmul.f32 0.5, %v3609
        %v3611 = vsub.f32 1.5, %v3610
        %v3612 = vmul.f32 %v3607, %v3611
        %v3613 = vmul.f32 %v3570, %v3612
        %vm3614 = vcmp.eq.f32.partialorder %v3570, inf
        %v3615 = vsel %vm3614, %v3570, %v3613
        %vm3616 = vcmp.eq.f32.partialorder %v3570, 0.0
        %v3617 = vand.u32 %v3570, 2147483648
        %v3618 = vsel %vm3616, %v3617, %v3615
        %v3619 = vmul.f32 %v3582, 0.088388346
        %v3620 = vmul.f32 %v3594, 0.088388346
        %v3621 = vmul.f32 %v3606, 0.088388346
        %v3622 = vmul.f32 %v3618, 0.088388346
        %v3623 = vadd.f32 %v3619, 1e-08
        %v3624 = vadd.f32 %v3620, 1e-08
        %v3625 = vadd.f32 %v3621, 1e-08
        %v3626 = vadd.f32 %v3622, 1e-08
        %v3627 = vrcp.pop %v3623
        %v3628 = vmul.f32 %v3623, %v3627
        %v3629 = vsub.f32 1.0, %v3628
        %v3630 = vmul.f32 %v3627, %v3629
        %v3631 = vadd.f32 %v3627, %v3630
        %vm3632 = vweird.f32 %v3623
        %vm3633 = vweird.f32 %v3627
        %vm3634 = vmor %vm3632, %vm3633
        %v3635 = vsel %vm3634, %v3627, %v3631
        %v3636 = vand.u32 2147483647, %v3623
        %vm3637 = vcmp.eq.f32.partialorder %v3636, 8.507059e+37
        %v3638 = vand.u32 %v3623, 2147483648
        %v3639 = vor.u32 1.1754944e-38, %v3638
        %v3640 = vsel %vm3637, %v3639, %v3635
        %v3641 = vmul.f32 %v3554, %v3640
        %v3642 = vrcp.pop %v3624
        %v3643 = vmul.f32 %v3624, %v3642
        %v3644 = vsub.f32 1.0, %v3643
        %v3645 = vmul.f32 %v3642, %v3644
        %v3646 = vadd.f32 %v3642, %v3645
        %vm3647 = vweird.f32 %v3624
        %vm3648 = vweird.f32 %v3642
        %vm3649 = vmor %vm3647, %vm3648
        %v3650 = vsel %vm3649, %v3642, %v3646
        %v3651 = vand.u32 2147483647, %v3624
        %vm3652 = vcmp.eq.f32.partialorder %v3651, 8.507059e+37
        %v3653 = vand.u32 %v3624, 2147483648
        %v3654 = vor.u32 1.1754944e-38, %v3653
        %v3655 = vsel %vm3652, %v3654, %v3650
        %v3656 = vmul.f32 %v3555, %v3655
        %v3657 = vrcp.pop %v3625
        %v3658 = vmul.f32 %v3625, %v3657
        %v3659 = vsub.f32 1.0, %v3658
        %v3660 = vmul.f32 %v3657, %v3659
        %v3661 = vadd.f32 %v3657, %v3660
        %vm3662 = vweird.f32 %v3625
        %vm3663 = vweird.f32 %v3657
        %vm3664 = vmor %vm3662, %vm3663
        %v3665 = vsel %vm3664, %v3657, %v3661
        %v3666 = vand.u32 2147483647, %v3625
        %vm3667 = vcmp.eq.f32.partialorder %v3666, 8.507059e+37
        %v3668 = vand.u32 %v3625, 2147483648
        %v3669 = vor.u32 1.1754944e-38, %v3668
        %v3670 = vsel %vm3667, %v3669, %v3665
        %v3671 = vmul.f32 %v3556, %v3670
        %v3672 = vrcp.pop %v3626
        %v3673 = vmul.f32 %v3626, %v3672
        %v3674 = vsub.f32 1.0, %v3673
        %v3675 = vmul.f32 %v3672, %v3674
        %v3676 = vadd.f32 %v3672, %v3675
        %vm3677 = vweird.f32 %v3626
        %vm3678 = vweird.f32 %v3672
        %vm3679 = vmor %vm3677, %vm3678
        %v3680 = vsel %vm3679, %v3672, %v3676
        %v3681 = vand.u32 2147483647, %v3626
        %vm3682 = vcmp.eq.f32.partialorder %v3681, 8.507059e+37
        %v3683 = vand.u32 %v3626, 2147483648
        %v3684 = vor.u32 1.1754944e-38, %v3683
        %v3685 = vsel %vm3682, %v3684, %v3680
        %v3686 = vmul.f32 %v3557, %v3685
        %v3688 = vperm.slane %v3558, 0
        %v3690 = vmul.f32 %v3688, %v3641
        %v3691 = vmul.f32 %v3688, %v3656
        %v3692 = vmul.f32 %v3688, %v3671
        %v3693 = vmul.f32 %v3688, %v3686
        %v3694 = vpack.c.bf16 %v3691, %v3690
        %v3695 = vpack.c.bf16 %v3693, %v3692
        %v3696 = vld [vmem:[%s668] sm:$0xff]
        %v3697 = vld [vmem:[%s668 + $0x8] sm:$0xff]
        %v3698 = vld [vmem:[%s668 + $0x10] sm:$0xff]
        %v3699 = vld [vmem:[%s668 + $0x18] sm:$0xff]
        %v3700 = vld [vmem:[%s668 + $0x20] sm:$0xff]
        %v3701 = vld [vmem:[%s668 + $0x28] sm:$0xff]
        %v3702 = vld [vmem:[%s668 + $0x30] sm:$0xff]
        %v3703 = vld [vmem:[%s668 + $0x38] sm:$0xff]
        %v3704 = vld [vmem:[%s668 + $0x40] sm:$0xff]
        %v3705 = vld [vmem:[%s668 + $0x48] sm:$0xff]
        %v3706 = vld [vmem:[%s668 + $0x50] sm:$0xff]
        %v3707 = vld [vmem:[%s668 + $0x58] sm:$0xff]
        %v3708 = vld [vmem:[%s668 + $0x60] sm:$0xff]
        %v3709 = vld [vmem:[%s668 + $0x68] sm:$0xff]
        %v3710 = vld [vmem:[%s668 + $0x70] sm:$0xff]
        %v3711 = vld [vmem:[%s668 + $0x78] sm:$0xff]
        %v3712 = vld [vmem:[%s668 + $0x80] sm:$0xff]
        %v3713 = vld [vmem:[%s668 + $0x88] sm:$0xff]
        %v3714 = vld [vmem:[%s668 + $0x90] sm:$0xff]
        %v3715 = vld [vmem:[%s668 + $0x98] sm:$0xff]
        %v3716 = vld [vmem:[%s668 + $0xa0] sm:$0xff]
        %v3717 = vld [vmem:[%s668 + $0xa8] sm:$0xff]
        %v3718 = vld [vmem:[%s668 + $0xb0] sm:$0xff]
        %v3719 = vld [vmem:[%s668 + $0xb8] sm:$0xff]
        %v3720 = vld [vmem:[%s668 + $0xc0] sm:$0xff]
        %v3721 = vld [vmem:[%s668 + $0xc8] sm:$0xff]
        %v3722 = vld [vmem:[%s668 + $0xd0] sm:$0xff]
        %v3723 = vld [vmem:[%s668 + $0xd8] sm:$0xff]
        %v3724 = vld [vmem:[%s668 + $0xe0] sm:$0xff]
        %v3725 = vld [vmem:[%s668 + $0xe8] sm:$0xff]
        %v3726 = vld [vmem:[%s668 + $0xf0] sm:$0xff]
        %v3727 = vld [vmem:[%s668 + $0xf8] sm:$0xff]
        %v3728 = vld [vmem:[%s754] sm:$0xf]
        %v3730 = vperm.slane %v3728, 0
        %v3731 = vperm.slane %v3728, 1
        %v3732 = vperm.slane %v3728, 2
        %v3733 = vperm.slane %v3728, 3
        %v3770 = vunpack.c.l.b16 %v3696
        %v3771 = vunpack.c.h.b16 %v3696
        %v3772 = vunpack.c.l.b16 %v3697
        %v3773 = vunpack.c.h.b16 %v3697
        %v3774 = vunpack.c.l.b16 %v3698
        %v3775 = vunpack.c.h.b16 %v3698
        %v3776 = vunpack.c.l.b16 %v3699
        %v3777 = vunpack.c.h.b16 %v3699
        %v3778 = vunpack.c.l.b16 %v3700
        %v3779 = vunpack.c.h.b16 %v3700
        %v3780 = vunpack.c.l.b16 %v3701
        %v3781 = vunpack.c.h.b16 %v3701
        %v3782 = vunpack.c.l.b16 %v3702
        %v3783 = vunpack.c.h.b16 %v3702
        %v3784 = vunpack.c.l.b16 %v3703
        %v3785 = vunpack.c.h.b16 %v3703
        %v3786 = vunpack.c.l.b16 %v3704
        %v3787 = vunpack.c.h.b16 %v3704
        %v3788 = vunpack.c.l.b16 %v3705
        %v3789 = vunpack.c.h.b16 %v3705
        %v3790 = vunpack.c.l.b16 %v3706
        %v3791 = vunpack.c.h.b16 %v3706
        %v3792 = vunpack.c.l.b16 %v3707
        %v3793 = vunpack.c.h.b16 %v3707
        %v3794 = vunpack.c.l.b16 %v3708
        %v3795 = vunpack.c.h.b16 %v3708
        %v3796 = vunpack.c.l.b16 %v3709
        %v3797 = vunpack.c.h.b16 %v3709
        %v3798 = vunpack.c.l.b16 %v3710
        %v3799 = vunpack.c.h.b16 %v3710
        %v3800 = vunpack.c.l.b16 %v3711
        %v3801 = vunpack.c.h.b16 %v3711
        %v3802 = vunpack.c.l.b16 %v3712
        %v3803 = vunpack.c.h.b16 %v3712
        %v3804 = vunpack.c.l.b16 %v3713
        %v3805 = vunpack.c.h.b16 %v3713
        %v3806 = vunpack.c.l.b16 %v3714
        %v3807 = vunpack.c.h.b16 %v3714
        %v3808 = vunpack.c.l.b16 %v3715
        %v3809 = vunpack.c.h.b16 %v3715
        %v3810 = vunpack.c.l.b16 %v3716
        %v3811 = vunpack.c.h.b16 %v3716
        %v3812 = vunpack.c.l.b16 %v3717
        %v3813 = vunpack.c.h.b16 %v3717
        %v3814 = vunpack.c.l.b16 %v3718
        %v3815 = vunpack.c.h.b16 %v3718
        %v3816 = vunpack.c.l.b16 %v3719
        %v3817 = vunpack.c.h.b16 %v3719
        %v3818 = vunpack.c.l.b16 %v3720
        %v3819 = vunpack.c.h.b16 %v3720
        %v3820 = vunpack.c.l.b16 %v3721
        %v3821 = vunpack.c.h.b16 %v3721
        %v3822 = vunpack.c.l.b16 %v3722
        %v3823 = vunpack.c.h.b16 %v3722
        %v3824 = vunpack.c.l.b16 %v3723
        %v3825 = vunpack.c.h.b16 %v3723
        %v3826 = vunpack.c.l.b16 %v3724
        %v3827 = vunpack.c.h.b16 %v3724
        %v3828 = vunpack.c.l.b16 %v3725
        %v3829 = vunpack.c.h.b16 %v3725
        %v3830 = vunpack.c.l.b16 %v3726
        %v3831 = vunpack.c.h.b16 %v3726
        %v3832 = vunpack.c.l.b16 %v3727
        %v3833 = vunpack.c.h.b16 %v3727
        %v3834 = vpack.c.b16 %v3774, %v3770
        %v3835 = vpack.c.b16 %v3775, %v3771
        %v3836 = vpack.c.b16 %v3776, %v3772
        %v3837 = vpack.c.b16 %v3777, %v3773
        %v3838 = vpack.c.b16 %v3782, %v3778
        %v3839 = vpack.c.b16 %v3783, %v3779
        %v3840 = vpack.c.b16 %v3784, %v3780
        %v3841 = vpack.c.b16 %v3785, %v3781
        %v3842 = vpack.c.b16 %v3790, %v3786
        %v3843 = vpack.c.b16 %v3791, %v3787
        %v3844 = vpack.c.b16 %v3792, %v3788
        %v3845 = vpack.c.b16 %v3793, %v3789
        %v3846 = vpack.c.b16 %v3798, %v3794
        %v3847 = vpack.c.b16 %v3799, %v3795
        %v3848 = vpack.c.b16 %v3800, %v3796
        %v3849 = vpack.c.b16 %v3801, %v3797
        %v3850 = vpack.c.b16 %v3806, %v3802
        %v3851 = vpack.c.b16 %v3807, %v3803
        %v3852 = vpack.c.b16 %v3808, %v3804
        %v3853 = vpack.c.b16 %v3809, %v3805
        %v3854 = vpack.c.b16 %v3814, %v3810
        %v3855 = vpack.c.b16 %v3815, %v3811
        %v3856 = vpack.c.b16 %v3816, %v3812
        %v3857 = vpack.c.b16 %v3817, %v3813
        %v3858 = vpack.c.b16 %v3822, %v3818
        %v3859 = vpack.c.b16 %v3823, %v3819
        %v3860 = vpack.c.b16 %v3824, %v3820
        %v3861 = vpack.c.b16 %v3825, %v3821
        %v3862 = vpack.c.b16 %v3830, %v3826
        %v3863 = vpack.c.b16 %v3831, %v3827
        %v3864 = vpack.c.b16 %v3832, %v3828
        %v3865 = vpack.c.b16 %v3833, %v3829
        %3898 = vmatpush.bf16.msra.mxu0 %v3862
        %3899 = vmatpush.bf16.msra.mxu0 %v3858
        %3900 = vmatpush.bf16.msra.mxu0 %v3854
        %3901 = vmatpush.bf16.msra.mxu0 %v3850
        %3902 = vmatpush.bf16.msra.mxu0 %v3846
        %3903 = vmatpush.bf16.msra.mxu0 %v3842
        %3904 = vmatpush.bf16.msra.mxu0 %v3838
        %3905 = vmatpush.bf16.msra.mxu0 %v3834
        %3906 = vmatmul.bf16.gmra.mxu0 %v3694
        %v3907 = vpop.f32.mrf.mxu0
        %v3908 = vadd.f32 %v3730, %v3907
        %v3909 = vpop.f32.mrf.mxu0
        %v3910 = vadd.f32 %v3730, %v3909
        %3911 = vmatmul.bf16.gmra.mxu0 %v3695
        %v3912 = vpop.f32.mrf.mxu0
        %v3913 = vadd.f32 %v3730, %v3912
        %v3914 = vpop.f32.mrf.mxu0
        %v3915 = vadd.f32 %v3730, %v3914
        %3916 = vdwg.mxu0
        %3917 = vmatpush.bf16.msra.mxu0 %v3863
        %3918 = vmatpush.bf16.msra.mxu0 %v3859
        %3919 = vmatpush.bf16.msra.mxu0 %v3855
        %3920 = vmatpush.bf16.msra.mxu0 %v3851
        %3921 = vmatpush.bf16.msra.mxu0 %v3847
        %3922 = vmatpush.bf16.msra.mxu0 %v3843
        %3923 = vmatpush.bf16.msra.mxu0 %v3839
        %3924 = vmatpush.bf16.msra.mxu0 %v3835
        %3925 = vmatmul.bf16.gmra.mxu0 %v3694
        %v3926 = vpop.f32.mrf.mxu0
        %v3927 = vadd.f32 %v3731, %v3926
        %v3928 = vpop.f32.mrf.mxu0
        %v3929 = vadd.f32 %v3731, %v3928
        %3930 = vmatmul.bf16.gmra.mxu0 %v3695
        %v3931 = vpop.f32.mrf.mxu0
        %v3932 = vadd.f32 %v3731, %v3931
        %v3933 = vpop.f32.mrf.mxu0
        %v3934 = vadd.f32 %v3731, %v3933
        %3935 = vdwg.mxu0
        %3936 = vmatpush.bf16.msra.mxu0 %v3864
        %3937 = vmatpush.bf16.msra.mxu0 %v3860
        %3938 = vmatpush.bf16.msra.mxu0 %v3856
        %3939 = vmatpush.bf16.msra.mxu0 %v3852
        %3940 = vmatpush.bf16.msra.mxu0 %v3848
        %3941 = vmatpush.bf16.msra.mxu0 %v3844
        %3942 = vmatpush.bf16.msra.mxu0 %v3840
        %3943 = vmatpush.bf16.msra.mxu0 %v3836
        %3944 = vmatmul.bf16.gmra.mxu0 %v3694
        %v3945 = vpop.f32.mrf.mxu0
        %v3946 = vadd.f32 %v3732, %v3945
        %v3947 = vpop.f32.mrf.mxu0
        %v3948 = vadd.f32 %v3732, %v3947
        %3949 = vmatmul.bf16.gmra.mxu0 %v3695
        %v3950 = vpop.f32.mrf.mxu0
        %v3951 = vadd.f32 %v3732, %v3950
        %v3952 = vpop.f32.mrf.mxu0
        %v3953 = vadd.f32 %v3732, %v3952
        %3954 = vdwg.mxu0
        %3955 = vmatpush.bf16.msra.mxu0 %v3865
        %3956 = vmatpush.bf16.msra.mxu0 %v3861
        %3957 = vmatpush.bf16.msra.mxu0 %v3857
        %3958 = vmatpush.bf16.msra.mxu0 %v3853
        %3959 = vmatpush.bf16.msra.mxu0 %v3849
        %3960 = vmatpush.bf16.msra.mxu0 %v3845
        %3961 = vmatpush.bf16.msra.mxu0 %v3841
        %3962 = vmatpush.bf16.msra.mxu0 %v3837
        %3963 = vmatmul.bf16.gmra.mxu0 %v3694
        %v3964 = vpop.f32.mrf.mxu0
        %v3965 = vadd.f32 %v3733, %v3964
        %v3966 = vpop.f32.mrf.mxu0
        %v3967 = vadd.f32 %v3733, %v3966
        %3968 = vmatmul.bf16.gmra.mxu0 %v3695
        %v3969 = vpop.f32.mrf.mxu0
        %v3970 = vadd.f32 %v3733, %v3969
        %v3971 = vpop.f32.mrf.mxu0
        %v3972 = vadd.f32 %v3733, %v3971
        %3973 = vdwg.mxu0
        %v3974 = vmul.f32 %v3908, 0.5
        %v3975 = vmul.f32 %v3927, 0.5
        %v3976 = vmul.f32 %v3946, 0.5
        %v3977 = vmul.f32 %v3965, 0.5
        %v3978 = vmul.f32 %v3910, 0.5
        %v3979 = vmul.f32 %v3929, 0.5
        %v3980 = vmul.f32 %v3948, 0.5
        %v3981 = vmul.f32 %v3967, 0.5
        %v3982 = vmul.f32 %v3913, 0.5
        %v3983 = vmul.f32 %v3932, 0.5
        %v3984 = vmul.f32 %v3951, 0.5
        %v3985 = vmul.f32 %v3970, 0.5
        %v3986 = vmul.f32 %v3915, 0.5
        %v3987 = vmul.f32 %v3934, 0.5
        %v3988 = vmul.f32 %v3953, 0.5
        %v3989 = vmul.f32 %v3972, 0.5
        %v3990 = vmul.f32 %v3908, 0.70710677
        %v3991 = vmul.f32 %v3927, 0.70710677
        %v3992 = vmul.f32 %v3946, 0.70710677
        %v3993 = vmul.f32 %v3965, 0.70710677
        %v3994 = vmul.f32 %v3910, 0.70710677
        %v3995 = vmul.f32 %v3929, 0.70710677
        %v3996 = vmul.f32 %v3948, 0.70710677
        %v3997 = vmul.f32 %v3967, 0.70710677
        %v3998 = vmul.f32 %v3913, 0.70710677
        %v3999 = vmul.f32 %v3932, 0.70710677
        %v4000 = vmul.f32 %v3951, 0.70710677
        %v4001 = vmul.f32 %v3970, 0.70710677
        %v4002 = vmul.f32 %v3915, 0.70710677
        %v4003 = vmul.f32 %v3934, 0.70710677
        %v4004 = vmul.f32 %v3953, 0.70710677
        %v4005 = vmul.f32 %v3972, 0.70710677
        %v4006 = vmul.f32 %v3990, %v3990
        %v4007 = vmin.f32 16.0, %v4006
        %v4008 = vmul.f32 %v4007, 2.1237322e-06
        %v4009 = vadd.f32 %v4008, 0.00028619796
        %v4010 = vmul.f32 %v4007, %v4009
        %v4011 = vadd.f32 %v4010, 0.0036580483
        %v4012 = vmul.f32 %v4007, %v4011
        %v4013 = vadd.f32 %v4012, 0.05243302
        %v4014 = vmul.f32 %v4007, %v4013
        %v4015 = vadd.f32 %v4014, 0.18741608
        %v4016 = vmul.f32 %v4007, %v4015
        %v4017 = vadd.f32 %v4016, 1.1283791
        %v4018 = vmul.f32 %v3990, %v4017
        %v4019 = vmul.f32 %v4007, 3.8918573e-05
        %v4020 = vadd.f32 %v4019, 0.001143296
        %v4021 = vmul.f32 %v4007, %v4020
        %v4022 = vadd.f32 %v4021, 0.014752088
        %v4023 = vmul.f32 %v4007, %v4022
        %v4024 = vadd.f32 %v4023, 0.112945676
        %v4025 = vmul.f32 %v4007, %v4024
        %v4026 = vadd.f32 %v4025, 0.4994258
        %v4027 = vmul.f32 %v4007, %v4026
        %v4028 = vadd.f32 %v4027, 1.0
        %v4029 = vrcp.pop %v4028
        %v4030 = vmul.f32 %v4028, %v4029
        %v4031 = vsub.f32 1.0, %v4030
        %v4032 = vmul.f32 %v4029, %v4031
        %v4033 = vadd.f32 %v4029, %v4032
        %vm4034 = vweird.f32 %v4028
        %vm4035 = vweird.f32 %v4029
        %vm4036 = vmor %vm4034, %vm4035
        %v4037 = vsel %vm4036, %v4029, %v4033
        %v4038 = vand.u32 2147483647, %v4028
        %vm4039 = vcmp.eq.f32.partialorder %v4038, 8.507059e+37
        %v4040 = vand.u32 %v4028, 2147483648
        %v4041 = vor.u32 1.1754944e-38, %v4040
        %v4042 = vsel %vm4039, %v4041, %v4037
        %v4043 = vmul.f32 %v4018, %v4042
        %v4044 = vmin.f32 %v4043, 1.0
        %v4045 = vmax.f32 %v4044, -1.0
        %v4046 = vmul.f32 %v3991, %v3991
        %v4047 = vmin.f32 16.0, %v4046
        %v4048 = vmul.f32 %v4047, 2.1237322e-06
        %v4049 = vadd.f32 %v4048, 0.00028619796
        %v4050 = vmul.f32 %v4047, %v4049
        %v4051 = vadd.f32 %v4050, 0.0036580483
        %v4052 = vmul.f32 %v4047, %v4051
        %v4053 = vadd.f32 %v4052, 0.05243302
        %v4054 = vmul.f32 %v4047, %v4053
        %v4055 = vadd.f32 %v4054, 0.18741608
        %v4056 = vmul.f32 %v4047, %v4055
        %v4057 = vadd.f32 %v4056, 1.1283791
        %v4058 = vmul.f32 %v3991, %v4057
        %v4059 = vmul.f32 %v4047, 3.8918573e-05
        %v4060 = vadd.f32 %v4059, 0.001143296
        %v4061 = vmul.f32 %v4047, %v4060
        %v4062 = vadd.f32 %v4061, 0.014752088
        %v4063 = vmul.f32 %v4047, %v4062
        %v4064 = vadd.f32 %v4063, 0.112945676
        %v4065 = vmul.f32 %v4047, %v4064
        %v4066 = vadd.f32 %v4065, 0.4994258
        %v4067 = vmul.f32 %v4047, %v4066
        %v4068 = vadd.f32 %v4067, 1.0
        %v4069 = vrcp.pop %v4068
        %v4070 = vmul.f32 %v4068, %v4069
        %v4071 = vsub.f32 1.0, %v4070
        %v4072 = vmul.f32 %v4069, %v4071
        %v4073 = vadd.f32 %v4069, %v4072
        %vm4074 = vweird.f32 %v4068
        %vm4075 = vweird.f32 %v4069
        %vm4076 = vmor %vm4074, %vm4075
        %v4077 = vsel %vm4076, %v4069, %v4073
        %v4078 = vand.u32 2147483647, %v4068
        %vm4079 = vcmp.eq.f32.partialorder %v4078, 8.507059e+37
        %v4080 = vand.u32 %v4068, 2147483648
        %v4081 = vor.u32 1.1754944e-38, %v4080
        %v4082 = vsel %vm4079, %v4081, %v4077
        %v4083 = vmul.f32 %v4058, %v4082
        %v4084 = vmin.f32 %v4083, 1.0
        %v4085 = vmax.f32 %v4084, -1.0
        %v4086 = vmul.f32 %v3992, %v3992
        %v4087 = vmin.f32 16.0, %v4086
        %v4088 = vmul.f32 %v4087, 2.1237322e-06
        %v4089 = vadd.f32 %v4088, 0.00028619796
        %v4090 = vmul.f32 %v4087, %v4089
        %v4091 = vadd.f32 %v4090, 0.0036580483
        %v4092 = vmul.f32 %v4087, %v4091
        %v4093 = vadd.f32 %v4092, 0.05243302
        %v4094 = vmul.f32 %v4087, %v4093
        %v4095 = vadd.f32 %v4094, 0.18741608
        %v4096 = vmul.f32 %v4087, %v4095
        %v4097 = vadd.f32 %v4096, 1.1283791
        %v4098 = vmul.f32 %v3992, %v4097
        %v4099 = vmul.f32 %v4087, 3.8918573e-05
        %v4100 = vadd.f32 %v4099, 0.001143296
        %v4101 = vmul.f32 %v4087, %v4100
        %v4102 = vadd.f32 %v4101, 0.014752088
        %v4103 = vmul.f32 %v4087, %v4102
        %v4104 = vadd.f32 %v4103, 0.112945676
        %v4105 = vmul.f32 %v4087, %v4104
        %v4106 = vadd.f32 %v4105, 0.4994258
        %v4107 = vmul.f32 %v4087, %v4106
        %v4108 = vadd.f32 %v4107, 1.0
        %v4109 = vrcp.pop %v4108
        %v4110 = vmul.f32 %v4108, %v4109
        %v4111 = vsub.f32 1.0, %v4110
        %v4112 = vmul.f32 %v4109, %v4111
        %v4113 = vadd.f32 %v4109, %v4112
        %vm4114 = vweird.f32 %v4108
        %vm4115 = vweird.f32 %v4109
        %vm4116 = vmor %vm4114, %vm4115
        %v4117 = vsel %vm4116, %v4109, %v4113
        %v4118 = vand.u32 2147483647, %v4108
        %vm4119 = vcmp.eq.f32.partialorder %v4118, 8.507059e+37
        %v4120 = vand.u32 %v4108, 2147483648
        %v4121 = vor.u32 1.1754944e-38, %v4120
        %v4122 = vsel %vm4119, %v4121, %v4117
        %v4123 = vmul.f32 %v4098, %v4122
        %v4124 = vmin.f32 %v4123, 1.0
        %v4125 = vmax.f32 %v4124, -1.0
        %v4126 = vmul.f32 %v3993, %v3993
        %v4127 = vmin.f32 16.0, %v4126
        %v4128 = vmul.f32 %v4127, 2.1237322e-06
        %v4129 = vadd.f32 %v4128, 0.00028619796
        %v4130 = vmul.f32 %v4127, %v4129
        %v4131 = vadd.f32 %v4130, 0.0036580483
        %v4132 = vmul.f32 %v4127, %v4131
        %v4133 = vadd.f32 %v4132, 0.05243302
        %v4134 = vmul.f32 %v4127, %v4133
        %v4135 = vadd.f32 %v4134, 0.18741608
        %v4136 = vmul.f32 %v4127, %v4135
        %v4137 = vadd.f32 %v4136, 1.1283791
        %v4138 = vmul.f32 %v3993, %v4137
        %v4139 = vmul.f32 %v4127, 3.8918573e-05
        %v4140 = vadd.f32 %v4139, 0.001143296
        %v4141 = vmul.f32 %v4127, %v4140
        %v4142 = vadd.f32 %v4141, 0.014752088
        %v4143 = vmul.f32 %v4127, %v4142
        %v4144 = vadd.f32 %v4143, 0.112945676
        %v4145 = vmul.f32 %v4127, %v4144
        %v4146 = vadd.f32 %v4145, 0.4994258
        %v4147 = vmul.f32 %v4127, %v4146
        %v4148 = vadd.f32 %v4147, 1.0
        %v4149 = vrcp.pop %v4148
        %v4150 = vmul.f32 %v4148, %v4149
        %v4151 = vsub.f32 1.0, %v4150
        %v4152 = vmul.f32 %v4149, %v4151
        %v4153 = vadd.f32 %v4149, %v4152
        %vm4154 = vweird.f32 %v4148
        %vm4155 = vweird.f32 %v4149
        %vm4156 = vmor %vm4154, %vm4155
        %v4157 = vsel %vm4156, %v4149, %v4153
        %v4158 = vand.u32 2147483647, %v4148
        %vm4159 = vcmp.eq.f32.partialorder %v4158, 8.507059e+37
        %v4160 = vand.u32 %v4148, 2147483648
        %v4161 = vor.u32 1.1754944e-38, %v4160
        %v4162 = vsel %vm4159, %v4161, %v4157
        %v4163 = vmul.f32 %v4138, %v4162
        %v4164 = vmin.f32 %v4163, 1.0
        %v4165 = vmax.f32 %v4164, -1.0
        %v4166 = vmul.f32 %v3994, %v3994
        %v4167 = vmin.f32 16.0, %v4166
        %v4168 = vmul.f32 %v4167, 2.1237322e-06
        %v4169 = vadd.f32 %v4168, 0.00028619796
        %v4170 = vmul.f32 %v4167, %v4169
        %v4171 = vadd.f32 %v4170, 0.0036580483
        %v4172 = vmul.f32 %v4167, %v4171
        %v4173 = vadd.f32 %v4172, 0.05243302
        %v4174 = vmul.f32 %v4167, %v4173
        %v4175 = vadd.f32 %v4174, 0.18741608
        %v4176 = vmul.f32 %v4167, %v4175
        %v4177 = vadd.f32 %v4176, 1.1283791
        %v4178 = vmul.f32 %v3994, %v4177
        %v4179 = vmul.f32 %v4167, 3.8918573e-05
        %v4180 = vadd.f32 %v4179, 0.001143296
        %v4181 = vmul.f32 %v4167, %v4180
        %v4182 = vadd.f32 %v4181, 0.014752088
        %v4183 = vmul.f32 %v4167, %v4182
        %v4184 = vadd.f32 %v4183, 0.112945676
        %v4185 = vmul.f32 %v4167, %v4184
        %v4186 = vadd.f32 %v4185, 0.4994258
        %v4187 = vmul.f32 %v4167, %v4186
        %v4188 = vadd.f32 %v4187, 1.0
        %v4189 = vrcp.pop %v4188
        %v4190 = vmul.f32 %v4188, %v4189
        %v4191 = vsub.f32 1.0, %v4190
        %v4192 = vmul.f32 %v4189, %v4191
        %v4193 = vadd.f32 %v4189, %v4192
        %vm4194 = vweird.f32 %v4188
        %vm4195 = vweird.f32 %v4189
        %vm4196 = vmor %vm4194, %vm4195
        %v4197 = vsel %vm4196, %v4189, %v4193
        %v4198 = vand.u32 2147483647, %v4188
        %vm4199 = vcmp.eq.f32.partialorder %v4198, 8.507059e+37
        %v4200 = vand.u32 %v4188, 2147483648
        %v4201 = vor.u32 1.1754944e-38, %v4200
        %v4202 = vsel %vm4199, %v4201, %v4197
        %v4203 = vmul.f32 %v4178, %v4202
        %v4204 = vmin.f32 %v4203, 1.0
        %v4205 = vmax.f32 %v4204, -1.0
        %v4206 = vmul.f32 %v3995, %v3995
        %v4207 = vmin.f32 16.0, %v4206
        %v4208 = vmul.f32 %v4207, 2.1237322e-06
        %v4209 = vadd.f32 %v4208, 0.00028619796
        %v4210 = vmul.f32 %v4207, %v4209
        %v4211 = vadd.f32 %v4210, 0.0036580483
        %v4212 = vmul.f32 %v4207, %v4211
        %v4213 = vadd.f32 %v4212, 0.05243302
        %v4214 = vmul.f32 %v4207, %v4213
        %v4215 = vadd.f32 %v4214, 0.18741608
        %v4216 = vmul.f32 %v4207, %v4215
        %v4217 = vadd.f32 %v4216, 1.1283791
        %v4218 = vmul.f32 %v3995, %v4217
        %v4219 = vmul.f32 %v4207, 3.8918573e-05
        %v4220 = vadd.f32 %v4219, 0.001143296
        %v4221 = vmul.f32 %v4207, %v4220
        %v4222 = vadd.f32 %v4221, 0.014752088
        %v4223 = vmul.f32 %v4207, %v4222
        %v4224 = vadd.f32 %v4223, 0.112945676
        %v4225 = vmul.f32 %v4207, %v4224
        %v4226 = vadd.f32 %v4225, 0.4994258
        %v4227 = vmul.f32 %v4207, %v4226
        %v4228 = vadd.f32 %v4227, 1.0
        %v4229 = vrcp.pop %v4228
        %v4230 = vmul.f32 %v4228, %v4229
        %v4231 = vsub.f32 1.0, %v4230
        %v4232 = vmul.f32 %v4229, %v4231
        %v4233 = vadd.f32 %v4229, %v4232
        %vm4234 = vweird.f32 %v4228
        %vm4235 = vweird.f32 %v4229
        %vm4236 = vmor %vm4234, %vm4235
        %v4237 = vsel %vm4236, %v4229, %v4233
        %v4238 = vand.u32 2147483647, %v4228
        %vm4239 = vcmp.eq.f32.partialorder %v4238, 8.507059e+37
        %v4240 = vand.u32 %v4228, 2147483648
        %v4241 = vor.u32 1.1754944e-38, %v4240
        %v4242 = vsel %vm4239, %v4241, %v4237
        %v4243 = vmul.f32 %v4218, %v4242
        %v4244 = vmin.f32 %v4243, 1.0
        %v4245 = vmax.f32 %v4244, -1.0
        %v4246 = vmul.f32 %v3996, %v3996
        %v4247 = vmin.f32 16.0, %v4246
        %v4248 = vmul.f32 %v4247, 2.1237322e-06
        %v4249 = vadd.f32 %v4248, 0.00028619796
        %v4250 = vmul.f32 %v4247, %v4249
        %v4251 = vadd.f32 %v4250, 0.0036580483
        %v4252 = vmul.f32 %v4247, %v4251
        %v4253 = vadd.f32 %v4252, 0.05243302
        %v4254 = vmul.f32 %v4247, %v4253
        %v4255 = vadd.f32 %v4254, 0.18741608
        %v4256 = vmul.f32 %v4247, %v4255
        %v4257 = vadd.f32 %v4256, 1.1283791
        %v4258 = vmul.f32 %v3996, %v4257
        %v4259 = vmul.f32 %v4247, 3.8918573e-05
        %v4260 = vadd.f32 %v4259, 0.001143296
        %v4261 = vmul.f32 %v4247, %v4260
        %v4262 = vadd.f32 %v4261, 0.014752088
        %v4263 = vmul.f32 %v4247, %v4262
        %v4264 = vadd.f32 %v4263, 0.112945676
        %v4265 = vmul.f32 %v4247, %v4264
        %v4266 = vadd.f32 %v4265, 0.4994258
        %v4267 = vmul.f32 %v4247, %v4266
        %v4268 = vadd.f32 %v4267, 1.0
        %v4269 = vrcp.pop %v4268
        %v4270 = vmul.f32 %v4268, %v4269
        %v4271 = vsub.f32 1.0, %v4270
        %v4272 = vmul.f32 %v4269, %v4271
        %v4273 = vadd.f32 %v4269, %v4272
        %vm4274 = vweird.f32 %v4268
        %vm4275 = vweird.f32 %v4269
        %vm4276 = vmor %vm4274, %vm4275
        %v4277 = vsel %vm4276, %v4269, %v4273
        %v4278 = vand.u32 2147483647, %v4268
        %vm4279 = vcmp.eq.f32.partialorder %v4278, 8.507059e+37
        %v4280 = vand.u32 %v4268, 2147483648
        %v4281 = vor.u32 1.1754944e-38, %v4280
        %v4282 = vsel %vm4279, %v4281, %v4277
        %v4283 = vmul.f32 %v4258, %v4282
        %v4284 = vmin.f32 %v4283, 1.0
        %v4285 = vmax.f32 %v4284, -1.0
        %v4286 = vmul.f32 %v3997, %v3997
        %v4287 = vmin.f32 16.0, %v4286
        %v4288 = vmul.f32 %v4287, 2.1237322e-06
        %v4289 = vadd.f32 %v4288, 0.00028619796
        %v4290 = vmul.f32 %v4287, %v4289
        %v4291 = vadd.f32 %v4290, 0.0036580483
        %v4292 = vmul.f32 %v4287, %v4291
        %v4293 = vadd.f32 %v4292, 0.05243302
        %v4294 = vmul.f32 %v4287, %v4293
        %v4295 = vadd.f32 %v4294, 0.18741608
        %v4296 = vmul.f32 %v4287, %v4295
        %v4297 = vadd.f32 %v4296, 1.1283791
        %v4298 = vmul.f32 %v3997, %v4297
        %v4299 = vmul.f32 %v4287, 3.8918573e-05
        %v4300 = vadd.f32 %v4299, 0.001143296
        %v4301 = vmul.f32 %v4287, %v4300
        %v4302 = vadd.f32 %v4301, 0.014752088
        %v4303 = vmul.f32 %v4287, %v4302
        %v4304 = vadd.f32 %v4303, 0.112945676
        %v4305 = vmul.f32 %v4287, %v4304
        %v4306 = vadd.f32 %v4305, 0.4994258
        %v4307 = vmul.f32 %v4287, %v4306
        %v4308 = vadd.f32 %v4307, 1.0
        %v4309 = vrcp.pop %v4308
        %v4310 = vmul.f32 %v4308, %v4309
        %v4311 = vsub.f32 1.0, %v4310
        %v4312 = vmul.f32 %v4309, %v4311
        %v4313 = vadd.f32 %v4309, %v4312
        %vm4314 = vweird.f32 %v4308
        %vm4315 = vweird.f32 %v4309
        %vm4316 = vmor %vm4314, %vm4315
        %v4317 = vsel %vm4316, %v4309, %v4313
        %v4318 = vand.u32 2147483647, %v4308
        %vm4319 = vcmp.eq.f32.partialorder %v4318, 8.507059e+37
        %v4320 = vand.u32 %v4308, 2147483648
        %v4321 = vor.u32 1.1754944e-38, %v4320
        %v4322 = vsel %vm4319, %v4321, %v4317
        %v4323 = vmul.f32 %v4298, %v4322
        %v4324 = vmin.f32 %v4323, 1.0
        %v4325 = vmax.f32 %v4324, -1.0
        %v4326 = vmul.f32 %v3998, %v3998
        %v4327 = vmin.f32 16.0, %v4326
        %v4328 = vmul.f32 %v4327, 2.1237322e-06
        %v4329 = vadd.f32 %v4328, 0.00028619796
        %v4330 = vmul.f32 %v4327, %v4329
        %v4331 = vadd.f32 %v4330, 0.0036580483
        %v4332 = vmul.f32 %v4327, %v4331
        %v4333 = vadd.f32 %v4332, 0.05243302
        %v4334 = vmul.f32 %v4327, %v4333
        %v4335 = vadd.f32 %v4334, 0.18741608
        %v4336 = vmul.f32 %v4327, %v4335
        %v4337 = vadd.f32 %v4336, 1.1283791
        %v4338 = vmul.f32 %v3998, %v4337
        %v4339 = vmul.f32 %v4327, 3.8918573e-05
        %v4340 = vadd.f32 %v4339, 0.001143296
        %v4341 = vmul.f32 %v4327, %v4340
        %v4342 = vadd.f32 %v4341, 0.014752088
        %v4343 = vmul.f32 %v4327, %v4342
        %v4344 = vadd.f32 %v4343, 0.112945676
        %v4345 = vmul.f32 %v4327, %v4344
        %v4346 = vadd.f32 %v4345, 0.4994258
        %v4347 = vmul.f32 %v4327, %v4346
        %v4348 = vadd.f32 %v4347, 1.0
        %v4349 = vrcp.pop %v4348
        %v4350 = vmul.f32 %v4348, %v4349
        %v4351 = vsub.f32 1.0, %v4350
        %v4352 = vmul.f32 %v4349, %v4351
        %v4353 = vadd.f32 %v4349, %v4352
        %vm4354 = vweird.f32 %v4348
        %vm4355 = vweird.f32 %v4349
        %vm4356 = vmor %vm4354, %vm4355
        %v4357 = vsel %vm4356, %v4349, %v4353
        %v4358 = vand.u32 2147483647, %v4348
        %vm4359 = vcmp.eq.f32.partialorder %v4358, 8.507059e+37
        %v4360 = vand.u32 %v4348, 2147483648
        %v4361 = vor.u32 1.1754944e-38, %v4360
        %v4362 = vsel %vm4359, %v4361, %v4357
        %v4363 = vmul.f32 %v4338, %v4362
        %v4364 = vmin.f32 %v4363, 1.0
        %v4365 = vmax.f32 %v4364, -1.0
        %v4366 = vmul.f32 %v3999, %v3999
        %v4367 = vmin.f32 16.0, %v4366
        %v4368 = vmul.f32 %v4367, 2.1237322e-06
        %v4369 = vadd.f32 %v4368, 0.00028619796
        %v4370 = vmul.f32 %v4367, %v4369
        %v4371 = vadd.f32 %v4370, 0.0036580483
        %v4372 = vmul.f32 %v4367, %v4371
        %v4373 = vadd.f32 %v4372, 0.05243302
        %v4374 = vmul.f32 %v4367, %v4373
        %v4375 = vadd.f32 %v4374, 0.18741608
        %v4376 = vmul.f32 %v4367, %v4375
        %v4377 = vadd.f32 %v4376, 1.1283791
        %v4378 = vmul.f32 %v3999, %v4377
        %v4379 = vmul.f32 %v4367, 3.8918573e-05
        %v4380 = vadd.f32 %v4379, 0.001143296
        %v4381 = vmul.f32 %v4367, %v4380
        %v4382 = vadd.f32 %v4381, 0.014752088
        %v4383 = vmul.f32 %v4367, %v4382
        %v4384 = vadd.f32 %v4383, 0.112945676
        %v4385 = vmul.f32 %v4367, %v4384
        %v4386 = vadd.f32 %v4385, 0.4994258
        %v4387 = vmul.f32 %v4367, %v4386
        %v4388 = vadd.f32 %v4387, 1.0
        %v4389 = vrcp.pop %v4388
        %v4390 = vmul.f32 %v4388, %v4389
        %v4391 = vsub.f32 1.0, %v4390
        %v4392 = vmul.f32 %v4389, %v4391
        %v4393 = vadd.f32 %v4389, %v4392
        %vm4394 = vweird.f32 %v4388
        %vm4395 = vweird.f32 %v4389
        %vm4396 = vmor %vm4394, %vm4395
        %v4397 = vsel %vm4396, %v4389, %v4393
        %v4398 = vand.u32 2147483647, %v4388
        %vm4399 = vcmp.eq.f32.partialorder %v4398, 8.507059e+37
        %v4400 = vand.u32 %v4388, 2147483648
        %v4401 = vor.u32 1.1754944e-38, %v4400
        %v4402 = vsel %vm4399, %v4401, %v4397
        %v4403 = vmul.f32 %v4378, %v4402
        %v4404 = vmin.f32 %v4403, 1.0
        %v4405 = vmax.f32 %v4404, -1.0
        %v4406 = vmul.f32 %v4000, %v4000
        %v4407 = vmin.f32 16.0, %v4406
        %v4408 = vmul.f32 %v4407, 2.1237322e-06
        %v4409 = vadd.f32 %v4408, 0.00028619796
        %v4410 = vmul.f32 %v4407, %v4409
        %v4411 = vadd.f32 %v4410, 0.0036580483
        %v4412 = vmul.f32 %v4407, %v4411
        %v4413 = vadd.f32 %v4412, 0.05243302
        %v4414 = vmul.f32 %v4407, %v4413
        %v4415 = vadd.f32 %v4414, 0.18741608
        %v4416 = vmul.f32 %v4407, %v4415
        %v4417 = vadd.f32 %v4416, 1.1283791
        %v4418 = vmul.f32 %v4000, %v4417
        %v4419 = vmul.f32 %v4407, 3.8918573e-05
        %v4420 = vadd.f32 %v4419, 0.001143296
        %v4421 = vmul.f32 %v4407, %v4420
        %v4422 = vadd.f32 %v4421, 0.014752088
        %v4423 = vmul.f32 %v4407, %v4422
        %v4424 = vadd.f32 %v4423, 0.112945676
        %v4425 = vmul.f32 %v4407, %v4424
        %v4426 = vadd.f32 %v4425, 0.4994258
        %v4427 = vmul.f32 %v4407, %v4426
        %v4428 = vadd.f32 %v4427, 1.0
        %v4429 = vrcp.pop %v4428
        %v4430 = vmul.f32 %v4428, %v4429
        %v4431 = vsub.f32 1.0, %v4430
        %v4432 = vmul.f32 %v4429, %v4431
        %v4433 = vadd.f32 %v4429, %v4432
        %vm4434 = vweird.f32 %v4428
        %vm4435 = vweird.f32 %v4429
        %vm4436 = vmor %vm4434, %vm4435
        %v4437 = vsel %vm4436, %v4429, %v4433
        %v4438 = vand.u32 2147483647, %v4428
        %vm4439 = vcmp.eq.f32.partialorder %v4438, 8.507059e+37
        %v4440 = vand.u32 %v4428, 2147483648
        %v4441 = vor.u32 1.1754944e-38, %v4440
        %v4442 = vsel %vm4439, %v4441, %v4437
        %v4443 = vmul.f32 %v4418, %v4442
        %v4444 = vmin.f32 %v4443, 1.0
        %v4445 = vmax.f32 %v4444, -1.0
        %v4446 = vmul.f32 %v4001, %v4001
        %v4447 = vmin.f32 16.0, %v4446
        %v4448 = vmul.f32 %v4447, 2.1237322e-06
        %v4449 = vadd.f32 %v4448, 0.00028619796
        %v4450 = vmul.f32 %v4447, %v4449
        %v4451 = vadd.f32 %v4450, 0.0036580483
        %v4452 = vmul.f32 %v4447, %v4451
        %v4453 = vadd.f32 %v4452, 0.05243302
        %v4454 = vmul.f32 %v4447, %v4453
        %v4455 = vadd.f32 %v4454, 0.18741608
        %v4456 = vmul.f32 %v4447, %v4455
        %v4457 = vadd.f32 %v4456, 1.1283791
        %v4458 = vmul.f32 %v4001, %v4457
        %v4459 = vmul.f32 %v4447, 3.8918573e-05
        %v4460 = vadd.f32 %v4459, 0.001143296
        %v4461 = vmul.f32 %v4447, %v4460
        %v4462 = vadd.f32 %v4461, 0.014752088
        %v4463 = vmul.f32 %v4447, %v4462
        %v4464 = vadd.f32 %v4463, 0.112945676
        %v4465 = vmul.f32 %v4447, %v4464
        %v4466 = vadd.f32 %v4465, 0.4994258
        %v4467 = vmul.f32 %v4447, %v4466
        %v4468 = vadd.f32 %v4467, 1.0
        %v4469 = vrcp.pop %v4468
        %v4470 = vmul.f32 %v4468, %v4469
        %v4471 = vsub.f32 1.0, %v4470
        %v4472 = vmul.f32 %v4469, %v4471
        %v4473 = vadd.f32 %v4469, %v4472
        %vm4474 = vweird.f32 %v4468
        %vm4475 = vweird.f32 %v4469
        %vm4476 = vmor %vm4474, %vm4475
        %v4477 = vsel %vm4476, %v4469, %v4473
        %v4478 = vand.u32 2147483647, %v4468
        %vm4479 = vcmp.eq.f32.partialorder %v4478, 8.507059e+37
        %v4480 = vand.u32 %v4468, 2147483648
        %v4481 = vor.u32 1.1754944e-38, %v4480
        %v4482 = vsel %vm4479, %v4481, %v4477
        %v4483 = vmul.f32 %v4458, %v4482
        %v4484 = vmin.f32 %v4483, 1.0
        %v4485 = vmax.f32 %v4484, -1.0
        %v4486 = vmul.f32 %v4002, %v4002
        %v4487 = vmin.f32 16.0, %v4486
        %v4488 = vmul.f32 %v4487, 2.1237322e-06
        %v4489 = vadd.f32 %v4488, 0.00028619796
        %v4490 = vmul.f32 %v4487, %v4489
        %v4491 = vadd.f32 %v4490, 0.0036580483
        %v4492 = vmul.f32 %v4487, %v4491
        %v4493 = vadd.f32 %v4492, 0.05243302
        %v4494 = vmul.f32 %v4487, %v4493
        %v4495 = vadd.f32 %v4494, 0.18741608
        %v4496 = vmul.f32 %v4487, %v4495
        %v4497 = vadd.f32 %v4496, 1.1283791
        %v4498 = vmul.f32 %v4002, %v4497
        %v4499 = vmul.f32 %v4487, 3.8918573e-05
        %v4500 = vadd.f32 %v4499, 0.001143296
        %v4501 = vmul.f32 %v4487, %v4500
        %v4502 = vadd.f32 %v4501, 0.014752088
        %v4503 = vmul.f32 %v4487, %v4502
        %v4504 = vadd.f32 %v4503, 0.112945676
        %v4505 = vmul.f32 %v4487, %v4504
        %v4506 = vadd.f32 %v4505, 0.4994258
        %v4507 = vmul.f32 %v4487, %v4506
        %v4508 = vadd.f32 %v4507, 1.0
        %v4509 = vrcp.pop %v4508
        %v4510 = vmul.f32 %v4508, %v4509
        %v4511 = vsub.f32 1.0, %v4510
        %v4512 = vmul.f32 %v4509, %v4511
        %v4513 = vadd.f32 %v4509, %v4512
        %vm4514 = vweird.f32 %v4508
        %vm4515 = vweird.f32 %v4509
        %vm4516 = vmor %vm4514, %vm4515
        %v4517 = vsel %vm4516, %v4509, %v4513
        %v4518 = vand.u32 2147483647, %v4508
        %vm4519 = vcmp.eq.f32.partialorder %v4518, 8.507059e+37
        %v4520 = vand.u32 %v4508, 2147483648
        %v4521 = vor.u32 1.1754944e-38, %v4520
        %v4522 = vsel %vm4519, %v4521, %v4517
        %v4523 = vmul.f32 %v4498, %v4522
        %v4524 = vmin.f32 %v4523, 1.0
        %v4525 = vmax.f32 %v4524, -1.0
        %v4526 = vmul.f32 %v4003, %v4003
        %v4527 = vmin.f32 16.0, %v4526
        %v4528 = vmul.f32 %v4527, 2.1237322e-06
        %v4529 = vadd.f32 %v4528, 0.00028619796
        %v4530 = vmul.f32 %v4527, %v4529
        %v4531 = vadd.f32 %v4530, 0.0036580483
        %v4532 = vmul.f32 %v4527, %v4531
        %v4533 = vadd.f32 %v4532, 0.05243302
        %v4534 = vmul.f32 %v4527, %v4533
        %v4535 = vadd.f32 %v4534, 0.18741608
        %v4536 = vmul.f32 %v4527, %v4535
        %v4537 = vadd.f32 %v4536, 1.1283791
        %v4538 = vmul.f32 %v4003, %v4537
        %v4539 = vmul.f32 %v4527, 3.8918573e-05
        %v4540 = vadd.f32 %v4539, 0.001143296
        %v4541 = vmul.f32 %v4527, %v4540
        %v4542 = vadd.f32 %v4541, 0.014752088
        %v4543 = vmul.f32 %v4527, %v4542
        %v4544 = vadd.f32 %v4543, 0.112945676
        %v4545 = vmul.f32 %v4527, %v4544
        %v4546 = vadd.f32 %v4545, 0.4994258
        %v4547 = vmul.f32 %v4527, %v4546
        %v4548 = vadd.f32 %v4547, 1.0
        %v4549 = vrcp.pop %v4548
        %v4550 = vmul.f32 %v4548, %v4549
        %v4551 = vsub.f32 1.0, %v4550
        %v4552 = vmul.f32 %v4549, %v4551
        %v4553 = vadd.f32 %v4549, %v4552
        %vm4554 = vweird.f32 %v4548
        %vm4555 = vweird.f32 %v4549
        %vm4556 = vmor %vm4554, %vm4555
        %v4557 = vsel %vm4556, %v4549, %v4553
        %v4558 = vand.u32 2147483647, %v4548
        %vm4559 = vcmp.eq.f32.partialorder %v4558, 8.507059e+37
        %v4560 = vand.u32 %v4548, 2147483648
        %v4561 = vor.u32 1.1754944e-38, %v4560
        %v4562 = vsel %vm4559, %v4561, %v4557
        %v4563 = vmul.f32 %v4538, %v4562
        %v4564 = vmin.f32 %v4563, 1.0
        %v4565 = vmax.f32 %v4564, -1.0
        %v4566 = vmul.f32 %v4004, %v4004
        %v4567 = vmin.f32 16.0, %v4566
        %v4568 = vmul.f32 %v4567, 2.1237322e-06
        %v4569 = vadd.f32 %v4568, 0.00028619796
        %v4570 = vmul.f32 %v4567, %v4569
        %v4571 = vadd.f32 %v4570, 0.0036580483
        %v4572 = vmul.f32 %v4567, %v4571
        %v4573 = vadd.f32 %v4572, 0.05243302
        %v4574 = vmul.f32 %v4567, %v4573
        %v4575 = vadd.f32 %v4574, 0.18741608
        %v4576 = vmul.f32 %v4567, %v4575
        %v4577 = vadd.f32 %v4576, 1.1283791
        %v4578 = vmul.f32 %v4004, %v4577
        %v4579 = vmul.f32 %v4567, 3.8918573e-05
        %v4580 = vadd.f32 %v4579, 0.001143296
        %v4581 = vmul.f32 %v4567, %v4580
        %v4582 = vadd.f32 %v4581, 0.014752088
        %v4583 = vmul.f32 %v4567, %v4582
        %v4584 = vadd.f32 %v4583, 0.112945676
        %v4585 = vmul.f32 %v4567, %v4584
        %v4586 = vadd.f32 %v4585, 0.4994258
        %v4587 = vmul.f32 %v4567, %v4586
        %v4588 = vadd.f32 %v4587, 1.0
        %v4589 = vrcp.pop %v4588
        %v4590 = vmul.f32 %v4588, %v4589
        %v4591 = vsub.f32 1.0, %v4590
        %v4592 = vmul.f32 %v4589, %v4591
        %v4593 = vadd.f32 %v4589, %v4592
        %vm4594 = vweird.f32 %v4588
        %vm4595 = vweird.f32 %v4589
        %vm4596 = vmor %vm4594, %vm4595
        %v4597 = vsel %vm4596, %v4589, %v4593
        %v4598 = vand.u32 2147483647, %v4588
        %vm4599 = vcmp.eq.f32.partialorder %v4598, 8.507059e+37
        %v4600 = vand.u32 %v4588, 2147483648
        %v4601 = vor.u32 1.1754944e-38, %v4600
        %v4602 = vsel %vm4599, %v4601, %v4597
        %v4603 = vmul.f32 %v4578, %v4602
        %v4604 = vmin.f32 %v4603, 1.0
        %v4605 = vmax.f32 %v4604, -1.0
        %v4606 = vmul.f32 %v4005, %v4005
        %v4607 = vmin.f32 16.0, %v4606
        %v4608 = vmul.f32 %v4607, 2.1237322e-06
        %v4609 = vadd.f32 %v4608, 0.00028619796
        %v4610 = vmul.f32 %v4607, %v4609
        %v4611 = vadd.f32 %v4610, 0.0036580483
        %v4612 = vmul.f32 %v4607, %v4611
        %v4613 = vadd.f32 %v4612, 0.05243302
        %v4614 = vmul.f32 %v4607, %v4613
        %v4615 = vadd.f32 %v4614, 0.18741608
        %v4616 = vmul.f32 %v4607, %v4615
        %v4617 = vadd.f32 %v4616, 1.1283791
        %v4618 = vmul.f32 %v4005, %v4617
        %v4619 = vmul.f32 %v4607, 3.8918573e-05
        %v4620 = vadd.f32 %v4619, 0.001143296
        %v4621 = vmul.f32 %v4607, %v4620
        %v4622 = vadd.f32 %v4621, 0.014752088
        %v4623 = vmul.f32 %v4607, %v4622
        %v4624 = vadd.f32 %v4623, 0.112945676
        %v4625 = vmul.f32 %v4607, %v4624
        %v4626 = vadd.f32 %v4625, 0.4994258
        %v4627 = vmul.f32 %v4607, %v4626
        %v4628 = vadd.f32 %v4627, 1.0
        %v4629 = vrcp.pop %v4628
        %v4630 = vmul.f32 %v4628, %v4629
        %v4631 = vsub.f32 1.0, %v4630
        %v4632 = vmul.f32 %v4629, %v4631
        %v4633 = vadd.f32 %v4629, %v4632
        %vm4634 = vweird.f32 %v4628
        %vm4635 = vweird.f32 %v4629
        %vm4636 = vmor %vm4634, %vm4635
        %v4637 = vsel %vm4636, %v4629, %v4633
        %v4638 = vand.u32 2147483647, %v4628
        %vm4639 = vcmp.eq.f32.partialorder %v4638, 8.507059e+37
        %v4640 = vand.u32 %v4628, 2147483648
        %v4641 = vor.u32 1.1754944e-38, %v4640
        %v4642 = vsel %vm4639, %v4641, %v4637
        %v4643 = vmul.f32 %v4618, %v4642
        %v4644 = vmin.f32 %v4643, 1.0
        %v4645 = vmax.f32 %v4644, -1.0
        %v4646 = vadd.f32 %v4045, 1.0
        %v4647 = vadd.f32 %v4085, 1.0
        %v4648 = vadd.f32 %v4125, 1.0
        %v4649 = vadd.f32 %v4165, 1.0
        %v4650 = vadd.f32 %v4205, 1.0
        %v4651 = vadd.f32 %v4245, 1.0
        %v4652 = vadd.f32 %v4285, 1.0
        %v4653 = vadd.f32 %v4325, 1.0
        %v4654 = vadd.f32 %v4365, 1.0
        %v4655 = vadd.f32 %v4405, 1.0
        %v4656 = vadd.f32 %v4445, 1.0
        %v4657 = vadd.f32 %v4485, 1.0
        %v4658 = vadd.f32 %v4525, 1.0
        %v4659 = vadd.f32 %v4565, 1.0
        %v4660 = vadd.f32 %v4605, 1.0
        %v4661 = vadd.f32 %v4645, 1.0
        %v4662 = vmul.f32 %v3974, %v4646
        %v4663 = vmul.f32 %v3975, %v4647
        %v4664 = vmul.f32 %v3976, %v4648
        %v4665 = vmul.f32 %v3977, %v4649
        %v4666 = vmul.f32 %v3978, %v4650
        %v4667 = vmul.f32 %v3979, %v4651
        %v4668 = vmul.f32 %v3980, %v4652
        %v4669 = vmul.f32 %v3981, %v4653
        %v4670 = vmul.f32 %v3982, %v4654
        %v4671 = vmul.f32 %v3983, %v4655
        %v4672 = vmul.f32 %v3984, %v4656
        %v4673 = vmul.f32 %v3985, %v4657
        %v4674 = vmul.f32 %v3986, %v4658
        %v4675 = vmul.f32 %v3987, %v4659
        %v4676 = vmul.f32 %v3988, %v4660
        %v4677 = vmul.f32 %v3989, %v4661
        %v4678 = vpack.c.bf16 %v4666, %v4662
        %v4679 = vpack.c.bf16 %v4667, %v4663
        %v4680 = vpack.c.bf16 %v4668, %v4664
        %v4681 = vpack.c.bf16 %v4669, %v4665
        %v4682 = vpack.c.bf16 %v4674, %v4670
        %v4683 = vpack.c.bf16 %v4675, %v4671
        %v4684 = vpack.c.bf16 %v4676, %v4672
        %v4685 = vpack.c.bf16 %v4677, %v4673
        %v4686 = vld [vmem:[%s678] sm:$0xf]
        %v4687 = vld [vmem:[%s678 + $0x4] sm:$0xf]
        %v4688 = vld [vmem:[%s678 + $0x8] sm:$0xf]
        %v4689 = vld [vmem:[%s678 + $0xc] sm:$0xf]
        %v4690 = vld [vmem:[%s678 + $0x10] sm:$0xf]
        %v4691 = vld [vmem:[%s678 + $0x14] sm:$0xf]
        %v4692 = vld [vmem:[%s678 + $0x18] sm:$0xf]
        %v4693 = vld [vmem:[%s678 + $0x1c] sm:$0xf]
        %v4694 = vld [vmem:[%s678 + $0x20] sm:$0xf]
        %v4695 = vld [vmem:[%s678 + $0x24] sm:$0xf]
        %v4696 = vld [vmem:[%s678 + $0x28] sm:$0xf]
        %v4697 = vld [vmem:[%s678 + $0x2c] sm:$0xf]
        %v4698 = vld [vmem:[%s678 + $0x30] sm:$0xf]
        %v4699 = vld [vmem:[%s678 + $0x34] sm:$0xf]
        %v4700 = vld [vmem:[%s678 + $0x38] sm:$0xf]
        %v4701 = vld [vmem:[%s678 + $0x3c] sm:$0xf]
        %v4702 = vld [vmem:[%s678 + $0x40] sm:$0xf]
        %v4703 = vld [vmem:[%s678 + $0x44] sm:$0xf]
        %v4704 = vld [vmem:[%s678 + $0x48] sm:$0xf]
        %v4705 = vld [vmem:[%s678 + $0x4c] sm:$0xf]
        %v4706 = vld [vmem:[%s678 + $0x50] sm:$0xf]
        %v4707 = vld [vmem:[%s678 + $0x54] sm:$0xf]
        %v4708 = vld [vmem:[%s678 + $0x58] sm:$0xf]
        %v4709 = vld [vmem:[%s678 + $0x5c] sm:$0xf]
        %v4710 = vld [vmem:[%s678 + $0x60] sm:$0xf]
        %v4711 = vld [vmem:[%s678 + $0x64] sm:$0xf]
        %v4712 = vld [vmem:[%s678 + $0x68] sm:$0xf]
        %v4713 = vld [vmem:[%s678 + $0x6c] sm:$0xf]
        %v4714 = vld [vmem:[%s678 + $0x70] sm:$0xf]
        %v4715 = vld [vmem:[%s678 + $0x74] sm:$0xf]
        %v4716 = vld [vmem:[%s678 + $0x78] sm:$0xf]
        %v4717 = vld [vmem:[%s678 + $0x7c] sm:$0xf]
        %v4718 = vld [vmem:[%s678 + $0x80] sm:$0xf]
        %v4719 = vld [vmem:[%s678 + $0x84] sm:$0xf]
        %v4720 = vld [vmem:[%s678 + $0x88] sm:$0xf]
        %v4721 = vld [vmem:[%s678 + $0x8c] sm:$0xf]
        %v4722 = vld [vmem:[%s678 + $0x90] sm:$0xf]
        %v4723 = vld [vmem:[%s678 + $0x94] sm:$0xf]
        %v4724 = vld [vmem:[%s678 + $0x98] sm:$0xf]
        %v4725 = vld [vmem:[%s678 + $0x9c] sm:$0xf]
        %v4726 = vld [vmem:[%s678 + $0xa0] sm:$0xf]
        %v4727 = vld [vmem:[%s678 + $0xa4] sm:$0xf]
        %v4728 = vld [vmem:[%s678 + $0xa8] sm:$0xf]
        %v4729 = vld [vmem:[%s678 + $0xac] sm:$0xf]
        %v4730 = vld [vmem:[%s678 + $0xb0] sm:$0xf]
        %v4731 = vld [vmem:[%s678 + $0xb4] sm:$0xf]
        %v4732 = vld [vmem:[%s678 + $0xb8] sm:$0xf]
        %v4733 = vld [vmem:[%s678 + $0xbc] sm:$0xf]
        %v4734 = vld [vmem:[%s678 + $0xc0] sm:$0xf]
        %v4735 = vld [vmem:[%s678 + $0xc4] sm:$0xf]
        %v4736 = vld [vmem:[%s678 + $0xc8] sm:$0xf]
        %v4737 = vld [vmem:[%s678 + $0xcc] sm:$0xf]
        %v4738 = vld [vmem:[%s678 + $0xd0] sm:$0xf]
        %v4739 = vld [vmem:[%s678 + $0xd4] sm:$0xf]
        %v4740 = vld [vmem:[%s678 + $0xd8] sm:$0xf]
        %v4741 = vld [vmem:[%s678 + $0xdc] sm:$0xf]
        %v4742 = vld [vmem:[%s678 + $0xe0] sm:$0xf]
        %v4743 = vld [vmem:[%s678 + $0xe4] sm:$0xf]
        %v4744 = vld [vmem:[%s678 + $0xe8] sm:$0xf]
        %v4745 = vld [vmem:[%s678 + $0xec] sm:$0xf]
        %v4746 = vld [vmem:[%s678 + $0xf0] sm:$0xf]
        %v4747 = vld [vmem:[%s678 + $0xf4] sm:$0xf]
        %v4748 = vld [vmem:[%s678 + $0xf8] sm:$0xf]
        %v4749 = vld [vmem:[%s678 + $0xfc] sm:$0xf]
        %v4750 = vld [vmem:[%s757] sm:$0x1]
        %v4752 = vperm.slane %v4750, 0
        %v4818 = vunpack.c.l.b16 %v4686
        %v4819 = vunpack.c.l.b16 %v4687
        %v4820 = vunpack.c.l.b16 %v4688
        %v4821 = vunpack.c.l.b16 %v4689
        %v4822 = vunpack.c.l.b16 %v4690
        %v4823 = vunpack.c.l.b16 %v4691
        %v4824 = vunpack.c.l.b16 %v4692
        %v4825 = vunpack.c.l.b16 %v4693
        %v4826 = vunpack.c.l.b16 %v4694
        %v4827 = vunpack.c.l.b16 %v4695
        %v4828 = vunpack.c.l.b16 %v4696
        %v4829 = vunpack.c.l.b16 %v4697
        %v4830 = vunpack.c.l.b16 %v4698
        %v4831 = vunpack.c.l.b16 %v4699
        %v4832 = vunpack.c.l.b16 %v4700
        %v4833 = vunpack.c.l.b16 %v4701
        %v4834 = vunpack.c.l.b16 %v4702
        %v4835 = vunpack.c.l.b16 %v4703
        %v4836 = vunpack.c.l.b16 %v4704
        %v4837 = vunpack.c.l.b16 %v4705
        %v4838 = vunpack.c.l.b16 %v4706
        %v4839 = vunpack.c.l.b16 %v4707
        %v4840 = vunpack.c.l.b16 %v4708
        %v4841 = vunpack.c.l.b16 %v4709
        %v4842 = vunpack.c.l.b16 %v4710
        %v4843 = vunpack.c.l.b16 %v4711
        %v4844 = vunpack.c.l.b16 %v4712
        %v4845 = vunpack.c.l.b16 %v4713
        %v4846 = vunpack.c.l.b16 %v4714
        %v4847 = vunpack.c.l.b16 %v4715
        %v4848 = vunpack.c.l.b16 %v4716
        %v4849 = vunpack.c.l.b16 %v4717
        %v4850 = vunpack.c.l.b16 %v4718
        %v4851 = vunpack.c.l.b16 %v4719
        %v4852 = vunpack.c.l.b16 %v4720
        %v4853 = vunpack.c.l.b16 %v4721
        %v4854 = vunpack.c.l.b16 %v4722
        %v4855 = vunpack.c.l.b16 %v4723
        %v4856 = vunpack.c.l.b16 %v4724
        %v4857 = vunpack.c.l.b16 %v4725
        %v4858 = vunpack.c.l.b16 %v4726
        %v4859 = vunpack.c.l.b16 %v4727
        %v4860 = vunpack.c.l.b16 %v4728
        %v4861 = vunpack.c.l.b16 %v4729
        %v4862 = vunpack.c.l.b16 %v4730
        %v4863 = vunpack.c.l.b16 %v4731
        %v4864 = vunpack.c.l.b16 %v4732
        %v4865 = vunpack.c.l.b16 %v4733
        %v4866 = vunpack.c.l.b16 %v4734
        %v4867 = vunpack.c.l.b16 %v4735
        %v4868 = vunpack.c.l.b16 %v4736
        %v4869 = vunpack.c.l.b16 %v4737
        %v4870 = vunpack.c.l.b16 %v4738
        %v4871 = vunpack.c.l.b16 %v4739
        %v4872 = vunpack.c.l.b16 %v4740
        %v4873 = vunpack.c.l.b16 %v4741
        %v4874 = vunpack.c.l.b16 %v4742
        %v4875 = vunpack.c.l.b16 %v4743
        %v4876 = vunpack.c.l.b16 %v4744
        %v4877 = vunpack.c.l.b16 %v4745
        %v4878 = vunpack.c.l.b16 %v4746
        %v4879 = vunpack.c.l.b16 %v4747
        %v4880 = vunpack.c.l.b16 %v4748
        %v4881 = vunpack.c.l.b16 %v4749
        %v4882 = vpack.c.b16 %v4819, %v4818
        %v4883 = vpack.c.b16 %v4821, %v4820
        %v4884 = vpack.c.b16 %v4823, %v4822
        %v4885 = vpack.c.b16 %v4825, %v4824
        %v4886 = vpack.c.b16 %v4827, %v4826
        %v4887 = vpack.c.b16 %v4829, %v4828
        %v4888 = vpack.c.b16 %v4831, %v4830
        %v4889 = vpack.c.b16 %v4833, %v4832
        %v4890 = vpack.c.b16 %v4835, %v4834
        %v4891 = vpack.c.b16 %v4837, %v4836
        %v4892 = vpack.c.b16 %v4839, %v4838
        %v4893 = vpack.c.b16 %v4841, %v4840
        %v4894 = vpack.c.b16 %v4843, %v4842
        %v4895 = vpack.c.b16 %v4845, %v4844
        %v4896 = vpack.c.b16 %v4847, %v4846
        %v4897 = vpack.c.b16 %v4849, %v4848
        %v4898 = vpack.c.b16 %v4851, %v4850
        %v4899 = vpack.c.b16 %v4853, %v4852
        %v4900 = vpack.c.b16 %v4855, %v4854
        %v4901 = vpack.c.b16 %v4857, %v4856
        %v4902 = vpack.c.b16 %v4859, %v4858
        %v4903 = vpack.c.b16 %v4861, %v4860
        %v4904 = vpack.c.b16 %v4863, %v4862
        %v4905 = vpack.c.b16 %v4865, %v4864
        %v4906 = vpack.c.b16 %v4867, %v4866
        %v4907 = vpack.c.b16 %v4869, %v4868
        %v4908 = vpack.c.b16 %v4871, %v4870
        %v4909 = vpack.c.b16 %v4873, %v4872
        %v4910 = vpack.c.b16 %v4875, %v4874
        %v4911 = vpack.c.b16 %v4877, %v4876
        %v4912 = vpack.c.b16 %v4879, %v4878
        %v4913 = vpack.c.b16 %v4881, %v4880
        %4946 = vmatpush.bf16.msra.mxu0 %v4889
        %4947 = vmatpush.bf16.msra.mxu0 %v4888
        %4948 = vmatpush.bf16.msra.mxu0 %v4887
        %4949 = vmatpush.bf16.msra.mxu0 %v4886
        %4950 = vmatpush.bf16.msra.mxu0 %v4885
        %4951 = vmatpush.bf16.msra.mxu0 %v4884
        %4952 = vmatpush.bf16.msra.mxu0 %v4883
        %4953 = vmatpush.bf16.msra.mxu0 %v4882
        %4954 = vmatmul.bf16.gmra.mxu0 %v4678
        %v4955 = vpop.f32.mrf.mxu0
        %v4956 = vadd.f32 %v4752, %v4955
        %v4957 = vpop.f32.mrf.mxu0
        %v4958 = vadd.f32 %v4752, %v4957
        %4959 = vmatmul.bf16.gmra.mxu0 %v4682
        %v4960 = vpop.f32.mrf.mxu0
        %v4961 = vadd.f32 %v4752, %v4960
        %v4962 = vpop.f32.mrf.mxu0
        %v4963 = vadd.f32 %v4752, %v4962
        %4964 = vdwg.mxu0
        %4965 = vmatpush.bf16.msra.mxu0 %v4897
        %4966 = vmatpush.bf16.msra.mxu0 %v4896
        %4967 = vmatpush.bf16.msra.mxu0 %v4895
        %4968 = vmatpush.bf16.msra.mxu0 %v4894
        %4969 = vmatpush.bf16.msra.mxu0 %v4893
        %4970 = vmatpush.bf16.msra.mxu0 %v4892
        %4971 = vmatpush.bf16.msra.mxu0 %v4891
        %4972 = vmatpush.bf16.msra.mxu0 %v4890
        %4973 = vmatmul.bf16.gmra.mxu0 %v4679
        %v4974 = vpop.f32.mrf.mxu0
        %v4975 = vadd.f32 %v4956, %v4974
        %v4976 = vpop.f32.mrf.mxu0
        %v4977 = vadd.f32 %v4958, %v4976
        %4978 = vmatmul.bf16.gmra.mxu0 %v4683
        %v4979 = vpop.f32.mrf.mxu0
        %v4980 = vadd.f32 %v4961, %v4979
        %v4981 = vpop.f32.mrf.mxu0
        %v4982 = vadd.f32 %v4963, %v4981
        %4983 = vdwg.mxu0
        %4984 = vmatpush.bf16.msra.mxu0 %v4905
        %4985 = vmatpush.bf16.msra.mxu0 %v4904
        %4986 = vmatpush.bf16.msra.mxu0 %v4903
        %4987 = vmatpush.bf16.msra.mxu0 %v4902
        %4988 = vmatpush.bf16.msra.mxu0 %v4901
        %4989 = vmatpush.bf16.msra.mxu0 %v4900
        %4990 = vmatpush.bf16.msra.mxu0 %v4899
        %4991 = vmatpush.bf16.msra.mxu0 %v4898
        %4992 = vmatmul.bf16.gmra.mxu0 %v4680
        %v4993 = vpop.f32.mrf.mxu0
        %v4994 = vadd.f32 %v4975, %v4993
        %v4995 = vpop.f32.mrf.mxu0
        %v4996 = vadd.f32 %v4977, %v4995
        %4997 = vmatmul.bf16.gmra.mxu0 %v4684
        %v4998 = vpop.f32.mrf.mxu0
        %v4999 = vadd.f32 %v4980, %v4998
        %v5000 = vpop.f32.mrf.mxu0
        %v5001 = vadd.f32 %v4982, %v5000
        %5002 = vdwg.mxu0
        %5003 = vmatpush.bf16.msra.mxu0 %v4913
        %5004 = vmatpush.bf16.msra.mxu0 %v4912
        %5005 = vmatpush.bf16.msra.mxu0 %v4911
        %5006 = vmatpush.bf16.msra.mxu0 %v4910
        %5007 = vmatpush.bf16.msra.mxu0 %v4909
        %5008 = vmatpush.bf16.msra.mxu0 %v4908
        %5009 = vmatpush.bf16.msra.mxu0 %v4907
        %5010 = vmatpush.bf16.msra.mxu0 %v4906
        %5011 = vmatmul.bf16.gmra.mxu0 %v4681
        %v5012 = vpop.f32.mrf.mxu0
        %v5013 = vadd.f32 %v4994, %v5012
        %v5014 = vpop.f32.mrf.mxu0
        %v5015 = vadd.f32 %v4996, %v5014
        %5016 = vmatmul.bf16.gmra.mxu0 %v4685
        %v5017 = vpop.f32.mrf.mxu0
        %v5018 = vadd.f32 %v4999, %v5017
        %v5019 = vpop.f32.mrf.mxu0
        %v5020 = vadd.f32 %v5001, %v5019
        %5021 = vdwg.mxu0
        %v5022 = vadd.f32 %v3690, %v5013
        %v5023 = vadd.f32 %v3691, %v5015
        %v5024 = vadd.f32 %v3692, %v5018
        %v5025 = vadd.f32 %v3693, %v5020
        %5026 = vst [vmem:[#allocation19] sm:$0xff] %v5022
        %5027 = vst [vmem:[#allocation19 + $0x8] sm:$0xff] %v5023
        %5028 = vst [vmem:[#allocation19 + $0x10] sm:$0xff] %v5024
        %5029 = vst [vmem:[#allocation19 + $0x18] sm:$0xff] %v5025
        %p5030 = scmp.eq.s32.totalorder %s43, 1
        // Predicated region
        $region113: #{tpu_custom_call.1} parent=67 // pred_check
          %p5031 = pneg %p5030
        $region114: #{tpu_custom_call.1} parent=67 // pred_check_branch
          %5033 = sbr.rel (%p5031) target = $region116
        $region115: #{tpu_custom_call.1} parent=67 // pred_region
          %v5034 = vld [vmem:[#allocation7] sm:$0x1]
          %v5035 = vmul.f32 %v5022, %v5022
          %v5036 = vmul.f32 %v5023, %v5023
          %v5037 = vmul.f32 %v5024, %v5024
          %v5038 = vmul.f32 %v5025, %v5025
          %5039 = vadd.xlane.f32.xlu0 %v5035
          %v5040 = vpop.xlane.xlu0 %5039
          %5041 = vadd.xlane.f32.xlu0 %v5036
          %v5042 = vpop.xlane.xlu0 %5041
          %5043 = vadd.xlane.f32.xlu0 %v5037
          %v5044 = vpop.xlane.xlu0 %5043
          %5045 = vadd.xlane.f32.xlu0 %v5038
          %v5046 = vpop.xlane.xlu0 %5045
          %v5047 = vrsqrt.pop %v5040
          %v5048 = vmul.f32 %v5047, %v5040
          %v5049 = vmul.f32 %v5048, %v5047
          %v5050 = vmul.f32 0.5, %v5049
          %v5051 = vsub.f32 1.5, %v5050
          %v5052 = vmul.f32 %v5047, %v5051
          %v5053 = vmul.f32 %v5040, %v5052
          %vm5054 = vcmp.eq.f32.partialorder %v5040, inf
          %v5055 = vsel %vm5054, %v5040, %v5053
          %vm5056 = vcmp.eq.f32.partialorder %v5040, 0.0
          %v5057 = vand.u32 %v5040, 2147483648
          %v5058 = vsel %vm5056, %v5057, %v5055
          %v5059 = vrsqrt.pop %v5042
          %v5060 = vmul.f32 %v5059, %v5042
          %v5061 = vmul.f32 %v5060, %v5059
          %v5062 = vmul.f32 0.5, %v5061
          %v5063 = vsub.f32 1.5, %v5062
          %v5064 = vmul.f32 %v5059, %v5063
          %v5065 = vmul.f32 %v5042, %v5064
          %vm5066 = vcmp.eq.f32.partialorder %v5042, inf
          %v5067 = vsel %vm5066, %v5042, %v5065
          %vm5068 = vcmp.eq.f32.partialorder %v5042, 0.0
          %v5069 = vand.u32 %v5042, 2147483648
          %v5070 = vsel %vm5068, %v5069, %v5067
          %v5071 = vrsqrt.pop %v5044
          %v5072 = vmul.f32 %v5071, %v5044
          %v5073 = vmul.f32 %v5072, %v5071
          %v5074 = vmul.f32 0.5, %v5073
          %v5075 = vsub.f32 1.5, %v5074
          %v5076 = vmul.f32 %v5071, %v5075
          %v5077 = vmul.f32 %v5044, %v5076
          %vm5078 = vcmp.eq.f32.partialorder %v5044, inf
          %v5079 = vsel %vm5078, %v5044, %v5077
          %vm5080 = vcmp.eq.f32.partialorder %v5044, 0.0
          %v5081 = vand.u32 %v5044, 2147483648
          %v5082 = vsel %vm5080, %v5081, %v5079
          %v5083 = vrsqrt.pop %v5046
          %v5084 = vmul.f32 %v5083, %v5046
          %v5085 = vmul.f32 %v5084, %v5083
          %v5086 = vmul.f32 0.5, %v5085
          %v5087 = vsub.f32 1.5, %v5086
          %v5088 = vmul.f32 %v5083, %v5087
          %v5089 = vmul.f32 %v5046, %v5088
          %vm5090 = vcmp.eq.f32.partialorder %v5046, inf
          %v5091 = vsel %vm5090, %v5046, %v5089
          %vm5092 = vcmp.eq.f32.partialorder %v5046, 0.0
          %v5093 = vand.u32 %v5046, 2147483648
          %v5094 = vsel %vm5092, %v5093, %v5091
          %v5095 = vmul.f32 %v5058, 0.088388346
          %v5096 = vmul.f32 %v5070, 0.088388346
          %v5097 = vmul.f32 %v5082, 0.088388346
          %v5098 = vmul.f32 %v5094, 0.088388346
          %v5099 = vadd.f32 %v5095, 1e-08
          %v5100 = vadd.f32 %v5096, 1e-08
          %v5101 = vadd.f32 %v5097, 1e-08
          %v5102 = vadd.f32 %v5098, 1e-08
          %v5103 = vrcp.pop %v5099
          %v5104 = vmul.f32 %v5099, %v5103
          %v5105 = vsub.f32 1.0, %v5104
          %v5106 = vmul.f32 %v5103, %v5105
          %v5107 = vadd.f32 %v5103, %v5106
          %vm5108 = vweird.f32 %v5099
          %vm5109 = vweird.f32 %v5103
          %vm5110 = vmor %vm5108, %vm5109
          %v5111 = vsel %vm5110, %v5103, %v5107
          %v5112 = vand.u32 2147483647, %v5099
          %vm5113 = vcmp.eq.f32.partialorder %v5112, 8.507059e+37
          %v5114 = vand.u32 %v5099, 2147483648
          %v5115 = vor.u32 1.1754944e-38, %v5114
          %v5116 = vsel %vm5113, %v5115, %v5111
          %v5117 = vmul.f32 %v5022, %v5116
          %v5118 = vrcp.pop %v5100
          %v5119 = vmul.f32 %v5100, %v5118
          %v5120 = vsub.f32 1.0, %v5119
          %v5121 = vmul.f32 %v5118, %v5120
          %v5122 = vadd.f32 %v5118, %v5121
          %vm5123 = vweird.f32 %v5100
          %vm5124 = vweird.f32 %v5118
          %vm5125 = vmor %vm5123, %vm5124
          %v5126 = vsel %vm5125, %v5118, %v5122
          %v5127 = vand.u32 2147483647, %v5100
          %vm5128 = vcmp.eq.f32.partialorder %v5127, 8.507059e+37
          %v5129 = vand.u32 %v5100, 2147483648
          %v5130 = vor.u32 1.1754944e-38, %v5129
          %v5131 = vsel %vm5128, %v5130, %v5126
          %v5132 = vmul.f32 %v5023, %v5131
          %v5133 = vrcp.pop %v5101
          %v5134 = vmul.f32 %v5101, %v5133
          %v5135 = vsub.f32 1.0, %v5134
          %v5136 = vmul.f32 %v5133, %v5135
          %v5137 = vadd.f32 %v5133, %v5136
          %vm5138 = vweird.f32 %v5101
          %vm5139 = vweird.f32 %v5133
          %vm5140 = vmor %vm5138, %vm5139
          %v5141 = vsel %vm5140, %v5133, %v5137
          %v5142 = vand.u32 2147483647, %v5101
          %vm5143 = vcmp.eq.f32.partialorder %v5142, 8.507059e+37
          %v5144 = vand.u32 %v5101, 2147483648
          %v5145 = vor.u32 1.1754944e-38, %v5144
          %v5146 = vsel %vm5143, %v5145, %v5141
          %v5147 = vmul.f32 %v5024, %v5146
          %v5148 = vrcp.pop %v5102
          %v5149 = vmul.f32 %v5102, %v5148
          %v5150 = vsub.f32 1.0, %v5149
          %v5151 = vmul.f32 %v5148, %v5150
          %v5152 = vadd.f32 %v5148, %v5151
          %vm5153 = vweird.f32 %v5102
          %vm5154 = vweird.f32 %v5148
          %vm5155 = vmor %vm5153, %vm5154
          %v5156 = vsel %vm5155, %v5148, %v5152
          %v5157 = vand.u32 2147483647, %v5102
          %vm5158 = vcmp.eq.f32.partialorder %v5157, 8.507059e+37
          %v5159 = vand.u32 %v5102, 2147483648
          %v5160 = vor.u32 1.1754944e-38, %v5159
          %v5161 = vsel %vm5158, %v5160, %v5156
          %v5162 = vmul.f32 %v5025, %v5161
          %v5164 = vperm.slane %v5034, 0
          %v5166 = vmul.f32 %v5164, %v5117
          %v5167 = vmul.f32 %v5164, %v5132
          %v5168 = vmul.f32 %v5164, %v5147
          %v5169 = vmul.f32 %v5164, %v5162
          %5170 = vst [vmem:[#allocation19] sm:$0xff] %v5166
          %5171 = vst [vmem:[#allocation19 + $0x8] sm:$0xff] %v5167
          %5172 = vst [vmem:[#allocation19 + $0x10] sm:$0xff] %v5168
          %5173 = vst [vmem:[#allocation19 + $0x18] sm:$0xff] %v5169
        $region116: #{tpu_custom_call.1} parent=67 // pred_fallthru
          _
        // Predicated region
        $region117: #{tpu_custom_call.1} parent=67 // pred_check
          %p5174 = pneg %p375
        $region118: #{tpu_custom_call.1} parent=67 // pred_check_branch
          %5176 = sbr.rel (%p5174) target = $region120
        $region119: #{tpu_custom_call.1} parent=67 // pred_region
          %s5177 = smul.u32 2, %s42
          %5179 = vsyncadd [#allocation4], 0
          %s5180 = smul.addr %s5177, 2
          %s5181 = smul.addr %s5180, 8
          %s5182 = scalar_lea.hbm %s12, %s5181
          %s5183 = sshll.u32 [#allocation19], 4
          %s5184 = int_to_ptr.vmem [resolvable:$true] %s5183
          %s5185 = sshll.u32 %s5182, 4
          %s5186 = int_to_ptr.hbm [resolvable:$true] %s5185
          %5191 = dma.vmem_to_hbm [thread:$0]  %s5184, 512, %s5186, [#allocation4], 128, 128, 8
        $region120: #{tpu_custom_call.1} parent=67 // pred_fallthru
          _
        // Predicated region
        $region121: #{tpu_custom_call.1} parent=67 // pred_check
          %p5192 = pneg %p375
        $region122: #{tpu_custom_call.1} parent=67 // pred_check_branch
          %5194 = sbr.rel (%p5192) target = $region124
        $region123: #{tpu_custom_call.1} parent=67 // pred_region
          %5196 = dma.done [#allocation4], 512
        $region124: #{tpu_custom_call.1} parent=67 // pred_fallthru
          _
      $region68: #{tpu_custom_call.1} parent=5 // pred_fallthru
        _
      %p5197 = scmp.le.s32.totalorder 2, %s33
      // Predicated region
      $region125: #{tpu_custom_call.1} parent=5 // pred_check
        %p5198 = pneg %p5197
      $region126: #{tpu_custom_call.1} parent=5 // pred_check_branch
        %5200 = sbr.rel (%p5198) target = $region128
      $region127: #{tpu_custom_call.1} parent=5 // pred_region
        %s5201 = ssub.s32 %s33, 2
      $region128: #{tpu_custom_call.1} parent=5 // pred_fallthru
        _
    $region6: #{tpu_custom_call.1} parent=1 // loop_footer
      %s37 = sadd.s32 1, %s33
    $region7: #{tpu_custom_call.1} parent=1 // loop_footer_branch
      %32 = sbr.rel target = $region3
    $region8: #{tpu_custom_call.1} parent=1 // loop_exit
      _
    %5202 = vsyncpa [#allocation3], 1
    %s5203 = scalar_lea.sflag [#allocation3], 1
    %5204 = vsyncpa %s5203, 1
    %5205 = vsyncpa [#allocation6], 1
    %5206 = vsyncpa [#allocation9], 1
    %s5207 = scalar_lea.sflag [#allocation9], 1
    %5208 = vsyncpa %s5207, 1
    %5209 = vsyncpa [#allocation12], 1
    %s5210 = scalar_lea.sflag [#allocation12], 1
    %5211 = vsyncpa %s5210, 1
    %5212 = vsyncpa [#allocation15], 1
    %s5213 = scalar_lea.sflag [#allocation15], 1
    %5214 = vsyncpa %s5213, 1
    %5215 = vsyncpa [#allocation18], 1
    %s5216 = scalar_lea.sflag [#allocation18], 1
    %5217 = vsyncpa %s5216, 1
    %5218 = vsyncpa [#allocation4], 1
    %s5219 = scalar_lea.sflag [#allocation4], 1
    %5220 = vsyncpa %s5219, 1

</llo_original>
